<compile_context>
chip_gen: v5e
topology: v5e:2x2
jax: 0.10.0
libtpu: 0.0.40
codegen_flags: <defaults>
</compile_context>

<pallas_src>
import jax
import jax.numpy as jnp
from jax.experimental import pallas as pl
from jax.experimental.pallas import tpu as pltpu

IN_DIM, H1, H2 = 784, 512, 256


def discriminator_kernel(x_ref, w1_ref, b1_ref, w2_ref, b2_ref, w3_ref, b3_ref,
                         o_ref):
    # fc1: bf16 MXU matmul, f32 accumulate; bias + LeakyReLU(0.2) in f32.
    h = jnp.dot(x_ref[...], w1_ref[...], preferred_element_type=jnp.float32)
    h = h + b1_ref[...]
    h = jnp.where(h > 0, h, 0.2 * h)

    # fc2: cast activations to bf16 for the MXU, accumulate in f32.
    h = jnp.dot(h.astype(jnp.bfloat16), w2_ref[...],
                preferred_element_type=jnp.float32)
    h = h + b2_ref[...]
    h = jnp.where(h > 0, h, 0.2 * h)

    # fc3 (out_features == 1): VPU multiply + XLU lane reduce instead of an
    # MXU matmul that would use 1/128 output lanes.
    z = jnp.sum(h * w3_ref[...], axis=-1, keepdims=True) + b3_ref[...]

    # Sigmoid: exp on the EUP, approx reciprocal also on the EUP.
    # (TILE_B, 1) store is lane-sparse but output bytes are negligible here.
    o_ref[...] = pl.reciprocal(1.0 + jnp.exp(-z), approx=True).astype(o_ref.dtype)


def discriminator_forward(x, params, tile_b=256):
    """x: (B, 784) float32 -> (B, 1) float32."""
    w1, b1, w2, b2, w3, b3 = params
    B = x.shape[0]

    # Pad batch to a multiple of the tile so every grid step is full.
    n_tiles = pl.cdiv(B, tile_b)
    Bp = n_tiles * tile_b
    x_p = x if Bp == B else jnp.pad(x, ((0, Bp - B), (0, 0)))

    # bf16 operands for the MXU (halves x DMA too); f32 kept for bias/elemwise.
    x_bf = x_p.astype(jnp.bfloat16)
    w1_bf = w1.astype(jnp.bfloat16)
    w2_bf = w2.astype(jnp.bfloat16)
    w3_row = w3.reshape(1, H2).astype(jnp.float32)   # (1, 256) for VPU reduce

    resident = lambda shape: pl.BlockSpec(shape, lambda i: (0, 0))

    out = pl.pallas_call(
        discriminator_kernel,
        out_shape=jax.ShapeDtypeStruct((Bp, 1), jnp.float32),
        grid_spec=pltpu.PrefetchScalarGridSpec(
            num_scalar_prefetch=0,
            grid=(n_tiles,),
            in_specs=[
                pl.BlockSpec((tile_b, IN_DIM), lambda i: (i, 0)),  # streamed x
                resident((IN_DIM, H1)),   # w1 (bf16), fetched once
                resident((1, H1)),        # b1
                resident((H1, H2)),       # w2 (bf16)
                resident((1, H2)),        # b2
                resident((1, H2)),        # w3 row
                resident((1, 1)),         # b3
            ],
            out_specs=pl.BlockSpec((tile_b, 1), lambda i: (i, 0)),
        ),
        compiler_params=pltpu.CompilerParams(
            dimension_semantics=("parallel",),   # megacore split on v7x
            vmem_limit_bytes=16 << 20,
        ),
    )(x_bf, w1_bf, b1, w2_bf, b2, w3_row, b3)

    return out[:B]


def init_params(key):
    """Deterministic init mimicking nn.Linear default (uniform +/- 1/sqrt(fan_in))."""
    dims = [(IN_DIM, H1), (H1, H2), (H2, 1)]
    params = []
    for i, (fan_in, fan_out) in enumerate(dims):
        kw, kb = jax.random.split(jax.random.fold_in(key, i))
        bound = 1.0 / (fan_in ** 0.5)
        w = jax.random.uniform(kw, (fan_in, fan_out), jnp.float32, -bound, bound)
        b = jax.random.uniform(kb, (1, fan_out), jnp.float32, -bound, bound)
        params += [w, b]
    return tuple(params)


def reference_forward(x, params):
    w1, b1, w2, b2, w3, b3 = params
    h = jnp.dot(x, w1) + b1
    h = jnp.where(h > 0, h, 0.2 * h)
    h = jnp.dot(h, w2) + b2
    h = jnp.where(h > 0, h, 0.2 * h)
    z = jnp.dot(h, w3) + b3
    return jax.nn.sigmoid(z)


if __name__ == "__main__":
    key = jax.random.PRNGKey(0)
    kx, kp = jax.random.split(key)

    B = 300  # not a multiple of TILE_B: exercises padding + a 2-step grid
    x = jax.random.normal(kx, (B, IN_DIM), jnp.float32)
    params = init_params(kp)

    out = discriminator_forward(x, params, tile_b=256)
    out = jax.block_until_ready(out)

    ref = reference_forward(x, params)
    assert out.shape == (B, 1)
    # Tolerance relaxed vs. the pure-f32 version: bf16 matmul operands +
    # approx reciprocal; error stays well under 2e-2 after the sigmoid.
    assert jnp.allclose(out, ref, atol=2e-2, rtol=2e-2), "mismatch vs JAX reference"
    assert bool(jnp.all(jnp.isfinite(out)))

    print("KERNEL_OK")
</pallas_src>

<mosaic_0001>
module attributes {stable_mosaic.version = 11 : i64} {
  func.func @discriminator_kernel(%arg0: i32, %arg1: memref<256x784xbf16, #tpu.memory_space<vmem>>, %arg2: memref<784x512xbf16, #tpu.memory_space<vmem>>, %arg3: memref<1x512xf32, #tpu.memory_space<vmem>>, %arg4: memref<512x256xbf16, #tpu.memory_space<vmem>>, %arg5: memref<1x256xf32, #tpu.memory_space<vmem>>, %arg6: memref<1x256xf32, #tpu.memory_space<vmem>>, %arg7: memref<1x1xf32, #tpu.memory_space<vmem>>, %arg8: memref<256x1xf32, #tpu.memory_space<vmem>>) attributes {dimension_semantics = [#tpu.dimension_semantics<parallel>], iteration_bounds = array<i64: 2>, scalar_prefetch = 0 : i64, scratch_operands = 0 : i64, tpu.core_type = #tpu.core_type<tc>, window_params = [{transform_indices = @transform_0, window_bounds = array<i64: 256, 784>}, {pipeline_mode = #tpu.pipeline_mode<synchronous>, transform_indices = @transform_1, window_bounds = array<i64: 784, 512>}, {pipeline_mode = #tpu.pipeline_mode<synchronous>, transform_indices = @transform_2, window_bounds = array<i64: 1, 512>}, {pipeline_mode = #tpu.pipeline_mode<synchronous>, transform_indices = @transform_3, window_bounds = array<i64: 512, 256>}, {pipeline_mode = #tpu.pipeline_mode<synchronous>, transform_indices = @transform_4, window_bounds = array<i64: 1, 256>}, {pipeline_mode = #tpu.pipeline_mode<synchronous>, transform_indices = @transform_5, window_bounds = array<i64: 1, 256>}, {pipeline_mode = #tpu.pipeline_mode<synchronous>, transform_indices = @transform_6, window_bounds = array<i64: 1, 1>}, {transform_indices = @transform_7, window_bounds = array<i64: 256, 1>}]} {
    %c0 = arith.constant 0 : index
    %c0_0 = arith.constant 0 : index
    %0 = vector.load %arg1[%c0, %c0_0] : memref<256x784xbf16, #tpu.memory_space<vmem>>, vector<256x784xbf16>
    %c0_1 = arith.constant 0 : index
    %c0_2 = arith.constant 0 : index
    %1 = vector.load %arg2[%c0_1, %c0_2] : memref<784x512xbf16, #tpu.memory_space<vmem>>, vector<784x512xbf16>
    %cst = arith.constant dense<0.000000e+00> : vector<256x512xf32>
    %2 = tpu.matmul %0, %1, %cst {dimension_numbers = #tpu.dot_dimension_numbers<[1], [0], [0], [1], [0, 0, 1, 1], [], []>} : vector<256x784xbf16>, vector<784x512xbf16>, vector<256x512xf32> -> vector<256x512xf32>
    %c0_3 = arith.constant 0 : index
    %c0_4 = arith.constant 0 : index
    %3 = vector.load %arg3[%c0_3, %c0_4] : memref<1x512xf32, #tpu.memory_space<vmem>>, vector<1x512xf32>
    %4 = vector.broadcast %3 : vector<1x512xf32> to vector<256x512xf32>
    %5 = arith.addf %2, %4 : vector<256x512xf32>
    %cst_5 = arith.constant 0.000000e+00 : f32
    %6 = vector.broadcast %cst_5 : f32 to vector<256x512xf32>
    %7 = arith.cmpf ogt, %5, %6 : vector<256x512xf32>
    %cst_6 = arith.constant 2.000000e-01 : f32
    %8 = vector.broadcast %cst_6 : f32 to vector<256x512xf32>
    %9 = arith.mulf %8, %5 : vector<256x512xf32>
    %10 = arith.select %7, %5, %9 : vector<256x512xi1>, vector<256x512xf32>
    %11 = arith.truncf %10 : vector<256x512xf32> to vector<256x512xbf16>
    %c0_7 = arith.constant 0 : index
    %c0_8 = arith.constant 0 : index
    %12 = vector.load %arg4[%c0_7, %c0_8] : memref<512x256xbf16, #tpu.memory_space<vmem>>, vector<512x256xbf16>
    %cst_9 = arith.constant dense<0.000000e+00> : vector<256x256xf32>
    %13 = tpu.matmul %11, %12, %cst_9 {dimension_numbers = #tpu.dot_dimension_numbers<[1], [0], [0], [1], [0, 0, 1, 1], [], []>} : vector<256x512xbf16>, vector<512x256xbf16>, vector<256x256xf32> -> vector<256x256xf32>
    %c0_10 = arith.constant 0 : index
    %c0_11 = arith.constant 0 : index
    %14 = vector.load %arg5[%c0_10, %c0_11] : memref<1x256xf32, #tpu.memory_space<vmem>>, vector<1x256xf32>
    %15 = vector.broadcast %14 : vector<1x256xf32> to vector<256x256xf32>
    %16 = arith.addf %13, %15 : vector<256x256xf32>
    %cst_12 = arith.constant 0.000000e+00 : f32
    %17 = vector.broadcast %cst_12 : f32 to vector<256x256xf32>
    %18 = arith.cmpf ogt, %16, %17 : vector<256x256xf32>
    %cst_13 = arith.constant 2.000000e-01 : f32
    %19 = vector.broadcast %cst_13 : f32 to vector<256x256xf32>
    %20 = arith.mulf %19, %16 : vector<256x256xf32>
    %21 = arith.select %18, %16, %20 : vector<256x256xi1>, vector<256x256xf32>
    %c0_14 = arith.constant 0 : index
    %c0_15 = arith.constant 0 : index
    %22 = vector.load %arg6[%c0_14, %c0_15] : memref<1x256xf32, #tpu.memory_space<vmem>>, vector<1x256xf32>
    %23 = vector.broadcast %22 : vector<1x256xf32> to vector<256x256xf32>
    %24 = arith.mulf %21, %23 : vector<256x256xf32>
    %cst_16 = arith.constant dense<0.000000e+00> : vector<256xf32>
    %25 = vector.multi_reduction <add>, %24, %cst_16 [1] : vector<256x256xf32> to vector<256xf32>
    %26 = vector.shape_cast %25 : vector<256xf32> to vector<256x1xf32>
    %c0_17 = arith.constant 0 : index
    %c0_18 = arith.constant 0 : index
    %27 = vector.load %arg7[%c0_17, %c0_18] : memref<1x1xf32, #tpu.memory_space<vmem>>, vector<1x1xf32>
    %28 = vector.broadcast %27 : vector<1x1xf32> to vector<256x1xf32>
    %29 = arith.addf %26, %28 : vector<256x1xf32>
    %cst_19 = arith.constant 0.000000e+00 : f32
    %30 = vector.broadcast %cst_19 : f32 to vector<256x1xf32>
    %31 = arith.subf %30, %29 : vector<256x1xf32>
    %32 = math.exp %31 : vector<256x1xf32>
    %cst_20 = arith.constant 1.000000e+00 : f32
    %33 = vector.broadcast %cst_20 : f32 to vector<256x1xf32>
    %34 = arith.addf %33, %32 : vector<256x1xf32>
    %35 = tpu.reciprocal %34 {approx = true} : vector<256x1xf32> -> vector<256x1xf32>
    %c0_21 = arith.constant 0 : index
    %c0_22 = arith.constant 0 : index
    %36 = vector.load %arg8[%c0_21, %c0_22] : memref<256x1xf32, #tpu.memory_space<vmem>>, vector<256x1xf32>
    tpu.vector_store %arg8[%c0_21, %c0_22], %35 {strides = array<i32>} : memref<256x1xf32, #tpu.memory_space<vmem>>, vector<256x1xf32>,
    return
  }
  func.func @transform_0(%arg0: i32) -> (i32, i32) {
    %c0_i32 = arith.constant 0 : i32
    %c0_i32_0 = arith.constant 0 : i32
    return %arg0, %c0_i32 : i32, i32
  }
  func.func @transform_1(%arg0: i32) -> (i32, i32) {
    %c0_i32 = arith.constant 0 : i32
    %c0_i32_0 = arith.constant 0 : i32
    %c0_i32_1 = arith.constant 0 : i32
    return %c0_i32, %c0_i32_0 : i32, i32
  }
  func.func @transform_2(%arg0: i32) -> (i32, i32) {
    %c0_i32 = arith.constant 0 : i32
    %c0_i32_0 = arith.constant 0 : i32
    %c0_i32_1 = arith.constant 0 : i32
    return %c0_i32, %c0_i32_0 : i32, i32
  }
  func.func @transform_3(%arg0: i32) -> (i32, i32) {
    %c0_i32 = arith.constant 0 : i32
    %c0_i32_0 = arith.constant 0 : i32
    %c0_i32_1 = arith.constant 0 : i32
    return %c0_i32, %c0_i32_0 : i32, i32
  }
  func.func @transform_4(%arg0: i32) -> (i32, i32) {
    %c0_i32 = arith.constant 0 : i32
    %c0_i32_0 = arith.constant 0 : i32
    %c0_i32_1 = arith.constant 0 : i32
    return %c0_i32, %c0_i32_0 : i32, i32
  }
  func.func @transform_5(%arg0: i32) -> (i32, i32) {
    %c0_i32 = arith.constant 0 : i32
    %c0_i32_0 = arith.constant 0 : i32
    %c0_i32_1 = arith.constant 0 : i32
    return %c0_i32, %c0_i32_0 : i32, i32
  }
  func.func @transform_6(%arg0: i32) -> (i32, i32) {
    %c0_i32 = arith.constant 0 : i32
    %c0_i32_0 = arith.constant 0 : i32
    %c0_i32_1 = arith.constant 0 : i32
    return %c0_i32, %c0_i32_0 : i32, i32
  }
  func.func @transform_7(%arg0: i32) -> (i32, i32) {
    %c0_i32 = arith.constant 0 : i32
    %c0_i32_0 = arith.constant 0 : i32
    return %arg0, %c0_i32 : i32, i32
  }
}

</mosaic_0001>

<llo_original>
// kernel: tpu_custom_call.1
$region0: #{tpu_custom_call.1}
  #allocation0 [shape = 'u32[]', space=smem, size = 0x4, offset = 0x4, fixed_abs, tag = 'smem constant byte address 0x4 - core index']
  #allocation1 [shape = 'u32[72,128]{1,0:T(1,128)}', space=vmem, size = 0x9000, scoped, tag = 'internal scratch']
  #allocation2 [shape = 'f32[1,1]{1,0:T(1,128)S(1)}', space=vmem, size = 0x200, scoped, tag = 'scoped memory for tpu_custom_call.1']
  %s0 = inlined_call_operand.vmem [shape: bf16[512,784], index: 0, kind: input, shape index: {}]
  %s1 = inlined_call_operand.vmem [shape: bf16[784,512], index: 1, kind: input, shape index: {}]
  %s2 = inlined_call_operand.vmem [shape: f32[1,512], index: 2, kind: input, shape index: {}]
  %s3 = inlined_call_operand.vmem [shape: bf16[512,256], index: 3, kind: input, shape index: {}]
  %s4 = inlined_call_operand.vmem [shape: f32[1,256], index: 4, kind: input, shape index: {}]
  %s5 = inlined_call_operand.vmem [shape: f32[1,256], index: 5, kind: input, shape index: {}]
  %s6 = inlined_call_operand.<no memory space> [shape: f32[1,1], index: 6, kind: input, shape index: {}]
  %s7 = inlined_call_operand.vmem [shape: f32[512,1], index: 7, kind: output, shape index: {}]
  %s8 = sld [smem:[#allocation0]]
  $region61: #{tpu_custom_call.1} parent=0
    _
  %s10 = ssub.s32 1, %s8
  %s11 = scalar_select 0, %s10, %s8
  %v12 = vstv %s6
  %13 = vst [vmem:[#allocation2] sm:$0x1] %v12
  loop: start=0, step=1, limit=4
  $region2: #{tpu_custom_call.1} parent=0 // loop_pre_header
    _
  $region3: #{tpu_custom_call.1} parent=0 // loop_header
    %s15 = sphi 0, %s19
    %p16 = scmp.ge.s32.totalorder %s15, 4
    %s25 = sphi 0, %s27
    %s28 = sphi 0, %s25
    %s29 = sphi 0, %s28
    %s45 = sphi 0, %s29
    %s49 = sphi 0, %s49
    %s51 = sphi 0, %s49
    %s52 = sphi 0, %s51
    %s66 = sphi 0, %s52
    %s70 = sphi 0, %s70
    %s72 = sphi 0, %s70
    %s73 = sphi 0, %s72
    %s87 = sphi 0, %s73
    %s91 = sphi 0, %s91
    %s93 = sphi 0, %s91
    %s94 = sphi 0, %s93
    %s108 = sphi 0, %s94
    %s112 = sphi 0, %s112
    %s114 = sphi 0, %s112
    %s115 = sphi 0, %s114
    %s129 = sphi 0, %s115
    %s133 = sphi 0, %s133
    %s135 = sphi 0, %s133
    %s136 = sphi 0, %s135
    %s150 = sphi 0, %s136
    %s154 = sphi 0, %s154
    %s156 = sphi 0, %s154
    %s157 = sphi 0, %s156
    %s171 = sphi 0, %s157
    %s177 = sphi 0, %s179
    %s180 = sphi 0, %s177
    %s181 = sphi 0, %s180
    %s197 = sphi 0, %s181
  $region4: #{tpu_custom_call.1} parent=0 // loop_header_branch
    %18 = sbr.rel (%p16) target = $region8
  $region5: #{tpu_custom_call.1} parent=0 // loop_body
    %s20 = ssub.s32 %s15, 1
    %s21 = ssub.s32 %s15, 2
    %s22 = sadd.s32 %s15, 1
    %s23 = ssub.s32 %s15, %s22
    %p24 = scmp.eq.s32.totalorder %s23, 0
    %s26 = sadd.s32 %s25, 1
    %s27 = scalar_select %p24, %s25, %s26
    %p30 = pneg %p24
    %p31 = scmp.eq.s32.totalorder %s15, 1
    %p32 = por %p30, %p31
    %p33 = scmp.ne.s32.totalorder %s25, %s28
    %p34 = scmp.eq.s32.totalorder %s15, 0
    %p35 = por %p33, %p34
    %p36 = scmp.ne.s32.totalorder %s25, %s28
    %p37 = scmp.eq.s32.totalorder %s20, 1
    %p38 = por %p36, %p37
    %p39 = scmp.ne.s32.totalorder %s28, %s29
    %p40 = scmp.eq.s32.totalorder %s20, 0
    %p41 = por %p39, %p40
    %p42 = scmp.ne.s32.totalorder %s28, %s29
    %p43 = scmp.eq.s32.totalorder %s21, 1
    %p44 = por %p42, %p43
    %p46 = scmp.ne.s32.totalorder %s29, %s45
    %p47 = scmp.eq.s32.totalorder %s21, 0
    %p48 = por %p46, %p47
    %s50 = sadd.s32 %s49, 1
    %p53 = scmp.eq.s32.totalorder %s15, 1
    %p54 = scmp.ne.s32.totalorder %s49, %s51
    %p55 = scmp.eq.s32.totalorder %s15, 0
    %p56 = por %p54, %p55
    %p57 = scmp.ne.s32.totalorder %s49, %s51
    %p58 = scmp.eq.s32.totalorder %s20, 1
    %p59 = por %p57, %p58
    %p60 = scmp.ne.s32.totalorder %s51, %s52
    %p61 = scmp.eq.s32.totalorder %s20, 0
    %p62 = por %p60, %p61
    %p63 = scmp.ne.s32.totalorder %s51, %s52
    %p64 = scmp.eq.s32.totalorder %s21, 1
    %p65 = por %p63, %p64
    %p67 = scmp.ne.s32.totalorder %s52, %s66
    %p68 = scmp.eq.s32.totalorder %s21, 0
    %p69 = por %p67, %p68
    %s71 = sadd.s32 %s70, 1
    %p74 = scmp.eq.s32.totalorder %s15, 1
    %p75 = scmp.ne.s32.totalorder %s70, %s72
    %p76 = scmp.eq.s32.totalorder %s15, 0
    %p77 = por %p75, %p76
    %p78 = scmp.ne.s32.totalorder %s70, %s72
    %p79 = scmp.eq.s32.totalorder %s20, 1
    %p80 = por %p78, %p79
    %p81 = scmp.ne.s32.totalorder %s72, %s73
    %p82 = scmp.eq.s32.totalorder %s20, 0
    %p83 = por %p81, %p82
    %p84 = scmp.ne.s32.totalorder %s72, %s73
    %p85 = scmp.eq.s32.totalorder %s21, 1
    %p86 = por %p84, %p85
    %p88 = scmp.ne.s32.totalorder %s73, %s87
    %p89 = scmp.eq.s32.totalorder %s21, 0
    %p90 = por %p88, %p89
    %s92 = sadd.s32 %s91, 1
    %p95 = scmp.eq.s32.totalorder %s15, 1
    %p96 = scmp.ne.s32.totalorder %s91, %s93
    %p97 = scmp.eq.s32.totalorder %s15, 0
    %p98 = por %p96, %p97
    %p99 = scmp.ne.s32.totalorder %s91, %s93
    %p100 = scmp.eq.s32.totalorder %s20, 1
    %p101 = por %p99, %p100
    %p102 = scmp.ne.s32.totalorder %s93, %s94
    %p103 = scmp.eq.s32.totalorder %s20, 0
    %p104 = por %p102, %p103
    %p105 = scmp.ne.s32.totalorder %s93, %s94
    %p106 = scmp.eq.s32.totalorder %s21, 1
    %p107 = por %p105, %p106
    %p109 = scmp.ne.s32.totalorder %s94, %s108
    %p110 = scmp.eq.s32.totalorder %s21, 0
    %p111 = por %p109, %p110
    %s113 = sadd.s32 %s112, 1
    %p116 = scmp.eq.s32.totalorder %s15, 1
    %p117 = scmp.ne.s32.totalorder %s112, %s114
    %p118 = scmp.eq.s32.totalorder %s15, 0
    %p119 = por %p117, %p118
    %p120 = scmp.ne.s32.totalorder %s112, %s114
    %p121 = scmp.eq.s32.totalorder %s20, 1
    %p122 = por %p120, %p121
    %p123 = scmp.ne.s32.totalorder %s114, %s115
    %p124 = scmp.eq.s32.totalorder %s20, 0
    %p125 = por %p123, %p124
    %p126 = scmp.ne.s32.totalorder %s114, %s115
    %p127 = scmp.eq.s32.totalorder %s21, 1
    %p128 = por %p126, %p127
    %p130 = scmp.ne.s32.totalorder %s115, %s129
    %p131 = scmp.eq.s32.totalorder %s21, 0
    %p132 = por %p130, %p131
    %s134 = sadd.s32 %s133, 1
    %p137 = scmp.eq.s32.totalorder %s15, 1
    %p138 = scmp.ne.s32.totalorder %s133, %s135
    %p139 = scmp.eq.s32.totalorder %s15, 0
    %p140 = por %p138, %p139
    %p141 = scmp.ne.s32.totalorder %s133, %s135
    %p142 = scmp.eq.s32.totalorder %s20, 1
    %p143 = por %p141, %p142
    %p144 = scmp.ne.s32.totalorder %s135, %s136
    %p145 = scmp.eq.s32.totalorder %s20, 0
    %p146 = por %p144, %p145
    %p147 = scmp.ne.s32.totalorder %s135, %s136
    %p148 = scmp.eq.s32.totalorder %s21, 1
    %p149 = por %p147, %p148
    %p151 = scmp.ne.s32.totalorder %s136, %s150
    %p152 = scmp.eq.s32.totalorder %s21, 0
    %p153 = por %p151, %p152
    %s155 = sadd.s32 %s154, 1
    %p158 = scmp.eq.s32.totalorder %s15, 1
    %p159 = scmp.ne.s32.totalorder %s154, %s156
    %p160 = scmp.eq.s32.totalorder %s15, 0
    %p161 = por %p159, %p160
    %p162 = scmp.ne.s32.totalorder %s154, %s156
    %p163 = scmp.eq.s32.totalorder %s20, 1
    %p164 = por %p162, %p163
    %p165 = scmp.ne.s32.totalorder %s156, %s157
    %p166 = scmp.eq.s32.totalorder %s20, 0
    %p167 = por %p165, %p166
    %p168 = scmp.ne.s32.totalorder %s156, %s157
    %p169 = scmp.eq.s32.totalorder %s21, 1
    %p170 = por %p168, %p169
    %p172 = scmp.ne.s32.totalorder %s157, %s171
    %p173 = scmp.eq.s32.totalorder %s21, 0
    %p174 = por %p172, %p173
    %s175 = ssub.s32 %s15, %s22
    %p176 = scmp.eq.s32.totalorder %s175, 0
    %s178 = sadd.s32 %s177, 1
    %s179 = scalar_select %p176, %s177, %s178
    %p182 = pneg %p176
    %p183 = scmp.eq.s32.totalorder %s15, 1
    %p184 = por %p182, %p183
    %p185 = scmp.ne.s32.totalorder %s177, %s180
    %p186 = scmp.eq.s32.totalorder %s15, 0
    %p187 = por %p185, %p186
    %p188 = scmp.ne.s32.totalorder %s177, %s180
    %p189 = scmp.eq.s32.totalorder %s20, 1
    %p190 = por %p188, %p189
    %p191 = scmp.ne.s32.totalorder %s180, %s181
    %p192 = scmp.eq.s32.totalorder %s20, 0
    %p193 = por %p191, %p192
    %p194 = scmp.ne.s32.totalorder %s180, %s181
    %p195 = scmp.eq.s32.totalorder %s21, 1
    %p196 = por %p194, %p195
    %p198 = scmp.ne.s32.totalorder %s181, %s197
    %p199 = scmp.eq.s32.totalorder %s21, 0
    %p200 = por %p198, %p199
    %p201 = scmp.le.s32.totalorder 1, %s15
    %p202 = scmp.lt.s32.totalorder %s15, 3
    %p203 = pnand %p201, %p202
    %p204 = pneg %p203
    // Predicated region
    $region9: #{tpu_custom_call.1} parent=5 // pred_check
      _
    $region10: #{tpu_custom_call.1} parent=5 // pred_check_branch
      %206 = sbr.rel (%p203) target = $region12
    $region11: #{tpu_custom_call.1} parent=5 // pred_region
      %s207 = ssub.s32 %s15, 1
      // Predicated region
      $region13: #{tpu_custom_call.1} parent=11 // pred_check
        %p208 = pneg %p62
      $region14: #{tpu_custom_call.1} parent=11 // pred_check_branch
        %210 = sbr.rel (%p208) target = $region16
      $region15: #{tpu_custom_call.1} parent=11 // pred_region
        _
      $region16: #{tpu_custom_call.1} parent=11 // pred_fallthru
        _
      // Predicated region
      $region17: #{tpu_custom_call.1} parent=11 // pred_check
        %p211 = pneg %p83
      $region18: #{tpu_custom_call.1} parent=11 // pred_check_branch
        %213 = sbr.rel (%p211) target = $region20
      $region19: #{tpu_custom_call.1} parent=11 // pred_region
        _
      $region20: #{tpu_custom_call.1} parent=11 // pred_fallthru
        _
      // Predicated region
      $region21: #{tpu_custom_call.1} parent=11 // pred_check
        %p214 = pneg %p104
      $region22: #{tpu_custom_call.1} parent=11 // pred_check_branch
        %216 = sbr.rel (%p214) target = $region24
      $region23: #{tpu_custom_call.1} parent=11 // pred_region
        _
      $region24: #{tpu_custom_call.1} parent=11 // pred_fallthru
        _
      // Predicated region
      $region25: #{tpu_custom_call.1} parent=11 // pred_check
        %p217 = pneg %p125
      $region26: #{tpu_custom_call.1} parent=11 // pred_check_branch
        %219 = sbr.rel (%p217) target = $region28
      $region27: #{tpu_custom_call.1} parent=11 // pred_region
        _
      $region28: #{tpu_custom_call.1} parent=11 // pred_fallthru
        _
      // Predicated region
      $region29: #{tpu_custom_call.1} parent=11 // pred_check
        %p220 = pneg %p146
      $region30: #{tpu_custom_call.1} parent=11 // pred_check_branch
        %222 = sbr.rel (%p220) target = $region32
      $region31: #{tpu_custom_call.1} parent=11 // pred_region
        _
      $region32: #{tpu_custom_call.1} parent=11 // pred_fallthru
        _
      // Predicated region
      $region33: #{tpu_custom_call.1} parent=11 // pred_check
        %p223 = pneg %p167
      $region34: #{tpu_custom_call.1} parent=11 // pred_check_branch
        %225 = sbr.rel (%p223) target = $region36
      $region35: #{tpu_custom_call.1} parent=11 // pred_region
        _
      $region36: #{tpu_custom_call.1} parent=11 // pred_fallthru
        _
    $region12: #{tpu_custom_call.1} parent=5 // pred_fallthru
      _
    %p226 = scmp.lt.s32.totalorder %s15, 2
    // Predicated region
    $region37: #{tpu_custom_call.1} parent=5 // pred_check
      %p227 = pneg %p226
    $region38: #{tpu_custom_call.1} parent=5 // pred_check_branch
      %229 = sbr.rel (%p227) target = $region40
    $region39: #{tpu_custom_call.1} parent=5 // pred_region
      // Predicated region
      $region41: #{tpu_custom_call.1} parent=39 // pred_check
        %p230 = pneg %p35
      $region42: #{tpu_custom_call.1} parent=39 // pred_check_branch
        %232 = sbr.rel (%p230) target = $region44
      $region43: #{tpu_custom_call.1} parent=39 // pred_region
        %s233 = smul.u32 32, %s15
        %p234 = scmp.lt.s32.totalorder %s233, 63
        %s235 = scalar_select %p234, %s233, 63
        %s236 = smul.addr %s235, 7
        %s237 = smul.addr %s236, 4
        %s238 = scalar_lea.vmem %s0, %s237
        %s239 = smul.u32 32, %s15
      $region44: #{tpu_custom_call.1} parent=39 // pred_fallthru
        _
    $region40: #{tpu_custom_call.1} parent=5 // pred_fallthru
      _
    %p240 = scmp.le.s32.totalorder 1, %s15
    %p241 = scmp.lt.s32.totalorder %s15, 3
    %p242 = pnand %p240, %p241
    %p243 = pneg %p242
    // Predicated region
    $region45: #{tpu_custom_call.1} parent=5 // pred_check
      _
    $region46: #{tpu_custom_call.1} parent=5 // pred_check_branch
      %245 = sbr.rel (%p242) target = $region48
    $region47: #{tpu_custom_call.1} parent=5 // pred_region
      %s246 = ssub.s32 %s15, 1
      %s247 = smul.u32 32, %s20
      %p248 = scmp.lt.s32.totalorder %s247, 63
      %s249 = scalar_select %p248, %s247, 63
      %s250 = smul.addr %s249, 7
      %s251 = smul.addr %s250, 4
      %s252 = scalar_lea.vmem %s0, %s251
      %p253 = pneg %p41
      %p254 = pneg %p38
      %p255 = pneg %p62
      %p256 = pneg %p59
      %p257 = pneg %p83
      %p258 = pneg %p80
      %p259 = pneg %p104
      %p260 = pneg %p101
      %p261 = pneg %p125
      %p262 = pneg %p122
      %p263 = pneg %p146
      %p264 = pneg %p143
      %p265 = pneg %p167
      %p266 = pneg %p164
      %p267 = pneg %p193
      %p268 = pneg %p190
      %s269 = smul.u32 32, %s20
      %p270 = scmp.lt.s32.totalorder %s269, 63
      %s271 = scalar_select %p270, %s269, 63
      %s272 = smul.addr %s271, 8
      %s273 = scalar_lea.vmem %s7, %s272
      %s274 = smul.u32 32, %s20
      %p275 = scmp.lt.s32.totalorder %s274, 63
      %s276 = scalar_select %p275, %s274, 63
      %s277 = smul.addr %s276, 7
      %s278 = smul.addr %s277, 4
      %s279 = scalar_lea.vmem %s0, %s278
      %s280 = smul.u32 32, %s20
      %s281 = smul.u32 32, %s20
      %p282 = scmp.lt.s32.totalorder %s281, 63
      %s283 = scalar_select %p282, %s281, 63
      %s284 = smul.addr %s283, 8
      %s285 = scalar_lea.vmem %s7, %s284
      %s286 = smul.u32 32, %s20
      %v288 = vld [vmem:[%s279] sm:$0xff]
      %v289 = vld [vmem:[%s279 + $0x8] sm:$0xff]
      %v290 = vld [vmem:[%s279 + $0x10] sm:$0xff]
      %v291 = vld [vmem:[%s279 + $0x18] sm:$0xf]
      %v292 = vld [vmem:[%s279 + $0x1c] sm:$0xff]
      %v293 = vld [vmem:[%s279 + $0x24] sm:$0xff]
      %v294 = vld [vmem:[%s279 + $0x2c] sm:$0xff]
      %v295 = vld [vmem:[%s279 + $0x34] sm:$0xf]
      %v296 = vld [vmem:[%s279 + $0x38] sm:$0xff]
      %v297 = vld [vmem:[%s279 + $0x40] sm:$0xff]
      %v298 = vld [vmem:[%s279 + $0x48] sm:$0xff]
      %v299 = vld [vmem:[%s279 + $0x50] sm:$0xf]
      %v300 = vld [vmem:[%s279 + $0x54] sm:$0xff]
      %v301 = vld [vmem:[%s279 + $0x5c] sm:$0xff]
      %v302 = vld [vmem:[%s279 + $0x64] sm:$0xff]
      %v303 = vld [vmem:[%s279 + $0x6c] sm:$0xf]
      %v304 = vld [vmem:[%s279 + $0x70] sm:$0xff]
      %v305 = vld [vmem:[%s279 + $0x78] sm:$0xff]
      %v306 = vld [vmem:[%s279 + $0x80] sm:$0xff]
      %v307 = vld [vmem:[%s279 + $0x88] sm:$0xf]
      %v308 = vld [vmem:[%s279 + $0x8c] sm:$0xff]
      %v309 = vld [vmem:[%s279 + $0x94] sm:$0xff]
      %v310 = vld [vmem:[%s279 + $0x9c] sm:$0xff]
      %v311 = vld [vmem:[%s279 + $0xa4] sm:$0xf]
      %v312 = vld [vmem:[%s279 + $0xa8] sm:$0xff]
      %v313 = vld [vmem:[%s279 + $0xb0] sm:$0xff]
      %v314 = vld [vmem:[%s279 + $0xb8] sm:$0xff]
      %v315 = vld [vmem:[%s279 + $0xc0] sm:$0xf]
      %v316 = vld [vmem:[%s279 + $0xc4] sm:$0xff]
      %v317 = vld [vmem:[%s279 + $0xcc] sm:$0xff]
      %v318 = vld [vmem:[%s279 + $0xd4] sm:$0xff]
      %v319 = vld [vmem:[%s279 + $0xdc] sm:$0xf]
      %v320 = vld [vmem:[%s279 + $0xe0] sm:$0xff]
      %v321 = vld [vmem:[%s279 + $0xe8] sm:$0xff]
      %v322 = vld [vmem:[%s279 + $0xf0] sm:$0xff]
      %v323 = vld [vmem:[%s279 + $0xf8] sm:$0xf]
      %v324 = vld [vmem:[%s279 + $0xfc] sm:$0xff]
      %v325 = vld [vmem:[%s279 + $0x104] sm:$0xff]
      %v326 = vld [vmem:[%s279 + $0x10c] sm:$0xff]
      %v327 = vld [vmem:[%s279 + $0x114] sm:$0xf]
      %v328 = vld [vmem:[%s279 + $0x118] sm:$0xff]
      %v329 = vld [vmem:[%s279 + $0x120] sm:$0xff]
      %v330 = vld [vmem:[%s279 + $0x128] sm:$0xff]
      %v331 = vld [vmem:[%s279 + $0x130] sm:$0xf]
      %v332 = vld [vmem:[%s279 + $0x134] sm:$0xff]
      %v333 = vld [vmem:[%s279 + $0x13c] sm:$0xff]
      %v334 = vld [vmem:[%s279 + $0x144] sm:$0xff]
      %v335 = vld [vmem:[%s279 + $0x14c] sm:$0xf]
      %v336 = vld [vmem:[%s279 + $0x150] sm:$0xff]
      %v337 = vld [vmem:[%s279 + $0x158] sm:$0xff]
      %v338 = vld [vmem:[%s279 + $0x160] sm:$0xff]
      %v339 = vld [vmem:[%s279 + $0x168] sm:$0xf]
      %v340 = vld [vmem:[%s279 + $0x16c] sm:$0xff]
      %v341 = vld [vmem:[%s279 + $0x174] sm:$0xff]
      %v342 = vld [vmem:[%s279 + $0x17c] sm:$0xff]
      %v343 = vld [vmem:[%s279 + $0x184] sm:$0xf]
      %v344 = vld [vmem:[%s279 + $0x188] sm:$0xff]
      %v345 = vld [vmem:[%s279 + $0x190] sm:$0xff]
      %v346 = vld [vmem:[%s279 + $0x198] sm:$0xff]
      %v347 = vld [vmem:[%s279 + $0x1a0] sm:$0xf]
      %v348 = vld [vmem:[%s279 + $0x1a4] sm:$0xff]
      %v349 = vld [vmem:[%s279 + $0x1ac] sm:$0xff]
      %v350 = vld [vmem:[%s279 + $0x1b4] sm:$0xff]
      %v351 = vld [vmem:[%s279 + $0x1bc] sm:$0xf]
      %v352 = vld [vmem:[%s279 + $0x1c0] sm:$0xff]
      %v353 = vld [vmem:[%s279 + $0x1c8] sm:$0xff]
      %v354 = vld [vmem:[%s279 + $0x1d0] sm:$0xff]
      %v355 = vld [vmem:[%s279 + $0x1d8] sm:$0xf]
      %v356 = vld [vmem:[%s279 + $0x1dc] sm:$0xff]
      %v357 = vld [vmem:[%s279 + $0x1e4] sm:$0xff]
      %v358 = vld [vmem:[%s279 + $0x1ec] sm:$0xff]
      %v359 = vld [vmem:[%s279 + $0x1f4] sm:$0xf]
      %v360 = vld [vmem:[%s279 + $0x1f8] sm:$0xff]
      %v361 = vld [vmem:[%s279 + $0x200] sm:$0xff]
      %v362 = vld [vmem:[%s279 + $0x208] sm:$0xff]
      %v363 = vld [vmem:[%s279 + $0x210] sm:$0xf]
      %v364 = vld [vmem:[%s279 + $0x214] sm:$0xff]
      %v365 = vld [vmem:[%s279 + $0x21c] sm:$0xff]
      %v366 = vld [vmem:[%s279 + $0x224] sm:$0xff]
      %v367 = vld [vmem:[%s279 + $0x22c] sm:$0xf]
      %v368 = vld [vmem:[%s279 + $0x230] sm:$0xff]
      %v369 = vld [vmem:[%s279 + $0x238] sm:$0xff]
      %v370 = vld [vmem:[%s279 + $0x240] sm:$0xff]
      %v371 = vld [vmem:[%s279 + $0x248] sm:$0xf]
      %v372 = vld [vmem:[%s279 + $0x24c] sm:$0xff]
      %v373 = vld [vmem:[%s279 + $0x254] sm:$0xff]
      %v374 = vld [vmem:[%s279 + $0x25c] sm:$0xff]
      %v375 = vld [vmem:[%s279 + $0x264] sm:$0xf]
      %v376 = vld [vmem:[%s279 + $0x268] sm:$0xff]
      %v377 = vld [vmem:[%s279 + $0x270] sm:$0xff]
      %v378 = vld [vmem:[%s279 + $0x278] sm:$0xff]
      %v379 = vld [vmem:[%s279 + $0x280] sm:$0xf]
      %v380 = vld [vmem:[%s279 + $0x284] sm:$0xff]
      %v381 = vld [vmem:[%s279 + $0x28c] sm:$0xff]
      %v382 = vld [vmem:[%s279 + $0x294] sm:$0xff]
      %v383 = vld [vmem:[%s279 + $0x29c] sm:$0xf]
      %v384 = vld [vmem:[%s279 + $0x2a0] sm:$0xff]
      %v385 = vld [vmem:[%s279 + $0x2a8] sm:$0xff]
      %v386 = vld [vmem:[%s279 + $0x2b0] sm:$0xff]
      %v387 = vld [vmem:[%s279 + $0x2b8] sm:$0xf]
      %v388 = vld [vmem:[%s279 + $0x2bc] sm:$0xff]
      %v389 = vld [vmem:[%s279 + $0x2c4] sm:$0xff]
      %v390 = vld [vmem:[%s279 + $0x2cc] sm:$0xff]
      %v391 = vld [vmem:[%s279 + $0x2d4] sm:$0xf]
      %v392 = vld [vmem:[%s279 + $0x2d8] sm:$0xff]
      %v393 = vld [vmem:[%s279 + $0x2e0] sm:$0xff]
      %v394 = vld [vmem:[%s279 + $0x2e8] sm:$0xff]
      %v395 = vld [vmem:[%s279 + $0x2f0] sm:$0xf]
      %v396 = vld [vmem:[%s279 + $0x2f4] sm:$0xff]
      %v397 = vld [vmem:[%s279 + $0x2fc] sm:$0xff]
      %v398 = vld [vmem:[%s279 + $0x304] sm:$0xff]
      %v399 = vld [vmem:[%s279 + $0x30c] sm:$0xf]
      %v400 = vld [vmem:[%s279 + $0x310] sm:$0xff]
      %v401 = vld [vmem:[%s279 + $0x318] sm:$0xff]
      %v402 = vld [vmem:[%s279 + $0x320] sm:$0xff]
      %v403 = vld [vmem:[%s279 + $0x328] sm:$0xf]
      %v404 = vld [vmem:[%s279 + $0x32c] sm:$0xff]
      %v405 = vld [vmem:[%s279 + $0x334] sm:$0xff]
      %v406 = vld [vmem:[%s279 + $0x33c] sm:$0xff]
      %v407 = vld [vmem:[%s279 + $0x344] sm:$0xf]
      %v408 = vld [vmem:[%s279 + $0x348] sm:$0xff]
      %v409 = vld [vmem:[%s279 + $0x350] sm:$0xff]
      %v410 = vld [vmem:[%s279 + $0x358] sm:$0xff]
      %v411 = vld [vmem:[%s279 + $0x360] sm:$0xf]
      %v412 = vld [vmem:[%s279 + $0x364] sm:$0xff]
      %v413 = vld [vmem:[%s279 + $0x36c] sm:$0xff]
      %v414 = vld [vmem:[%s279 + $0x374] sm:$0xff]
      %v415 = vld [vmem:[%s279 + $0x37c] sm:$0xf]
      %v416 = vld [vmem:[%s1] sm:$0xff]
      %v417 = vld [vmem:[%s1 + $0x8] sm:$0xff]
      %v418 = vld [vmem:[%s1 + $0x10] sm:$0xff]
      %v419 = vld [vmem:[%s1 + $0x18] sm:$0xff]
      %v420 = vld [vmem:[%s1 + $0x20] sm:$0xff]
      %v421 = vld [vmem:[%s1 + $0x28] sm:$0xff]
      %v422 = vld [vmem:[%s1 + $0x30] sm:$0xff]
      %v423 = vld [vmem:[%s1 + $0x38] sm:$0xff]
      %v424 = vld [vmem:[%s1 + $0x40] sm:$0xff]
      %v425 = vld [vmem:[%s1 + $0x48] sm:$0xff]
      %v426 = vld [vmem:[%s1 + $0x50] sm:$0xff]
      %v427 = vld [vmem:[%s1 + $0x58] sm:$0xff]
      %v428 = vld [vmem:[%s1 + $0x60] sm:$0xff]
      %v429 = vld [vmem:[%s1 + $0x68] sm:$0xff]
      %v430 = vld [vmem:[%s1 + $0x70] sm:$0xff]
      %v431 = vld [vmem:[%s1 + $0x78] sm:$0xff]
      %v432 = vld [vmem:[%s1 + $0x80] sm:$0xff]
      %v433 = vld [vmem:[%s1 + $0x88] sm:$0xff]
      %v434 = vld [vmem:[%s1 + $0x90] sm:$0xff]
      %v435 = vld [vmem:[%s1 + $0x98] sm:$0xff]
      %v436 = vld [vmem:[%s1 + $0xa0] sm:$0xff]
      %v437 = vld [vmem:[%s1 + $0xa8] sm:$0xff]
      %v438 = vld [vmem:[%s1 + $0xb0] sm:$0xff]
      %v439 = vld [vmem:[%s1 + $0xb8] sm:$0xff]
      %v440 = vld [vmem:[%s1 + $0xc0] sm:$0xff]
      %v441 = vld [vmem:[%s1 + $0xc8] sm:$0xff]
      %v442 = vld [vmem:[%s1 + $0xd0] sm:$0xff]
      %v443 = vld [vmem:[%s1 + $0xd8] sm:$0xff]
      %v444 = vld [vmem:[%s1 + $0xe0] sm:$0xff]
      %v445 = vld [vmem:[%s1 + $0xe8] sm:$0xff]
      %v446 = vld [vmem:[%s1 + $0xf0] sm:$0xff]
      %v447 = vld [vmem:[%s1 + $0xf8] sm:$0xff]
      %v448 = vld [vmem:[%s1 + $0x100] sm:$0xff]
      %v449 = vld [vmem:[%s1 + $0x108] sm:$0xff]
      %v450 = vld [vmem:[%s1 + $0x110] sm:$0xff]
      %v451 = vld [vmem:[%s1 + $0x118] sm:$0xff]
      %v452 = vld [vmem:[%s1 + $0x120] sm:$0xff]
      %v453 = vld [vmem:[%s1 + $0x128] sm:$0xff]
      %v454 = vld [vmem:[%s1 + $0x130] sm:$0xff]
      %v455 = vld [vmem:[%s1 + $0x138] sm:$0xff]
      %v456 = vld [vmem:[%s1 + $0x140] sm:$0xff]
      %v457 = vld [vmem:[%s1 + $0x148] sm:$0xff]
      %v458 = vld [vmem:[%s1 + $0x150] sm:$0xff]
      %v459 = vld [vmem:[%s1 + $0x158] sm:$0xff]
      %v460 = vld [vmem:[%s1 + $0x160] sm:$0xff]
      %v461 = vld [vmem:[%s1 + $0x168] sm:$0xff]
      %v462 = vld [vmem:[%s1 + $0x170] sm:$0xff]
      %v463 = vld [vmem:[%s1 + $0x178] sm:$0xff]
      %v464 = vld [vmem:[%s1 + $0x180] sm:$0xff]
      %v465 = vld [vmem:[%s1 + $0x188] sm:$0xff]
      %v466 = vld [vmem:[%s1 + $0x190] sm:$0xff]
      %v467 = vld [vmem:[%s1 + $0x198] sm:$0xff]
      %v468 = vld [vmem:[%s1 + $0x1a0] sm:$0xff]
      %v469 = vld [vmem:[%s1 + $0x1a8] sm:$0xff]
      %v470 = vld [vmem:[%s1 + $0x1b0] sm:$0xff]
      %v471 = vld [vmem:[%s1 + $0x1b8] sm:$0xff]
      %v472 = vld [vmem:[%s1 + $0x1c0] sm:$0xff]
      %v473 = vld [vmem:[%s1 + $0x1c8] sm:$0xff]
      %v474 = vld [vmem:[%s1 + $0x1d0] sm:$0xff]
      %v475 = vld [vmem:[%s1 + $0x1d8] sm:$0xff]
      %v476 = vld [vmem:[%s1 + $0x1e0] sm:$0xff]
      %v477 = vld [vmem:[%s1 + $0x1e8] sm:$0xff]
      %v478 = vld [vmem:[%s1 + $0x1f0] sm:$0xff]
      %v479 = vld [vmem:[%s1 + $0x1f8] sm:$0xff]
      %v480 = vld [vmem:[%s1 + $0x200] sm:$0xff]
      %v481 = vld [vmem:[%s1 + $0x208] sm:$0xff]
      %v482 = vld [vmem:[%s1 + $0x210] sm:$0xff]
      %v483 = vld [vmem:[%s1 + $0x218] sm:$0xff]
      %v484 = vld [vmem:[%s1 + $0x220] sm:$0xff]
      %v485 = vld [vmem:[%s1 + $0x228] sm:$0xff]
      %v486 = vld [vmem:[%s1 + $0x230] sm:$0xff]
      %v487 = vld [vmem:[%s1 + $0x238] sm:$0xff]
      %v488 = vld [vmem:[%s1 + $0x240] sm:$0xff]
      %v489 = vld [vmem:[%s1 + $0x248] sm:$0xff]
      %v490 = vld [vmem:[%s1 + $0x250] sm:$0xff]
      %v491 = vld [vmem:[%s1 + $0x258] sm:$0xff]
      %v492 = vld [vmem:[%s1 + $0x260] sm:$0xff]
      %v493 = vld [vmem:[%s1 + $0x268] sm:$0xff]
      %v494 = vld [vmem:[%s1 + $0x270] sm:$0xff]
      %v495 = vld [vmem:[%s1 + $0x278] sm:$0xff]
      %v496 = vld [vmem:[%s1 + $0x280] sm:$0xff]
      %v497 = vld [vmem:[%s1 + $0x288] sm:$0xff]
      %v498 = vld [vmem:[%s1 + $0x290] sm:$0xff]
      %v499 = vld [vmem:[%s1 + $0x298] sm:$0xff]
      %v500 = vld [vmem:[%s1 + $0x2a0] sm:$0xff]
      %v501 = vld [vmem:[%s1 + $0x2a8] sm:$0xff]
      %v502 = vld [vmem:[%s1 + $0x2b0] sm:$0xff]
      %v503 = vld [vmem:[%s1 + $0x2b8] sm:$0xff]
      %v504 = vld [vmem:[%s1 + $0x2c0] sm:$0xff]
      %v505 = vld [vmem:[%s1 + $0x2c8] sm:$0xff]
      %v506 = vld [vmem:[%s1 + $0x2d0] sm:$0xff]
      %v507 = vld [vmem:[%s1 + $0x2d8] sm:$0xff]
      %v508 = vld [vmem:[%s1 + $0x2e0] sm:$0xff]
      %v509 = vld [vmem:[%s1 + $0x2e8] sm:$0xff]
      %v510 = vld [vmem:[%s1 + $0x2f0] sm:$0xff]
      %v511 = vld [vmem:[%s1 + $0x2f8] sm:$0xff]
      %v512 = vld [vmem:[%s1 + $0x300] sm:$0xff]
      %v513 = vld [vmem:[%s1 + $0x308] sm:$0xff]
      %v514 = vld [vmem:[%s1 + $0x310] sm:$0xff]
      %v515 = vld [vmem:[%s1 + $0x318] sm:$0xff]
      %v516 = vld [vmem:[%s1 + $0x320] sm:$0xff]
      %v517 = vld [vmem:[%s1 + $0x328] sm:$0xff]
      %v518 = vld [vmem:[%s1 + $0x330] sm:$0xff]
      %v519 = vld [vmem:[%s1 + $0x338] sm:$0xff]
      %v520 = vld [vmem:[%s1 + $0x340] sm:$0xff]
      %v521 = vld [vmem:[%s1 + $0x348] sm:$0xff]
      %v522 = vld [vmem:[%s1 + $0x350] sm:$0xff]
      %v523 = vld [vmem:[%s1 + $0x358] sm:$0xff]
      %v524 = vld [vmem:[%s1 + $0x360] sm:$0xff]
      %v525 = vld [vmem:[%s1 + $0x368] sm:$0xff]
      %v526 = vld [vmem:[%s1 + $0x370] sm:$0xff]
      %v527 = vld [vmem:[%s1 + $0x378] sm:$0xff]
      %v528 = vld [vmem:[%s1 + $0x380] sm:$0xff]
      %v529 = vld [vmem:[%s1 + $0x388] sm:$0xff]
      %v530 = vld [vmem:[%s1 + $0x390] sm:$0xff]
      %v531 = vld [vmem:[%s1 + $0x398] sm:$0xff]
      %v532 = vld [vmem:[%s1 + $0x3a0] sm:$0xff]
      %v533 = vld [vmem:[%s1 + $0x3a8] sm:$0xff]
      %v534 = vld [vmem:[%s1 + $0x3b0] sm:$0xff]
      %v535 = vld [vmem:[%s1 + $0x3b8] sm:$0xff]
      %v536 = vld [vmem:[%s1 + $0x3c0] sm:$0xff]
      %v537 = vld [vmem:[%s1 + $0x3c8] sm:$0xff]
      %v538 = vld [vmem:[%s1 + $0x3d0] sm:$0xff]
      %v539 = vld [vmem:[%s1 + $0x3d8] sm:$0xff]
      %v540 = vld [vmem:[%s1 + $0x3e0] sm:$0xff]
      %v541 = vld [vmem:[%s1 + $0x3e8] sm:$0xff]
      %v542 = vld [vmem:[%s1 + $0x3f0] sm:$0xff]
      %v543 = vld [vmem:[%s1 + $0x3f8] sm:$0xff]
      %v544 = vld [vmem:[%s1 + $0x400] sm:$0xff]
      %v545 = vld [vmem:[%s1 + $0x408] sm:$0xff]
      %v546 = vld [vmem:[%s1 + $0x410] sm:$0xff]
      %v547 = vld [vmem:[%s1 + $0x418] sm:$0xff]
      %v548 = vld [vmem:[%s1 + $0x420] sm:$0xff]
      %v549 = vld [vmem:[%s1 + $0x428] sm:$0xff]
      %v550 = vld [vmem:[%s1 + $0x430] sm:$0xff]
      %v551 = vld [vmem:[%s1 + $0x438] sm:$0xff]
      %v552 = vld [vmem:[%s1 + $0x440] sm:$0xff]
      %v553 = vld [vmem:[%s1 + $0x448] sm:$0xff]
      %v554 = vld [vmem:[%s1 + $0x450] sm:$0xff]
      %v555 = vld [vmem:[%s1 + $0x458] sm:$0xff]
      %v556 = vld [vmem:[%s1 + $0x460] sm:$0xff]
      %v557 = vld [vmem:[%s1 + $0x468] sm:$0xff]
      %v558 = vld [vmem:[%s1 + $0x470] sm:$0xff]
      %v559 = vld [vmem:[%s1 + $0x478] sm:$0xff]
      %v560 = vld [vmem:[%s1 + $0x480] sm:$0xff]
      %v561 = vld [vmem:[%s1 + $0x488] sm:$0xff]
      %v562 = vld [vmem:[%s1 + $0x490] sm:$0xff]
      %v563 = vld [vmem:[%s1 + $0x498] sm:$0xff]
      %v564 = vld [vmem:[%s1 + $0x4a0] sm:$0xff]
      %v565 = vld [vmem:[%s1 + $0x4a8] sm:$0xff]
      %v566 = vld [vmem:[%s1 + $0x4b0] sm:$0xff]
      %v567 = vld [vmem:[%s1 + $0x4b8] sm:$0xff]
      %v568 = vld [vmem:[%s1 + $0x4c0] sm:$0xff]
      %v569 = vld [vmem:[%s1 + $0x4c8] sm:$0xff]
      %v570 = vld [vmem:[%s1 + $0x4d0] sm:$0xff]
      %v571 = vld [vmem:[%s1 + $0x4d8] sm:$0xff]
      %v572 = vld [vmem:[%s1 + $0x4e0] sm:$0xff]
      %v573 = vld [vmem:[%s1 + $0x4e8] sm:$0xff]
      %v574 = vld [vmem:[%s1 + $0x4f0] sm:$0xff]
      %v575 = vld [vmem:[%s1 + $0x4f8] sm:$0xff]
      %v576 = vld [vmem:[%s1 + $0x500] sm:$0xff]
      %v577 = vld [vmem:[%s1 + $0x508] sm:$0xff]
      %v578 = vld [vmem:[%s1 + $0x510] sm:$0xff]
      %v579 = vld [vmem:[%s1 + $0x518] sm:$0xff]
      %v580 = vld [vmem:[%s1 + $0x520] sm:$0xff]
      %v581 = vld [vmem:[%s1 + $0x528] sm:$0xff]
      %v582 = vld [vmem:[%s1 + $0x530] sm:$0xff]
      %v583 = vld [vmem:[%s1 + $0x538] sm:$0xff]
      %v584 = vld [vmem:[%s1 + $0x540] sm:$0xff]
      %v585 = vld [vmem:[%s1 + $0x548] sm:$0xff]
      %v586 = vld [vmem:[%s1 + $0x550] sm:$0xff]
      %v587 = vld [vmem:[%s1 + $0x558] sm:$0xff]
      %v588 = vld [vmem:[%s1 + $0x560] sm:$0xff]
      %v589 = vld [vmem:[%s1 + $0x568] sm:$0xff]
      %v590 = vld [vmem:[%s1 + $0x570] sm:$0xff]
      %v591 = vld [vmem:[%s1 + $0x578] sm:$0xff]
      %v592 = vld [vmem:[%s1 + $0x580] sm:$0xff]
      %v593 = vld [vmem:[%s1 + $0x588] sm:$0xff]
      %v594 = vld [vmem:[%s1 + $0x590] sm:$0xff]
      %v595 = vld [vmem:[%s1 + $0x598] sm:$0xff]
      %v596 = vld [vmem:[%s1 + $0x5a0] sm:$0xff]
      %v597 = vld [vmem:[%s1 + $0x5a8] sm:$0xff]
      %v598 = vld [vmem:[%s1 + $0x5b0] sm:$0xff]
      %v599 = vld [vmem:[%s1 + $0x5b8] sm:$0xff]
      %v600 = vld [vmem:[%s1 + $0x5c0] sm:$0xff]
      %v601 = vld [vmem:[%s1 + $0x5c8] sm:$0xff]
      %v602 = vld [vmem:[%s1 + $0x5d0] sm:$0xff]
      %v603 = vld [vmem:[%s1 + $0x5d8] sm:$0xff]
      %v604 = vld [vmem:[%s1 + $0x5e0] sm:$0xff]
      %v605 = vld [vmem:[%s1 + $0x5e8] sm:$0xff]
      %v606 = vld [vmem:[%s1 + $0x5f0] sm:$0xff]
      %v607 = vld [vmem:[%s1 + $0x5f8] sm:$0xff]
      %v608 = vld [vmem:[%s1 + $0x600] sm:$0xff]
      %v609 = vld [vmem:[%s1 + $0x608] sm:$0xff]
      %v610 = vld [vmem:[%s1 + $0x610] sm:$0xff]
      %v611 = vld [vmem:[%s1 + $0x618] sm:$0xff]
      %v612 = vld [vmem:[%s2] sm:$0xf]
      %v614 = vperm.slane %v612, 0
      %v615 = vperm.slane %v612, 1
      %v616 = vperm.slane %v612, 2
      %v617 = vperm.slane %v612, 3
      %v750 = vunpack.c.l.b16 %v288
      %v751 = vunpack.c.h.b16 %v288
      %v752 = vunpack.c.l.b16 %v289
      %v753 = vunpack.c.h.b16 %v289
      %v754 = vunpack.c.l.b16 %v290
      %v755 = vunpack.c.h.b16 %v290
      %v756 = vunpack.c.l.b16 %v291
      %v757 = vunpack.c.l.b16 %v292
      %v758 = vunpack.c.h.b16 %v292
      %v759 = vunpack.c.l.b16 %v293
      %v760 = vunpack.c.h.b16 %v293
      %v761 = vunpack.c.l.b16 %v294
      %v762 = vunpack.c.h.b16 %v294
      %v763 = vunpack.c.l.b16 %v295
      %v764 = vunpack.c.l.b16 %v296
      %v765 = vunpack.c.h.b16 %v296
      %v766 = vunpack.c.l.b16 %v297
      %v767 = vunpack.c.h.b16 %v297
      %v768 = vunpack.c.l.b16 %v298
      %v769 = vunpack.c.h.b16 %v298
      %v770 = vunpack.c.l.b16 %v299
      %v771 = vunpack.c.l.b16 %v300
      %v772 = vunpack.c.h.b16 %v300
      %v773 = vunpack.c.l.b16 %v301
      %v774 = vunpack.c.h.b16 %v301
      %v775 = vunpack.c.l.b16 %v302
      %v776 = vunpack.c.h.b16 %v302
      %v777 = vunpack.c.l.b16 %v303
      %v778 = vunpack.c.l.b16 %v304
      %v779 = vunpack.c.h.b16 %v304
      %v780 = vunpack.c.l.b16 %v305
      %v781 = vunpack.c.h.b16 %v305
      %v782 = vunpack.c.l.b16 %v306
      %v783 = vunpack.c.h.b16 %v306
      %v784 = vunpack.c.l.b16 %v307
      %v785 = vunpack.c.l.b16 %v308
      %v786 = vunpack.c.h.b16 %v308
      %v787 = vunpack.c.l.b16 %v309
      %v788 = vunpack.c.h.b16 %v309
      %v789 = vunpack.c.l.b16 %v310
      %v790 = vunpack.c.h.b16 %v310
      %v791 = vunpack.c.l.b16 %v311
      %v792 = vunpack.c.l.b16 %v312
      %v793 = vunpack.c.h.b16 %v312
      %v794 = vunpack.c.l.b16 %v313
      %v795 = vunpack.c.h.b16 %v313
      %v796 = vunpack.c.l.b16 %v314
      %v797 = vunpack.c.h.b16 %v314
      %v798 = vunpack.c.l.b16 %v315
      %v799 = vunpack.c.l.b16 %v316
      %v800 = vunpack.c.h.b16 %v316
      %v801 = vunpack.c.l.b16 %v317
      %v802 = vunpack.c.h.b16 %v317
      %v803 = vunpack.c.l.b16 %v318
      %v804 = vunpack.c.h.b16 %v318
      %v805 = vunpack.c.l.b16 %v319
      %v806 = vunpack.c.l.b16 %v320
      %v807 = vunpack.c.h.b16 %v320
      %v808 = vunpack.c.l.b16 %v321
      %v809 = vunpack.c.h.b16 %v321
      %v810 = vunpack.c.l.b16 %v322
      %v811 = vunpack.c.h.b16 %v322
      %v812 = vunpack.c.l.b16 %v323
      %v813 = vunpack.c.l.b16 %v324
      %v814 = vunpack.c.h.b16 %v324
      %v815 = vunpack.c.l.b16 %v325
      %v816 = vunpack.c.h.b16 %v325
      %v817 = vunpack.c.l.b16 %v326
      %v818 = vunpack.c.h.b16 %v326
      %v819 = vunpack.c.l.b16 %v327
      %v820 = vunpack.c.l.b16 %v328
      %v821 = vunpack.c.h.b16 %v328
      %v822 = vunpack.c.l.b16 %v329
      %v823 = vunpack.c.h.b16 %v329
      %v824 = vunpack.c.l.b16 %v330
      %v825 = vunpack.c.h.b16 %v330
      %v826 = vunpack.c.l.b16 %v331
      %v827 = vunpack.c.l.b16 %v332
      %v828 = vunpack.c.h.b16 %v332
      %v829 = vunpack.c.l.b16 %v333
      %v830 = vunpack.c.h.b16 %v333
      %v831 = vunpack.c.l.b16 %v334
      %v832 = vunpack.c.h.b16 %v334
      %v833 = vunpack.c.l.b16 %v335
      %v834 = vunpack.c.l.b16 %v336
      %v835 = vunpack.c.h.b16 %v336
      %v836 = vunpack.c.l.b16 %v337
      %v837 = vunpack.c.h.b16 %v337
      %v838 = vunpack.c.l.b16 %v338
      %v839 = vunpack.c.h.b16 %v338
      %v840 = vunpack.c.l.b16 %v339
      %v841 = vunpack.c.l.b16 %v340
      %v842 = vunpack.c.h.b16 %v340
      %v843 = vunpack.c.l.b16 %v341
      %v844 = vunpack.c.h.b16 %v341
      %v845 = vunpack.c.l.b16 %v342
      %v846 = vunpack.c.h.b16 %v342
      %v847 = vunpack.c.l.b16 %v343
      %v848 = vunpack.c.l.b16 %v344
      %v849 = vunpack.c.h.b16 %v344
      %v850 = vunpack.c.l.b16 %v345
      %v851 = vunpack.c.h.b16 %v345
      %v852 = vunpack.c.l.b16 %v346
      %v853 = vunpack.c.h.b16 %v346
      %v854 = vunpack.c.l.b16 %v347
      %v855 = vunpack.c.l.b16 %v348
      %v856 = vunpack.c.h.b16 %v348
      %v857 = vunpack.c.l.b16 %v349
      %v858 = vunpack.c.h.b16 %v349
      %v859 = vunpack.c.l.b16 %v350
      %v860 = vunpack.c.h.b16 %v350
      %v861 = vunpack.c.l.b16 %v351
      %v862 = vunpack.c.l.b16 %v352
      %v863 = vunpack.c.h.b16 %v352
      %v864 = vunpack.c.l.b16 %v353
      %v865 = vunpack.c.h.b16 %v353
      %v866 = vunpack.c.l.b16 %v354
      %v867 = vunpack.c.h.b16 %v354
      %v868 = vunpack.c.l.b16 %v355
      %v869 = vunpack.c.l.b16 %v356
      %v870 = vunpack.c.h.b16 %v356
      %v871 = vunpack.c.l.b16 %v357
      %v872 = vunpack.c.h.b16 %v357
      %v873 = vunpack.c.l.b16 %v358
      %v874 = vunpack.c.h.b16 %v358
      %v875 = vunpack.c.l.b16 %v359
      %v876 = vunpack.c.l.b16 %v360
      %v877 = vunpack.c.h.b16 %v360
      %v878 = vunpack.c.l.b16 %v361
      %v879 = vunpack.c.h.b16 %v361
      %v880 = vunpack.c.l.b16 %v362
      %v881 = vunpack.c.h.b16 %v362
      %v882 = vunpack.c.l.b16 %v363
      %v883 = vunpack.c.l.b16 %v364
      %v884 = vunpack.c.h.b16 %v364
      %v885 = vunpack.c.l.b16 %v365
      %v886 = vunpack.c.h.b16 %v365
      %v887 = vunpack.c.l.b16 %v366
      %v888 = vunpack.c.h.b16 %v366
      %v889 = vunpack.c.l.b16 %v367
      %v890 = vunpack.c.l.b16 %v368
      %v891 = vunpack.c.h.b16 %v368
      %v892 = vunpack.c.l.b16 %v369
      %v893 = vunpack.c.h.b16 %v369
      %v894 = vunpack.c.l.b16 %v370
      %v895 = vunpack.c.h.b16 %v370
      %v896 = vunpack.c.l.b16 %v371
      %v897 = vunpack.c.l.b16 %v372
      %v898 = vunpack.c.h.b16 %v372
      %v899 = vunpack.c.l.b16 %v373
      %v900 = vunpack.c.h.b16 %v373
      %v901 = vunpack.c.l.b16 %v374
      %v902 = vunpack.c.h.b16 %v374
      %v903 = vunpack.c.l.b16 %v375
      %v904 = vunpack.c.l.b16 %v376
      %v905 = vunpack.c.h.b16 %v376
      %v906 = vunpack.c.l.b16 %v377
      %v907 = vunpack.c.h.b16 %v377
      %v908 = vunpack.c.l.b16 %v378
      %v909 = vunpack.c.h.b16 %v378
      %v910 = vunpack.c.l.b16 %v379
      %v911 = vunpack.c.l.b16 %v380
      %v912 = vunpack.c.h.b16 %v380
      %v913 = vunpack.c.l.b16 %v381
      %v914 = vunpack.c.h.b16 %v381
      %v915 = vunpack.c.l.b16 %v382
      %v916 = vunpack.c.h.b16 %v382
      %v917 = vunpack.c.l.b16 %v383
      %v918 = vunpack.c.l.b16 %v384
      %v919 = vunpack.c.h.b16 %v384
      %v920 = vunpack.c.l.b16 %v385
      %v921 = vunpack.c.h.b16 %v385
      %v922 = vunpack.c.l.b16 %v386
      %v923 = vunpack.c.h.b16 %v386
      %v924 = vunpack.c.l.b16 %v387
      %v925 = vunpack.c.l.b16 %v388
      %v926 = vunpack.c.h.b16 %v388
      %v927 = vunpack.c.l.b16 %v389
      %v928 = vunpack.c.h.b16 %v389
      %v929 = vunpack.c.l.b16 %v390
      %v930 = vunpack.c.h.b16 %v390
      %v931 = vunpack.c.l.b16 %v391
      %v932 = vunpack.c.l.b16 %v392
      %v933 = vunpack.c.h.b16 %v392
      %v934 = vunpack.c.l.b16 %v393
      %v935 = vunpack.c.h.b16 %v393
      %v936 = vunpack.c.l.b16 %v394
      %v937 = vunpack.c.h.b16 %v394
      %v938 = vunpack.c.l.b16 %v395
      %v939 = vunpack.c.l.b16 %v396
      %v940 = vunpack.c.h.b16 %v396
      %v941 = vunpack.c.l.b16 %v397
      %v942 = vunpack.c.h.b16 %v397
      %v943 = vunpack.c.l.b16 %v398
      %v944 = vunpack.c.h.b16 %v398
      %v945 = vunpack.c.l.b16 %v399
      %v946 = vunpack.c.l.b16 %v400
      %v947 = vunpack.c.h.b16 %v400
      %v948 = vunpack.c.l.b16 %v401
      %v949 = vunpack.c.h.b16 %v401
      %v950 = vunpack.c.l.b16 %v402
      %v951 = vunpack.c.h.b16 %v402
      %v952 = vunpack.c.l.b16 %v403
      %v953 = vunpack.c.l.b16 %v404
      %v954 = vunpack.c.h.b16 %v404
      %v955 = vunpack.c.l.b16 %v405
      %v956 = vunpack.c.h.b16 %v405
      %v957 = vunpack.c.l.b16 %v406
      %v958 = vunpack.c.h.b16 %v406
      %v959 = vunpack.c.l.b16 %v407
      %v960 = vunpack.c.l.b16 %v408
      %v961 = vunpack.c.h.b16 %v408
      %v962 = vunpack.c.l.b16 %v409
      %v963 = vunpack.c.h.b16 %v409
      %v964 = vunpack.c.l.b16 %v410
      %v965 = vunpack.c.h.b16 %v410
      %v966 = vunpack.c.l.b16 %v411
      %v967 = vunpack.c.l.b16 %v412
      %v968 = vunpack.c.h.b16 %v412
      %v969 = vunpack.c.l.b16 %v413
      %v970 = vunpack.c.h.b16 %v413
      %v971 = vunpack.c.l.b16 %v414
      %v972 = vunpack.c.h.b16 %v414
      %v973 = vunpack.c.l.b16 %v415
      %v974 = vpack.c.b16 %v757, %v750
      %v975 = vpack.c.b16 %v758, %v751
      %v976 = vpack.c.b16 %v759, %v752
      %v977 = vpack.c.b16 %v760, %v753
      %v978 = vpack.c.b16 %v761, %v754
      %v979 = vpack.c.b16 %v762, %v755
      %v980 = vpack.c.b16 %v763, %v756
      %v981 = vpack.c.b16 %v771, %v764
      %v982 = vpack.c.b16 %v772, %v765
      %v983 = vpack.c.b16 %v773, %v766
      %v984 = vpack.c.b16 %v774, %v767
      %v985 = vpack.c.b16 %v775, %v768
      %v986 = vpack.c.b16 %v776, %v769
      %v987 = vpack.c.b16 %v777, %v770
      %v988 = vpack.c.b16 %v785, %v778
      %v989 = vpack.c.b16 %v786, %v779
      %v990 = vpack.c.b16 %v787, %v780
      %v991 = vpack.c.b16 %v788, %v781
      %v992 = vpack.c.b16 %v789, %v782
      %v993 = vpack.c.b16 %v790, %v783
      %v994 = vpack.c.b16 %v791, %v784
      %v995 = vpack.c.b16 %v799, %v792
      %v996 = vpack.c.b16 %v800, %v793
      %v997 = vpack.c.b16 %v801, %v794
      %v998 = vpack.c.b16 %v802, %v795
      %v999 = vpack.c.b16 %v803, %v796
      %v1000 = vpack.c.b16 %v804, %v797
      %v1001 = vpack.c.b16 %v805, %v798
      %v1002 = vpack.c.b16 %v813, %v806
      %v1003 = vpack.c.b16 %v814, %v807
      %v1004 = vpack.c.b16 %v815, %v808
      %v1005 = vpack.c.b16 %v816, %v809
      %v1006 = vpack.c.b16 %v817, %v810
      %v1007 = vpack.c.b16 %v818, %v811
      %v1008 = vpack.c.b16 %v819, %v812
      %v1009 = vpack.c.b16 %v827, %v820
      %v1010 = vpack.c.b16 %v828, %v821
      %v1011 = vpack.c.b16 %v829, %v822
      %v1012 = vpack.c.b16 %v830, %v823
      %v1013 = vpack.c.b16 %v831, %v824
      %v1014 = vpack.c.b16 %v832, %v825
      %v1015 = vpack.c.b16 %v833, %v826
      %v1016 = vpack.c.b16 %v841, %v834
      %v1017 = vpack.c.b16 %v842, %v835
      %v1018 = vpack.c.b16 %v843, %v836
      %v1019 = vpack.c.b16 %v844, %v837
      %v1020 = vpack.c.b16 %v845, %v838
      %v1021 = vpack.c.b16 %v846, %v839
      %v1022 = vpack.c.b16 %v847, %v840
      %v1023 = vpack.c.b16 %v855, %v848
      %v1024 = vpack.c.b16 %v856, %v849
      %v1025 = vpack.c.b16 %v857, %v850
      %v1026 = vpack.c.b16 %v858, %v851
      %v1027 = vpack.c.b16 %v859, %v852
      %v1028 = vpack.c.b16 %v860, %v853
      %v1029 = vpack.c.b16 %v861, %v854
      %v1030 = vpack.c.b16 %v869, %v862
      %v1031 = vpack.c.b16 %v870, %v863
      %v1032 = vpack.c.b16 %v871, %v864
      %v1033 = vpack.c.b16 %v872, %v865
      %v1034 = vpack.c.b16 %v873, %v866
      %v1035 = vpack.c.b16 %v874, %v867
      %v1036 = vpack.c.b16 %v875, %v868
      %v1037 = vpack.c.b16 %v883, %v876
      %v1038 = vpack.c.b16 %v884, %v877
      %v1039 = vpack.c.b16 %v885, %v878
      %v1040 = vpack.c.b16 %v886, %v879
      %v1041 = vpack.c.b16 %v887, %v880
      %v1042 = vpack.c.b16 %v888, %v881
      %v1043 = vpack.c.b16 %v889, %v882
      %v1044 = vpack.c.b16 %v897, %v890
      %v1045 = vpack.c.b16 %v898, %v891
      %v1046 = vpack.c.b16 %v899, %v892
      %v1047 = vpack.c.b16 %v900, %v893
      %v1048 = vpack.c.b16 %v901, %v894
      %v1049 = vpack.c.b16 %v902, %v895
      %v1050 = vpack.c.b16 %v903, %v896
      %v1051 = vpack.c.b16 %v911, %v904
      %v1052 = vpack.c.b16 %v912, %v905
      %v1053 = vpack.c.b16 %v913, %v906
      %v1054 = vpack.c.b16 %v914, %v907
      %v1055 = vpack.c.b16 %v915, %v908
      %v1056 = vpack.c.b16 %v916, %v909
      %v1057 = vpack.c.b16 %v917, %v910
      %v1058 = vpack.c.b16 %v925, %v918
      %v1059 = vpack.c.b16 %v926, %v919
      %v1060 = vpack.c.b16 %v927, %v920
      %v1061 = vpack.c.b16 %v928, %v921
      %v1062 = vpack.c.b16 %v929, %v922
      %v1063 = vpack.c.b16 %v930, %v923
      %v1064 = vpack.c.b16 %v931, %v924
      %v1065 = vpack.c.b16 %v939, %v932
      %v1066 = vpack.c.b16 %v940, %v933
      %v1067 = vpack.c.b16 %v941, %v934
      %v1068 = vpack.c.b16 %v942, %v935
      %v1069 = vpack.c.b16 %v943, %v936
      %v1070 = vpack.c.b16 %v944, %v937
      %v1071 = vpack.c.b16 %v945, %v938
      %v1072 = vpack.c.b16 %v953, %v946
      %v1073 = vpack.c.b16 %v954, %v947
      %v1074 = vpack.c.b16 %v955, %v948
      %v1075 = vpack.c.b16 %v956, %v949
      %v1076 = vpack.c.b16 %v957, %v950
      %v1077 = vpack.c.b16 %v958, %v951
      %v1078 = vpack.c.b16 %v959, %v952
      %v1079 = vpack.c.b16 %v967, %v960
      %v1080 = vpack.c.b16 %v968, %v961
      %v1081 = vpack.c.b16 %v969, %v962
      %v1082 = vpack.c.b16 %v970, %v963
      %v1083 = vpack.c.b16 %v971, %v964
      %v1084 = vpack.c.b16 %v972, %v965
      %v1085 = vpack.c.b16 %v973, %v966
      %v1378 = vunpack.c.l.b16 %v416
      %v1379 = vunpack.c.h.b16 %v416
      %v1380 = vunpack.c.l.b16 %v417
      %v1381 = vunpack.c.h.b16 %v417
      %v1382 = vunpack.c.l.b16 %v418
      %v1383 = vunpack.c.h.b16 %v418
      %v1384 = vunpack.c.l.b16 %v419
      %v1385 = vunpack.c.h.b16 %v419
      %v1386 = vunpack.c.l.b16 %v420
      %v1387 = vunpack.c.h.b16 %v420
      %v1388 = vunpack.c.l.b16 %v421
      %v1389 = vunpack.c.h.b16 %v421
      %v1390 = vunpack.c.l.b16 %v422
      %v1391 = vunpack.c.h.b16 %v422
      %v1392 = vunpack.c.l.b16 %v423
      %v1393 = vunpack.c.h.b16 %v423
      %v1394 = vunpack.c.l.b16 %v424
      %v1395 = vunpack.c.h.b16 %v424
      %v1396 = vunpack.c.l.b16 %v425
      %v1397 = vunpack.c.h.b16 %v425
      %v1398 = vunpack.c.l.b16 %v426
      %v1399 = vunpack.c.h.b16 %v426
      %v1400 = vunpack.c.l.b16 %v427
      %v1401 = vunpack.c.h.b16 %v427
      %v1402 = vunpack.c.l.b16 %v428
      %v1403 = vunpack.c.h.b16 %v428
      %v1404 = vunpack.c.l.b16 %v429
      %v1405 = vunpack.c.h.b16 %v429
      %v1406 = vunpack.c.l.b16 %v430
      %v1407 = vunpack.c.h.b16 %v430
      %v1408 = vunpack.c.l.b16 %v431
      %v1409 = vunpack.c.h.b16 %v431
      %v1410 = vunpack.c.l.b16 %v432
      %v1411 = vunpack.c.h.b16 %v432
      %v1412 = vunpack.c.l.b16 %v433
      %v1413 = vunpack.c.h.b16 %v433
      %v1414 = vunpack.c.l.b16 %v434
      %v1415 = vunpack.c.h.b16 %v434
      %v1416 = vunpack.c.l.b16 %v435
      %v1417 = vunpack.c.h.b16 %v435
      %v1418 = vunpack.c.l.b16 %v436
      %v1419 = vunpack.c.h.b16 %v436
      %v1420 = vunpack.c.l.b16 %v437
      %v1421 = vunpack.c.h.b16 %v437
      %v1422 = vunpack.c.l.b16 %v438
      %v1423 = vunpack.c.h.b16 %v438
      %v1424 = vunpack.c.l.b16 %v439
      %v1425 = vunpack.c.h.b16 %v439
      %v1426 = vunpack.c.l.b16 %v440
      %v1427 = vunpack.c.h.b16 %v440
      %v1428 = vunpack.c.l.b16 %v441
      %v1429 = vunpack.c.h.b16 %v441
      %v1430 = vunpack.c.l.b16 %v442
      %v1431 = vunpack.c.h.b16 %v442
      %v1432 = vunpack.c.l.b16 %v443
      %v1433 = vunpack.c.h.b16 %v443
      %v1434 = vunpack.c.l.b16 %v444
      %v1435 = vunpack.c.h.b16 %v444
      %v1436 = vunpack.c.l.b16 %v445
      %v1437 = vunpack.c.h.b16 %v445
      %v1438 = vunpack.c.l.b16 %v446
      %v1439 = vunpack.c.h.b16 %v446
      %v1440 = vunpack.c.l.b16 %v447
      %v1441 = vunpack.c.h.b16 %v447
      %v1442 = vunpack.c.l.b16 %v448
      %v1443 = vunpack.c.h.b16 %v448
      %v1444 = vunpack.c.l.b16 %v449
      %v1445 = vunpack.c.h.b16 %v449
      %v1446 = vunpack.c.l.b16 %v450
      %v1447 = vunpack.c.h.b16 %v450
      %v1448 = vunpack.c.l.b16 %v451
      %v1449 = vunpack.c.h.b16 %v451
      %v1450 = vunpack.c.l.b16 %v452
      %v1451 = vunpack.c.h.b16 %v452
      %v1452 = vunpack.c.l.b16 %v453
      %v1453 = vunpack.c.h.b16 %v453
      %v1454 = vunpack.c.l.b16 %v454
      %v1455 = vunpack.c.h.b16 %v454
      %v1456 = vunpack.c.l.b16 %v455
      %v1457 = vunpack.c.h.b16 %v455
      %v1458 = vunpack.c.l.b16 %v456
      %v1459 = vunpack.c.h.b16 %v456
      %v1460 = vunpack.c.l.b16 %v457
      %v1461 = vunpack.c.h.b16 %v457
      %v1462 = vunpack.c.l.b16 %v458
      %v1463 = vunpack.c.h.b16 %v458
      %v1464 = vunpack.c.l.b16 %v459
      %v1465 = vunpack.c.h.b16 %v459
      %v1466 = vunpack.c.l.b16 %v460
      %v1467 = vunpack.c.h.b16 %v460
      %v1468 = vunpack.c.l.b16 %v461
      %v1469 = vunpack.c.h.b16 %v461
      %v1470 = vunpack.c.l.b16 %v462
      %v1471 = vunpack.c.h.b16 %v462
      %v1472 = vunpack.c.l.b16 %v463
      %v1473 = vunpack.c.h.b16 %v463
      %v1474 = vunpack.c.l.b16 %v464
      %v1475 = vunpack.c.h.b16 %v464
      %v1476 = vunpack.c.l.b16 %v465
      %v1477 = vunpack.c.h.b16 %v465
      %v1478 = vunpack.c.l.b16 %v466
      %v1479 = vunpack.c.h.b16 %v466
      %v1480 = vunpack.c.l.b16 %v467
      %v1481 = vunpack.c.h.b16 %v467
      %v1482 = vunpack.c.l.b16 %v468
      %v1483 = vunpack.c.h.b16 %v468
      %v1484 = vunpack.c.l.b16 %v469
      %v1485 = vunpack.c.h.b16 %v469
      %v1486 = vunpack.c.l.b16 %v470
      %v1487 = vunpack.c.h.b16 %v470
      %v1488 = vunpack.c.l.b16 %v471
      %v1489 = vunpack.c.h.b16 %v471
      %v1490 = vunpack.c.l.b16 %v472
      %v1491 = vunpack.c.h.b16 %v472
      %v1492 = vunpack.c.l.b16 %v473
      %v1493 = vunpack.c.h.b16 %v473
      %v1494 = vunpack.c.l.b16 %v474
      %v1495 = vunpack.c.h.b16 %v474
      %v1496 = vunpack.c.l.b16 %v475
      %v1497 = vunpack.c.h.b16 %v475
      %v1498 = vunpack.c.l.b16 %v476
      %v1499 = vunpack.c.h.b16 %v476
      %v1500 = vunpack.c.l.b16 %v477
      %v1501 = vunpack.c.h.b16 %v477
      %v1502 = vunpack.c.l.b16 %v478
      %v1503 = vunpack.c.h.b16 %v478
      %v1504 = vunpack.c.l.b16 %v479
      %v1505 = vunpack.c.h.b16 %v479
      %v1506 = vunpack.c.l.b16 %v480
      %v1507 = vunpack.c.h.b16 %v480
      %v1508 = vunpack.c.l.b16 %v481
      %v1509 = vunpack.c.h.b16 %v481
      %v1510 = vunpack.c.l.b16 %v482
      %v1511 = vunpack.c.h.b16 %v482
      %v1512 = vunpack.c.l.b16 %v483
      %v1513 = vunpack.c.h.b16 %v483
      %v1514 = vunpack.c.l.b16 %v484
      %v1515 = vunpack.c.h.b16 %v484
      %v1516 = vunpack.c.l.b16 %v485
      %v1517 = vunpack.c.h.b16 %v485
      %v1518 = vunpack.c.l.b16 %v486
      %v1519 = vunpack.c.h.b16 %v486
      %v1520 = vunpack.c.l.b16 %v487
      %v1521 = vunpack.c.h.b16 %v487
      %v1522 = vunpack.c.l.b16 %v488
      %v1523 = vunpack.c.h.b16 %v488
      %v1524 = vunpack.c.l.b16 %v489
      %v1525 = vunpack.c.h.b16 %v489
      %v1526 = vunpack.c.l.b16 %v490
      %v1527 = vunpack.c.h.b16 %v490
      %v1528 = vunpack.c.l.b16 %v491
      %v1529 = vunpack.c.h.b16 %v491
      %v1530 = vunpack.c.l.b16 %v492
      %v1531 = vunpack.c.h.b16 %v492
      %v1532 = vunpack.c.l.b16 %v493
      %v1533 = vunpack.c.h.b16 %v493
      %v1534 = vunpack.c.l.b16 %v494
      %v1535 = vunpack.c.h.b16 %v494
      %v1536 = vunpack.c.l.b16 %v495
      %v1537 = vunpack.c.h.b16 %v495
      %v1538 = vunpack.c.l.b16 %v496
      %v1539 = vunpack.c.h.b16 %v496
      %v1540 = vunpack.c.l.b16 %v497
      %v1541 = vunpack.c.h.b16 %v497
      %v1542 = vunpack.c.l.b16 %v498
      %v1543 = vunpack.c.h.b16 %v498
      %v1544 = vunpack.c.l.b16 %v499
      %v1545 = vunpack.c.h.b16 %v499
      %v1546 = vunpack.c.l.b16 %v500
      %v1547 = vunpack.c.h.b16 %v500
      %v1548 = vunpack.c.l.b16 %v501
      %v1549 = vunpack.c.h.b16 %v501
      %v1550 = vunpack.c.l.b16 %v502
      %v1551 = vunpack.c.h.b16 %v502
      %v1552 = vunpack.c.l.b16 %v503
      %v1553 = vunpack.c.h.b16 %v503
      %v1554 = vunpack.c.l.b16 %v504
      %v1555 = vunpack.c.h.b16 %v504
      %v1556 = vunpack.c.l.b16 %v505
      %v1557 = vunpack.c.h.b16 %v505
      %v1558 = vunpack.c.l.b16 %v506
      %v1559 = vunpack.c.h.b16 %v506
      %v1560 = vunpack.c.l.b16 %v507
      %v1561 = vunpack.c.h.b16 %v507
      %v1562 = vunpack.c.l.b16 %v508
      %v1563 = vunpack.c.h.b16 %v508
      %v1564 = vunpack.c.l.b16 %v509
      %v1565 = vunpack.c.h.b16 %v509
      %v1566 = vunpack.c.l.b16 %v510
      %v1567 = vunpack.c.h.b16 %v510
      %v1568 = vunpack.c.l.b16 %v511
      %v1569 = vunpack.c.h.b16 %v511
      %v1570 = vunpack.c.l.b16 %v512
      %v1571 = vunpack.c.h.b16 %v512
      %v1572 = vunpack.c.l.b16 %v513
      %v1573 = vunpack.c.h.b16 %v513
      %v1574 = vunpack.c.l.b16 %v514
      %v1575 = vunpack.c.h.b16 %v514
      %v1576 = vunpack.c.l.b16 %v515
      %v1577 = vunpack.c.h.b16 %v515
      %v1578 = vunpack.c.l.b16 %v516
      %v1579 = vunpack.c.h.b16 %v516
      %v1580 = vunpack.c.l.b16 %v517
      %v1581 = vunpack.c.h.b16 %v517
      %v1582 = vunpack.c.l.b16 %v518
      %v1583 = vunpack.c.h.b16 %v518
      %v1584 = vunpack.c.l.b16 %v519
      %v1585 = vunpack.c.h.b16 %v519
      %v1586 = vunpack.c.l.b16 %v520
      %v1587 = vunpack.c.h.b16 %v520
      %v1588 = vunpack.c.l.b16 %v521
      %v1589 = vunpack.c.h.b16 %v521
      %v1590 = vunpack.c.l.b16 %v522
      %v1591 = vunpack.c.h.b16 %v522
      %v1592 = vunpack.c.l.b16 %v523
      %v1593 = vunpack.c.h.b16 %v523
      %v1594 = vunpack.c.l.b16 %v524
      %v1595 = vunpack.c.h.b16 %v524
      %v1596 = vunpack.c.l.b16 %v525
      %v1597 = vunpack.c.h.b16 %v525
      %v1598 = vunpack.c.l.b16 %v526
      %v1599 = vunpack.c.h.b16 %v526
      %v1600 = vunpack.c.l.b16 %v527
      %v1601 = vunpack.c.h.b16 %v527
      %v1602 = vunpack.c.l.b16 %v528
      %v1603 = vunpack.c.h.b16 %v528
      %v1604 = vunpack.c.l.b16 %v529
      %v1605 = vunpack.c.h.b16 %v529
      %v1606 = vunpack.c.l.b16 %v530
      %v1607 = vunpack.c.h.b16 %v530
      %v1608 = vunpack.c.l.b16 %v531
      %v1609 = vunpack.c.h.b16 %v531
      %v1610 = vunpack.c.l.b16 %v532
      %v1611 = vunpack.c.h.b16 %v532
      %v1612 = vunpack.c.l.b16 %v533
      %v1613 = vunpack.c.h.b16 %v533
      %v1614 = vunpack.c.l.b16 %v534
      %v1615 = vunpack.c.h.b16 %v534
      %v1616 = vunpack.c.l.b16 %v535
      %v1617 = vunpack.c.h.b16 %v535
      %v1618 = vunpack.c.l.b16 %v536
      %v1619 = vunpack.c.h.b16 %v536
      %v1620 = vunpack.c.l.b16 %v537
      %v1621 = vunpack.c.h.b16 %v537
      %v1622 = vunpack.c.l.b16 %v538
      %v1623 = vunpack.c.h.b16 %v538
      %v1624 = vunpack.c.l.b16 %v539
      %v1625 = vunpack.c.h.b16 %v539
      %v1626 = vunpack.c.l.b16 %v540
      %v1627 = vunpack.c.h.b16 %v540
      %v1628 = vunpack.c.l.b16 %v541
      %v1629 = vunpack.c.h.b16 %v541
      %v1630 = vunpack.c.l.b16 %v542
      %v1631 = vunpack.c.h.b16 %v542
      %v1632 = vunpack.c.l.b16 %v543
      %v1633 = vunpack.c.h.b16 %v543
      %v1634 = vunpack.c.l.b16 %v544
      %v1635 = vunpack.c.h.b16 %v544
      %v1636 = vunpack.c.l.b16 %v545
      %v1637 = vunpack.c.h.b16 %v545
      %v1638 = vunpack.c.l.b16 %v546
      %v1639 = vunpack.c.h.b16 %v546
      %v1640 = vunpack.c.l.b16 %v547
      %v1641 = vunpack.c.h.b16 %v547
      %v1642 = vunpack.c.l.b16 %v548
      %v1643 = vunpack.c.h.b16 %v548
      %v1644 = vunpack.c.l.b16 %v549
      %v1645 = vunpack.c.h.b16 %v549
      %v1646 = vunpack.c.l.b16 %v550
      %v1647 = vunpack.c.h.b16 %v550
      %v1648 = vunpack.c.l.b16 %v551
      %v1649 = vunpack.c.h.b16 %v551
      %v1650 = vunpack.c.l.b16 %v552
      %v1651 = vunpack.c.h.b16 %v552
      %v1652 = vunpack.c.l.b16 %v553
      %v1653 = vunpack.c.h.b16 %v553
      %v1654 = vunpack.c.l.b16 %v554
      %v1655 = vunpack.c.h.b16 %v554
      %v1656 = vunpack.c.l.b16 %v555
      %v1657 = vunpack.c.h.b16 %v555
      %v1658 = vunpack.c.l.b16 %v556
      %v1659 = vunpack.c.h.b16 %v556
      %v1660 = vunpack.c.l.b16 %v557
      %v1661 = vunpack.c.h.b16 %v557
      %v1662 = vunpack.c.l.b16 %v558
      %v1663 = vunpack.c.h.b16 %v558
      %v1664 = vunpack.c.l.b16 %v559
      %v1665 = vunpack.c.h.b16 %v559
      %v1666 = vunpack.c.l.b16 %v560
      %v1667 = vunpack.c.h.b16 %v560
      %v1668 = vunpack.c.l.b16 %v561
      %v1669 = vunpack.c.h.b16 %v561
      %v1670 = vunpack.c.l.b16 %v562
      %v1671 = vunpack.c.h.b16 %v562
      %v1672 = vunpack.c.l.b16 %v563
      %v1673 = vunpack.c.h.b16 %v563
      %v1674 = vunpack.c.l.b16 %v564
      %v1675 = vunpack.c.h.b16 %v564
      %v1676 = vunpack.c.l.b16 %v565
      %v1677 = vunpack.c.h.b16 %v565
      %v1678 = vunpack.c.l.b16 %v566
      %v1679 = vunpack.c.h.b16 %v566
      %v1680 = vunpack.c.l.b16 %v567
      %v1681 = vunpack.c.h.b16 %v567
      %v1682 = vunpack.c.l.b16 %v568
      %v1683 = vunpack.c.h.b16 %v568
      %v1684 = vunpack.c.l.b16 %v569
      %v1685 = vunpack.c.h.b16 %v569
      %v1686 = vunpack.c.l.b16 %v570
      %v1687 = vunpack.c.h.b16 %v570
      %v1688 = vunpack.c.l.b16 %v571
      %v1689 = vunpack.c.h.b16 %v571
      %v1690 = vunpack.c.l.b16 %v572
      %v1691 = vunpack.c.h.b16 %v572
      %v1692 = vunpack.c.l.b16 %v573
      %v1693 = vunpack.c.h.b16 %v573
      %v1694 = vunpack.c.l.b16 %v574
      %v1695 = vunpack.c.h.b16 %v574
      %v1696 = vunpack.c.l.b16 %v575
      %v1697 = vunpack.c.h.b16 %v575
      %v1698 = vunpack.c.l.b16 %v576
      %v1699 = vunpack.c.h.b16 %v576
      %v1700 = vunpack.c.l.b16 %v577
      %v1701 = vunpack.c.h.b16 %v577
      %v1702 = vunpack.c.l.b16 %v578
      %v1703 = vunpack.c.h.b16 %v578
      %v1704 = vunpack.c.l.b16 %v579
      %v1705 = vunpack.c.h.b16 %v579
      %v1706 = vunpack.c.l.b16 %v580
      %v1707 = vunpack.c.h.b16 %v580
      %v1708 = vunpack.c.l.b16 %v581
      %v1709 = vunpack.c.h.b16 %v581
      %v1710 = vunpack.c.l.b16 %v582
      %v1711 = vunpack.c.h.b16 %v582
      %v1712 = vunpack.c.l.b16 %v583
      %v1713 = vunpack.c.h.b16 %v583
      %v1714 = vunpack.c.l.b16 %v584
      %v1715 = vunpack.c.h.b16 %v584
      %v1716 = vunpack.c.l.b16 %v585
      %v1717 = vunpack.c.h.b16 %v585
      %v1718 = vunpack.c.l.b16 %v586
      %v1719 = vunpack.c.h.b16 %v586
      %v1720 = vunpack.c.l.b16 %v587
      %v1721 = vunpack.c.h.b16 %v587
      %v1722 = vunpack.c.l.b16 %v588
      %v1723 = vunpack.c.h.b16 %v588
      %v1724 = vunpack.c.l.b16 %v589
      %v1725 = vunpack.c.h.b16 %v589
      %v1726 = vunpack.c.l.b16 %v590
      %v1727 = vunpack.c.h.b16 %v590
      %v1728 = vunpack.c.l.b16 %v591
      %v1729 = vunpack.c.h.b16 %v591
      %v1730 = vunpack.c.l.b16 %v592
      %v1731 = vunpack.c.h.b16 %v592
      %v1732 = vunpack.c.l.b16 %v593
      %v1733 = vunpack.c.h.b16 %v593
      %v1734 = vunpack.c.l.b16 %v594
      %v1735 = vunpack.c.h.b16 %v594
      %v1736 = vunpack.c.l.b16 %v595
      %v1737 = vunpack.c.h.b16 %v595
      %v1738 = vunpack.c.l.b16 %v596
      %v1739 = vunpack.c.h.b16 %v596
      %v1740 = vunpack.c.l.b16 %v597
      %v1741 = vunpack.c.h.b16 %v597
      %v1742 = vunpack.c.l.b16 %v598
      %v1743 = vunpack.c.h.b16 %v598
      %v1744 = vunpack.c.l.b16 %v599
      %v1745 = vunpack.c.h.b16 %v599
      %v1746 = vunpack.c.l.b16 %v600
      %v1747 = vunpack.c.h.b16 %v600
      %v1748 = vunpack.c.l.b16 %v601
      %v1749 = vunpack.c.h.b16 %v601
      %v1750 = vunpack.c.l.b16 %v602
      %v1751 = vunpack.c.h.b16 %v602
      %v1752 = vunpack.c.l.b16 %v603
      %v1753 = vunpack.c.h.b16 %v603
      %v1754 = vunpack.c.l.b16 %v604
      %v1755 = vunpack.c.h.b16 %v604
      %v1756 = vunpack.c.l.b16 %v605
      %v1757 = vunpack.c.h.b16 %v605
      %v1758 = vunpack.c.l.b16 %v606
      %v1759 = vunpack.c.h.b16 %v606
      %v1760 = vunpack.c.l.b16 %v607
      %v1761 = vunpack.c.h.b16 %v607
      %v1762 = vunpack.c.l.b16 %v608
      %v1763 = vunpack.c.h.b16 %v608
      %v1764 = vunpack.c.l.b16 %v609
      %v1765 = vunpack.c.h.b16 %v609
      %v1766 = vunpack.c.l.b16 %v610
      %v1767 = vunpack.c.h.b16 %v610
      %v1768 = vunpack.c.l.b16 %v611
      %v1769 = vunpack.c.h.b16 %v611
      %v1770 = vpack.c.b16 %v1382, %v1378
      %v1771 = vpack.c.b16 %v1383, %v1379
      %v1772 = vpack.c.b16 %v1384, %v1380
      %v1773 = vpack.c.b16 %v1385, %v1381
      %v1774 = vpack.c.b16 %v1390, %v1386
      %v1775 = vpack.c.b16 %v1391, %v1387
      %v1776 = vpack.c.b16 %v1392, %v1388
      %v1777 = vpack.c.b16 %v1393, %v1389
      %v1778 = vpack.c.b16 %v1398, %v1394
      %v1779 = vpack.c.b16 %v1399, %v1395
      %v1780 = vpack.c.b16 %v1400, %v1396
      %v1781 = vpack.c.b16 %v1401, %v1397
      %v1782 = vpack.c.b16 %v1406, %v1402
      %v1783 = vpack.c.b16 %v1407, %v1403
      %v1784 = vpack.c.b16 %v1408, %v1404
      %v1785 = vpack.c.b16 %v1409, %v1405
      %v1786 = vpack.c.b16 %v1414, %v1410
      %v1787 = vpack.c.b16 %v1415, %v1411
      %v1788 = vpack.c.b16 %v1416, %v1412
      %v1789 = vpack.c.b16 %v1417, %v1413
      %v1790 = vpack.c.b16 %v1422, %v1418
      %v1791 = vpack.c.b16 %v1423, %v1419
      %v1792 = vpack.c.b16 %v1424, %v1420
      %v1793 = vpack.c.b16 %v1425, %v1421
      %v1794 = vpack.c.b16 %v1430, %v1426
      %v1795 = vpack.c.b16 %v1431, %v1427
      %v1796 = vpack.c.b16 %v1432, %v1428
      %v1797 = vpack.c.b16 %v1433, %v1429
      %v1798 = vpack.c.b16 %v1438, %v1434
      %v1799 = vpack.c.b16 %v1439, %v1435
      %v1800 = vpack.c.b16 %v1440, %v1436
      %v1801 = vpack.c.b16 %v1441, %v1437
      %v1802 = vpack.c.b16 %v1446, %v1442
      %v1803 = vpack.c.b16 %v1447, %v1443
      %v1804 = vpack.c.b16 %v1448, %v1444
      %v1805 = vpack.c.b16 %v1449, %v1445
      %v1806 = vpack.c.b16 %v1454, %v1450
      %v1807 = vpack.c.b16 %v1455, %v1451
      %v1808 = vpack.c.b16 %v1456, %v1452
      %v1809 = vpack.c.b16 %v1457, %v1453
      %v1810 = vpack.c.b16 %v1462, %v1458
      %v1811 = vpack.c.b16 %v1463, %v1459
      %v1812 = vpack.c.b16 %v1464, %v1460
      %v1813 = vpack.c.b16 %v1465, %v1461
      %v1814 = vpack.c.b16 %v1470, %v1466
      %v1815 = vpack.c.b16 %v1471, %v1467
      %v1816 = vpack.c.b16 %v1472, %v1468
      %v1817 = vpack.c.b16 %v1473, %v1469
      %v1818 = vpack.c.b16 %v1478, %v1474
      %v1819 = vpack.c.b16 %v1479, %v1475
      %v1820 = vpack.c.b16 %v1480, %v1476
      %v1821 = vpack.c.b16 %v1481, %v1477
      %v1822 = vpack.c.b16 %v1486, %v1482
      %v1823 = vpack.c.b16 %v1487, %v1483
      %v1824 = vpack.c.b16 %v1488, %v1484
      %v1825 = vpack.c.b16 %v1489, %v1485
      %v1826 = vpack.c.b16 %v1494, %v1490
      %v1827 = vpack.c.b16 %v1495, %v1491
      %v1828 = vpack.c.b16 %v1496, %v1492
      %v1829 = vpack.c.b16 %v1497, %v1493
      %v1830 = vpack.c.b16 %v1502, %v1498
      %v1831 = vpack.c.b16 %v1503, %v1499
      %v1832 = vpack.c.b16 %v1504, %v1500
      %v1833 = vpack.c.b16 %v1505, %v1501
      %v1834 = vpack.c.b16 %v1510, %v1506
      %v1835 = vpack.c.b16 %v1511, %v1507
      %v1836 = vpack.c.b16 %v1512, %v1508
      %v1837 = vpack.c.b16 %v1513, %v1509
      %v1838 = vpack.c.b16 %v1518, %v1514
      %v1839 = vpack.c.b16 %v1519, %v1515
      %v1840 = vpack.c.b16 %v1520, %v1516
      %v1841 = vpack.c.b16 %v1521, %v1517
      %v1842 = vpack.c.b16 %v1526, %v1522
      %v1843 = vpack.c.b16 %v1527, %v1523
      %v1844 = vpack.c.b16 %v1528, %v1524
      %v1845 = vpack.c.b16 %v1529, %v1525
      %v1846 = vpack.c.b16 %v1534, %v1530
      %v1847 = vpack.c.b16 %v1535, %v1531
      %v1848 = vpack.c.b16 %v1536, %v1532
      %v1849 = vpack.c.b16 %v1537, %v1533
      %v1850 = vpack.c.b16 %v1542, %v1538
      %v1851 = vpack.c.b16 %v1543, %v1539
      %v1852 = vpack.c.b16 %v1544, %v1540
      %v1853 = vpack.c.b16 %v1545, %v1541
      %v1854 = vpack.c.b16 %v1550, %v1546
      %v1855 = vpack.c.b16 %v1551, %v1547
      %v1856 = vpack.c.b16 %v1552, %v1548
      %v1857 = vpack.c.b16 %v1553, %v1549
      %v1858 = vpack.c.b16 %v1558, %v1554
      %v1859 = vpack.c.b16 %v1559, %v1555
      %v1860 = vpack.c.b16 %v1560, %v1556
      %v1861 = vpack.c.b16 %v1561, %v1557
      %v1862 = vpack.c.b16 %v1566, %v1562
      %v1863 = vpack.c.b16 %v1567, %v1563
      %v1864 = vpack.c.b16 %v1568, %v1564
      %v1865 = vpack.c.b16 %v1569, %v1565
      %v1866 = vpack.c.b16 %v1574, %v1570
      %v1867 = vpack.c.b16 %v1575, %v1571
      %v1868 = vpack.c.b16 %v1576, %v1572
      %v1869 = vpack.c.b16 %v1577, %v1573
      %v1870 = vpack.c.b16 %v1582, %v1578
      %v1871 = vpack.c.b16 %v1583, %v1579
      %v1872 = vpack.c.b16 %v1584, %v1580
      %v1873 = vpack.c.b16 %v1585, %v1581
      %v1874 = vpack.c.b16 %v1590, %v1586
      %v1875 = vpack.c.b16 %v1591, %v1587
      %v1876 = vpack.c.b16 %v1592, %v1588
      %v1877 = vpack.c.b16 %v1593, %v1589
      %v1878 = vpack.c.b16 %v1598, %v1594
      %v1879 = vpack.c.b16 %v1599, %v1595
      %v1880 = vpack.c.b16 %v1600, %v1596
      %v1881 = vpack.c.b16 %v1601, %v1597
      %v1882 = vpack.c.b16 %v1606, %v1602
      %v1883 = vpack.c.b16 %v1607, %v1603
      %v1884 = vpack.c.b16 %v1608, %v1604
      %v1885 = vpack.c.b16 %v1609, %v1605
      %v1886 = vpack.c.b16 %v1614, %v1610
      %v1887 = vpack.c.b16 %v1615, %v1611
      %v1888 = vpack.c.b16 %v1616, %v1612
      %v1889 = vpack.c.b16 %v1617, %v1613
      %v1890 = vpack.c.b16 %v1622, %v1618
      %v1891 = vpack.c.b16 %v1623, %v1619
      %v1892 = vpack.c.b16 %v1624, %v1620
      %v1893 = vpack.c.b16 %v1625, %v1621
      %v1894 = vpack.c.b16 %v1630, %v1626
      %v1895 = vpack.c.b16 %v1631, %v1627
      %v1896 = vpack.c.b16 %v1632, %v1628
      %v1897 = vpack.c.b16 %v1633, %v1629
      %v1898 = vpack.c.b16 %v1638, %v1634
      %v1899 = vpack.c.b16 %v1639, %v1635
      %v1900 = vpack.c.b16 %v1640, %v1636
      %v1901 = vpack.c.b16 %v1641, %v1637
      %v1902 = vpack.c.b16 %v1646, %v1642
      %v1903 = vpack.c.b16 %v1647, %v1643
      %v1904 = vpack.c.b16 %v1648, %v1644
      %v1905 = vpack.c.b16 %v1649, %v1645
      %v1906 = vpack.c.b16 %v1654, %v1650
      %v1907 = vpack.c.b16 %v1655, %v1651
      %v1908 = vpack.c.b16 %v1656, %v1652
      %v1909 = vpack.c.b16 %v1657, %v1653
      %v1910 = vpack.c.b16 %v1662, %v1658
      %v1911 = vpack.c.b16 %v1663, %v1659
      %v1912 = vpack.c.b16 %v1664, %v1660
      %v1913 = vpack.c.b16 %v1665, %v1661
      %v1914 = vpack.c.b16 %v1670, %v1666
      %v1915 = vpack.c.b16 %v1671, %v1667
      %v1916 = vpack.c.b16 %v1672, %v1668
      %v1917 = vpack.c.b16 %v1673, %v1669
      %v1918 = vpack.c.b16 %v1678, %v1674
      %v1919 = vpack.c.b16 %v1679, %v1675
      %v1920 = vpack.c.b16 %v1680, %v1676
      %v1921 = vpack.c.b16 %v1681, %v1677
      %v1922 = vpack.c.b16 %v1686, %v1682
      %v1923 = vpack.c.b16 %v1687, %v1683
      %v1924 = vpack.c.b16 %v1688, %v1684
      %v1925 = vpack.c.b16 %v1689, %v1685
      %v1926 = vpack.c.b16 %v1694, %v1690
      %v1927 = vpack.c.b16 %v1695, %v1691
      %v1928 = vpack.c.b16 %v1696, %v1692
      %v1929 = vpack.c.b16 %v1697, %v1693
      %v1930 = vpack.c.b16 %v1702, %v1698
      %v1931 = vpack.c.b16 %v1703, %v1699
      %v1932 = vpack.c.b16 %v1704, %v1700
      %v1933 = vpack.c.b16 %v1705, %v1701
      %v1934 = vpack.c.b16 %v1710, %v1706
      %v1935 = vpack.c.b16 %v1711, %v1707
      %v1936 = vpack.c.b16 %v1712, %v1708
      %v1937 = vpack.c.b16 %v1713, %v1709
      %v1938 = vpack.c.b16 %v1718, %v1714
      %v1939 = vpack.c.b16 %v1719, %v1715
      %v1940 = vpack.c.b16 %v1720, %v1716
      %v1941 = vpack.c.b16 %v1721, %v1717
      %v1942 = vpack.c.b16 %v1726, %v1722
      %v1943 = vpack.c.b16 %v1727, %v1723
      %v1944 = vpack.c.b16 %v1728, %v1724
      %v1945 = vpack.c.b16 %v1729, %v1725
      %v1946 = vpack.c.b16 %v1734, %v1730
      %v1947 = vpack.c.b16 %v1735, %v1731
      %v1948 = vpack.c.b16 %v1736, %v1732
      %v1949 = vpack.c.b16 %v1737, %v1733
      %v1950 = vpack.c.b16 %v1742, %v1738
      %v1951 = vpack.c.b16 %v1743, %v1739
      %v1952 = vpack.c.b16 %v1744, %v1740
      %v1953 = vpack.c.b16 %v1745, %v1741
      %v1954 = vpack.c.b16 %v1750, %v1746
      %v1955 = vpack.c.b16 %v1751, %v1747
      %v1956 = vpack.c.b16 %v1752, %v1748
      %v1957 = vpack.c.b16 %v1753, %v1749
      %v1958 = vpack.c.b16 %v1758, %v1754
      %v1959 = vpack.c.b16 %v1759, %v1755
      %v1960 = vpack.c.b16 %v1760, %v1756
      %v1961 = vpack.c.b16 %v1761, %v1757
      %v1962 = vpack.c.b16 %v1766, %v1762
      %v1963 = vpack.c.b16 %v1767, %v1763
      %v1964 = vpack.c.b16 %v1768, %v1764
      %v1965 = vpack.c.b16 %v1769, %v1765
      %vm2162 = vcmask 130048
      %v2164 = vsel %vm2162, %v980, 0
      %v2167 = vsel %vm2162, %v987, 0
      %v2170 = vsel %vm2162, %v994, 0
      %v2173 = vsel %vm2162, %v1001, 0
      %v2176 = vsel %vm2162, %v1008, 0
      %v2179 = vsel %vm2162, %v1015, 0
      %v2182 = vsel %vm2162, %v1022, 0
      %v2185 = vsel %vm2162, %v1029, 0
      %v2188 = vsel %vm2162, %v1036, 0
      %v2191 = vsel %vm2162, %v1043, 0
      %v2194 = vsel %vm2162, %v1050, 0
      %v2197 = vsel %vm2162, %v1057, 0
      %v2200 = vsel %vm2162, %v1064, 0
      %v2203 = vsel %vm2162, %v1071, 0
      %v2206 = vsel %vm2162, %v1078, 0
      %v2209 = vsel %vm2162, %v1085, 0
      %2211 = vmatpush.bf16.msra.mxu0 %v1798
      %2212 = vmatpush.bf16.msra.mxu0 %v1794
      %2213 = vmatpush.bf16.msra.mxu0 %v1790
      %2214 = vmatpush.bf16.msra.mxu0 %v1786
      %2215 = vmatpush.bf16.msra.mxu0 %v1782
      %2216 = vmatpush.bf16.msra.mxu0 %v1778
      %2217 = vmatpush.bf16.msra.mxu0 %v1774
      %2218 = vmatpush.bf16.msra.mxu0 %v1770
      %2219 = vmatmul.bf16.gmra.mxu0 %v974
      %v2220 = vpop.f32.mrf.mxu0
      %v2221 = vadd.f32 %v614, %v2220
      %v2222 = vpop.f32.mrf.mxu0
      %v2223 = vadd.f32 %v614, %v2222
      %2224 = vmatmul.bf16.gmra.mxu0 %v981
      %v2225 = vpop.f32.mrf.mxu0
      %v2226 = vadd.f32 %v614, %v2225
      %v2227 = vpop.f32.mrf.mxu0
      %v2228 = vadd.f32 %v614, %v2227
      %2229 = vmatmul.bf16.gmra.mxu0 %v988
      %v2230 = vpop.f32.mrf.mxu0
      %v2231 = vadd.f32 %v614, %v2230
      %v2232 = vpop.f32.mrf.mxu0
      %v2233 = vadd.f32 %v614, %v2232
      %2234 = vmatmul.bf16.gmra.mxu0 %v995
      %v2235 = vpop.f32.mrf.mxu0
      %v2236 = vadd.f32 %v614, %v2235
      %v2237 = vpop.f32.mrf.mxu0
      %v2238 = vadd.f32 %v614, %v2237
      %2239 = vmatmul.bf16.gmra.mxu0 %v1002
      %v2240 = vpop.f32.mrf.mxu0
      %v2241 = vadd.f32 %v614, %v2240
      %v2242 = vpop.f32.mrf.mxu0
      %v2243 = vadd.f32 %v614, %v2242
      %2244 = vmatmul.bf16.gmra.mxu0 %v1009
      %v2245 = vpop.f32.mrf.mxu0
      %v2246 = vadd.f32 %v614, %v2245
      %v2247 = vpop.f32.mrf.mxu0
      %v2248 = vadd.f32 %v614, %v2247
      %2249 = vmatmul.bf16.gmra.mxu0 %v1016
      %v2250 = vpop.f32.mrf.mxu0
      %v2251 = vadd.f32 %v614, %v2250
      %v2252 = vpop.f32.mrf.mxu0
      %v2253 = vadd.f32 %v614, %v2252
      %2254 = vmatmul.bf16.gmra.mxu0 %v1023
      %v2255 = vpop.f32.mrf.mxu0
      %v2256 = vadd.f32 %v614, %v2255
      %v2257 = vpop.f32.mrf.mxu0
      %v2258 = vadd.f32 %v614, %v2257
      %2259 = vmatmul.bf16.gmra.mxu0 %v1030
      %v2260 = vpop.f32.mrf.mxu0
      %v2261 = vadd.f32 %v614, %v2260
      %v2262 = vpop.f32.mrf.mxu0
      %v2263 = vadd.f32 %v614, %v2262
      %2264 = vmatmul.bf16.gmra.mxu0 %v1037
      %v2265 = vpop.f32.mrf.mxu0
      %v2266 = vadd.f32 %v614, %v2265
      %v2267 = vpop.f32.mrf.mxu0
      %v2268 = vadd.f32 %v614, %v2267
      %2269 = vmatmul.bf16.gmra.mxu0 %v1044
      %v2270 = vpop.f32.mrf.mxu0
      %v2271 = vadd.f32 %v614, %v2270
      %v2272 = vpop.f32.mrf.mxu0
      %v2273 = vadd.f32 %v614, %v2272
      %2274 = vmatmul.bf16.gmra.mxu0 %v1051
      %v2275 = vpop.f32.mrf.mxu0
      %v2276 = vadd.f32 %v614, %v2275
      %v2277 = vpop.f32.mrf.mxu0
      %v2278 = vadd.f32 %v614, %v2277
      %2279 = vmatmul.bf16.gmra.mxu0 %v1058
      %v2280 = vpop.f32.mrf.mxu0
      %v2281 = vadd.f32 %v614, %v2280
      %v2282 = vpop.f32.mrf.mxu0
      %v2283 = vadd.f32 %v614, %v2282
      %2284 = vmatmul.bf16.gmra.mxu0 %v1065
      %v2285 = vpop.f32.mrf.mxu0
      %v2286 = vadd.f32 %v614, %v2285
      %v2287 = vpop.f32.mrf.mxu0
      %v2288 = vadd.f32 %v614, %v2287
      %2289 = vmatmul.bf16.gmra.mxu0 %v1072
      %v2290 = vpop.f32.mrf.mxu0
      %v2291 = vadd.f32 %v614, %v2290
      %v2292 = vpop.f32.mrf.mxu0
      %v2293 = vadd.f32 %v614, %v2292
      %2294 = vmatmul.bf16.gmra.mxu0 %v1079
      %v2295 = vpop.f32.mrf.mxu0
      %v2296 = vadd.f32 %v614, %v2295
      %v2297 = vpop.f32.mrf.mxu0
      %v2298 = vadd.f32 %v614, %v2297
      %2299 = vdwg.mxu0
      %2300 = vmatpush.bf16.msra.mxu0 %v1830
      %2301 = vmatpush.bf16.msra.mxu0 %v1826
      %2302 = vmatpush.bf16.msra.mxu0 %v1822
      %2303 = vmatpush.bf16.msra.mxu0 %v1818
      %2304 = vmatpush.bf16.msra.mxu0 %v1814
      %2305 = vmatpush.bf16.msra.mxu0 %v1810
      %2306 = vmatpush.bf16.msra.mxu0 %v1806
      %2307 = vmatpush.bf16.msra.mxu0 %v1802
      %2308 = vmatmul.bf16.gmra.mxu0 %v975
      %v2309 = vpop.f32.mrf.mxu0
      %v2310 = vadd.f32 %v2221, %v2309
      %v2311 = vpop.f32.mrf.mxu0
      %v2312 = vadd.f32 %v2223, %v2311
      %2313 = vmatmul.bf16.gmra.mxu0 %v982
      %v2314 = vpop.f32.mrf.mxu0
      %v2315 = vadd.f32 %v2226, %v2314
      %v2316 = vpop.f32.mrf.mxu0
      %v2317 = vadd.f32 %v2228, %v2316
      %2318 = vmatmul.bf16.gmra.mxu0 %v989
      %v2319 = vpop.f32.mrf.mxu0
      %v2320 = vadd.f32 %v2231, %v2319
      %v2321 = vpop.f32.mrf.mxu0
      %v2322 = vadd.f32 %v2233, %v2321
      %2323 = vmatmul.bf16.gmra.mxu0 %v996
      %v2324 = vpop.f32.mrf.mxu0
      %v2325 = vadd.f32 %v2236, %v2324
      %v2326 = vpop.f32.mrf.mxu0
      %v2327 = vadd.f32 %v2238, %v2326
      %2328 = vmatmul.bf16.gmra.mxu0 %v1003
      %v2329 = vpop.f32.mrf.mxu0
      %v2330 = vadd.f32 %v2241, %v2329
      %v2331 = vpop.f32.mrf.mxu0
      %v2332 = vadd.f32 %v2243, %v2331
      %2333 = vmatmul.bf16.gmra.mxu0 %v1010
      %v2334 = vpop.f32.mrf.mxu0
      %v2335 = vadd.f32 %v2246, %v2334
      %v2336 = vpop.f32.mrf.mxu0
      %v2337 = vadd.f32 %v2248, %v2336
      %2338 = vmatmul.bf16.gmra.mxu0 %v1017
      %v2339 = vpop.f32.mrf.mxu0
      %v2340 = vadd.f32 %v2251, %v2339
      %v2341 = vpop.f32.mrf.mxu0
      %v2342 = vadd.f32 %v2253, %v2341
      %2343 = vmatmul.bf16.gmra.mxu0 %v1024
      %v2344 = vpop.f32.mrf.mxu0
      %v2345 = vadd.f32 %v2256, %v2344
      %v2346 = vpop.f32.mrf.mxu0
      %v2347 = vadd.f32 %v2258, %v2346
      %2348 = vmatmul.bf16.gmra.mxu0 %v1031
      %v2349 = vpop.f32.mrf.mxu0
      %v2350 = vadd.f32 %v2261, %v2349
      %v2351 = vpop.f32.mrf.mxu0
      %v2352 = vadd.f32 %v2263, %v2351
      %2353 = vmatmul.bf16.gmra.mxu0 %v1038
      %v2354 = vpop.f32.mrf.mxu0
      %v2355 = vadd.f32 %v2266, %v2354
      %v2356 = vpop.f32.mrf.mxu0
      %v2357 = vadd.f32 %v2268, %v2356
      %2358 = vmatmul.bf16.gmra.mxu0 %v1045
      %v2359 = vpop.f32.mrf.mxu0
      %v2360 = vadd.f32 %v2271, %v2359
      %v2361 = vpop.f32.mrf.mxu0
      %v2362 = vadd.f32 %v2273, %v2361
      %2363 = vmatmul.bf16.gmra.mxu0 %v1052
      %v2364 = vpop.f32.mrf.mxu0
      %v2365 = vadd.f32 %v2276, %v2364
      %v2366 = vpop.f32.mrf.mxu0
      %v2367 = vadd.f32 %v2278, %v2366
      %2368 = vmatmul.bf16.gmra.mxu0 %v1059
      %v2369 = vpop.f32.mrf.mxu0
      %v2370 = vadd.f32 %v2281, %v2369
      %v2371 = vpop.f32.mrf.mxu0
      %v2372 = vadd.f32 %v2283, %v2371
      %2373 = vmatmul.bf16.gmra.mxu0 %v1066
      %v2374 = vpop.f32.mrf.mxu0
      %v2375 = vadd.f32 %v2286, %v2374
      %v2376 = vpop.f32.mrf.mxu0
      %v2377 = vadd.f32 %v2288, %v2376
      %2378 = vmatmul.bf16.gmra.mxu0 %v1073
      %v2379 = vpop.f32.mrf.mxu0
      %v2380 = vadd.f32 %v2291, %v2379
      %v2381 = vpop.f32.mrf.mxu0
      %v2382 = vadd.f32 %v2293, %v2381
      %2383 = vmatmul.bf16.gmra.mxu0 %v1080
      %v2384 = vpop.f32.mrf.mxu0
      %v2385 = vadd.f32 %v2296, %v2384
      %v2386 = vpop.f32.mrf.mxu0
      %v2387 = vadd.f32 %v2298, %v2386
      %2388 = vdwg.mxu0
      %2389 = vmatpush.bf16.msra.mxu0 %v1862
      %2390 = vmatpush.bf16.msra.mxu0 %v1858
      %2391 = vmatpush.bf16.msra.mxu0 %v1854
      %2392 = vmatpush.bf16.msra.mxu0 %v1850
      %2393 = vmatpush.bf16.msra.mxu0 %v1846
      %2394 = vmatpush.bf16.msra.mxu0 %v1842
      %2395 = vmatpush.bf16.msra.mxu0 %v1838
      %2396 = vmatpush.bf16.msra.mxu0 %v1834
      %2397 = vmatmul.bf16.gmra.mxu0 %v976
      %v2398 = vpop.f32.mrf.mxu0
      %v2399 = vadd.f32 %v2310, %v2398
      %v2400 = vpop.f32.mrf.mxu0
      %v2401 = vadd.f32 %v2312, %v2400
      %2402 = vmatmul.bf16.gmra.mxu0 %v983
      %v2403 = vpop.f32.mrf.mxu0
      %v2404 = vadd.f32 %v2315, %v2403
      %v2405 = vpop.f32.mrf.mxu0
      %v2406 = vadd.f32 %v2317, %v2405
      %2407 = vmatmul.bf16.gmra.mxu0 %v990
      %v2408 = vpop.f32.mrf.mxu0
      %v2409 = vadd.f32 %v2320, %v2408
      %v2410 = vpop.f32.mrf.mxu0
      %v2411 = vadd.f32 %v2322, %v2410
      %2412 = vmatmul.bf16.gmra.mxu0 %v997
      %v2413 = vpop.f32.mrf.mxu0
      %v2414 = vadd.f32 %v2325, %v2413
      %v2415 = vpop.f32.mrf.mxu0
      %v2416 = vadd.f32 %v2327, %v2415
      %2417 = vmatmul.bf16.gmra.mxu0 %v1004
      %v2418 = vpop.f32.mrf.mxu0
      %v2419 = vadd.f32 %v2330, %v2418
      %v2420 = vpop.f32.mrf.mxu0
      %v2421 = vadd.f32 %v2332, %v2420
      %2422 = vmatmul.bf16.gmra.mxu0 %v1011
      %v2423 = vpop.f32.mrf.mxu0
      %v2424 = vadd.f32 %v2335, %v2423
      %v2425 = vpop.f32.mrf.mxu0
      %v2426 = vadd.f32 %v2337, %v2425
      %2427 = vmatmul.bf16.gmra.mxu0 %v1018
      %v2428 = vpop.f32.mrf.mxu0
      %v2429 = vadd.f32 %v2340, %v2428
      %v2430 = vpop.f32.mrf.mxu0
      %v2431 = vadd.f32 %v2342, %v2430
      %2432 = vmatmul.bf16.gmra.mxu0 %v1025
      %v2433 = vpop.f32.mrf.mxu0
      %v2434 = vadd.f32 %v2345, %v2433
      %v2435 = vpop.f32.mrf.mxu0
      %v2436 = vadd.f32 %v2347, %v2435
      %2437 = vmatmul.bf16.gmra.mxu0 %v1032
      %v2438 = vpop.f32.mrf.mxu0
      %v2439 = vadd.f32 %v2350, %v2438
      %v2440 = vpop.f32.mrf.mxu0
      %v2441 = vadd.f32 %v2352, %v2440
      %2442 = vmatmul.bf16.gmra.mxu0 %v1039
      %v2443 = vpop.f32.mrf.mxu0
      %v2444 = vadd.f32 %v2355, %v2443
      %v2445 = vpop.f32.mrf.mxu0
      %v2446 = vadd.f32 %v2357, %v2445
      %2447 = vmatmul.bf16.gmra.mxu0 %v1046
      %v2448 = vpop.f32.mrf.mxu0
      %v2449 = vadd.f32 %v2360, %v2448
      %v2450 = vpop.f32.mrf.mxu0
      %v2451 = vadd.f32 %v2362, %v2450
      %2452 = vmatmul.bf16.gmra.mxu0 %v1053
      %v2453 = vpop.f32.mrf.mxu0
      %v2454 = vadd.f32 %v2365, %v2453
      %v2455 = vpop.f32.mrf.mxu0
      %v2456 = vadd.f32 %v2367, %v2455
      %2457 = vmatmul.bf16.gmra.mxu0 %v1060
      %v2458 = vpop.f32.mrf.mxu0
      %v2459 = vadd.f32 %v2370, %v2458
      %v2460 = vpop.f32.mrf.mxu0
      %v2461 = vadd.f32 %v2372, %v2460
      %2462 = vmatmul.bf16.gmra.mxu0 %v1067
      %v2463 = vpop.f32.mrf.mxu0
      %v2464 = vadd.f32 %v2375, %v2463
      %v2465 = vpop.f32.mrf.mxu0
      %v2466 = vadd.f32 %v2377, %v2465
      %2467 = vmatmul.bf16.gmra.mxu0 %v1074
      %v2468 = vpop.f32.mrf.mxu0
      %v2469 = vadd.f32 %v2380, %v2468
      %v2470 = vpop.f32.mrf.mxu0
      %v2471 = vadd.f32 %v2382, %v2470
      %2472 = vmatmul.bf16.gmra.mxu0 %v1081
      %v2473 = vpop.f32.mrf.mxu0
      %v2474 = vadd.f32 %v2385, %v2473
      %v2475 = vpop.f32.mrf.mxu0
      %v2476 = vadd.f32 %v2387, %v2475
      %2477 = vdwg.mxu0
      %2478 = vmatpush.bf16.msra.mxu0 %v1894
      %2479 = vmatpush.bf16.msra.mxu0 %v1890
      %2480 = vmatpush.bf16.msra.mxu0 %v1886
      %2481 = vmatpush.bf16.msra.mxu0 %v1882
      %2482 = vmatpush.bf16.msra.mxu0 %v1878
      %2483 = vmatpush.bf16.msra.mxu0 %v1874
      %2484 = vmatpush.bf16.msra.mxu0 %v1870
      %2485 = vmatpush.bf16.msra.mxu0 %v1866
      %2486 = vmatmul.bf16.gmra.mxu0 %v977
      %v2487 = vpop.f32.mrf.mxu0
      %v2488 = vadd.f32 %v2399, %v2487
      %v2489 = vpop.f32.mrf.mxu0
      %v2490 = vadd.f32 %v2401, %v2489
      %2491 = vmatmul.bf16.gmra.mxu0 %v984
      %v2492 = vpop.f32.mrf.mxu0
      %v2493 = vadd.f32 %v2404, %v2492
      %v2494 = vpop.f32.mrf.mxu0
      %v2495 = vadd.f32 %v2406, %v2494
      %2496 = vmatmul.bf16.gmra.mxu0 %v991
      %v2497 = vpop.f32.mrf.mxu0
      %v2498 = vadd.f32 %v2409, %v2497
      %v2499 = vpop.f32.mrf.mxu0
      %v2500 = vadd.f32 %v2411, %v2499
      %2501 = vmatmul.bf16.gmra.mxu0 %v998
      %v2502 = vpop.f32.mrf.mxu0
      %v2503 = vadd.f32 %v2414, %v2502
      %v2504 = vpop.f32.mrf.mxu0
      %v2505 = vadd.f32 %v2416, %v2504
      %2506 = vmatmul.bf16.gmra.mxu0 %v1005
      %v2507 = vpop.f32.mrf.mxu0
      %v2508 = vadd.f32 %v2419, %v2507
      %v2509 = vpop.f32.mrf.mxu0
      %v2510 = vadd.f32 %v2421, %v2509
      %2511 = vmatmul.bf16.gmra.mxu0 %v1012
      %v2512 = vpop.f32.mrf.mxu0
      %v2513 = vadd.f32 %v2424, %v2512
      %v2514 = vpop.f32.mrf.mxu0
      %v2515 = vadd.f32 %v2426, %v2514
      %2516 = vmatmul.bf16.gmra.mxu0 %v1019
      %v2517 = vpop.f32.mrf.mxu0
      %v2518 = vadd.f32 %v2429, %v2517
      %v2519 = vpop.f32.mrf.mxu0
      %v2520 = vadd.f32 %v2431, %v2519
      %2521 = vmatmul.bf16.gmra.mxu0 %v1026
      %v2522 = vpop.f32.mrf.mxu0
      %v2523 = vadd.f32 %v2434, %v2522
      %v2524 = vpop.f32.mrf.mxu0
      %v2525 = vadd.f32 %v2436, %v2524
      %2526 = vmatmul.bf16.gmra.mxu0 %v1033
      %v2527 = vpop.f32.mrf.mxu0
      %v2528 = vadd.f32 %v2439, %v2527
      %v2529 = vpop.f32.mrf.mxu0
      %v2530 = vadd.f32 %v2441, %v2529
      %2531 = vmatmul.bf16.gmra.mxu0 %v1040
      %v2532 = vpop.f32.mrf.mxu0
      %v2533 = vadd.f32 %v2444, %v2532
      %v2534 = vpop.f32.mrf.mxu0
      %v2535 = vadd.f32 %v2446, %v2534
      %2536 = vmatmul.bf16.gmra.mxu0 %v1047
      %v2537 = vpop.f32.mrf.mxu0
      %v2538 = vadd.f32 %v2449, %v2537
      %v2539 = vpop.f32.mrf.mxu0
      %v2540 = vadd.f32 %v2451, %v2539
      %2541 = vmatmul.bf16.gmra.mxu0 %v1054
      %v2542 = vpop.f32.mrf.mxu0
      %v2543 = vadd.f32 %v2454, %v2542
      %v2544 = vpop.f32.mrf.mxu0
      %v2545 = vadd.f32 %v2456, %v2544
      %2546 = vmatmul.bf16.gmra.mxu0 %v1061
      %v2547 = vpop.f32.mrf.mxu0
      %v2548 = vadd.f32 %v2459, %v2547
      %v2549 = vpop.f32.mrf.mxu0
      %v2550 = vadd.f32 %v2461, %v2549
      %2551 = vmatmul.bf16.gmra.mxu0 %v1068
      %v2552 = vpop.f32.mrf.mxu0
      %v2553 = vadd.f32 %v2464, %v2552
      %v2554 = vpop.f32.mrf.mxu0
      %v2555 = vadd.f32 %v2466, %v2554
      %2556 = vmatmul.bf16.gmra.mxu0 %v1075
      %v2557 = vpop.f32.mrf.mxu0
      %v2558 = vadd.f32 %v2469, %v2557
      %v2559 = vpop.f32.mrf.mxu0
      %v2560 = vadd.f32 %v2471, %v2559
      %2561 = vmatmul.bf16.gmra.mxu0 %v1082
      %v2562 = vpop.f32.mrf.mxu0
      %v2563 = vadd.f32 %v2474, %v2562
      %v2564 = vpop.f32.mrf.mxu0
      %v2565 = vadd.f32 %v2476, %v2564
      %2566 = vdwg.mxu0
      %2567 = vmatpush.bf16.msra.mxu0 %v1926
      %2568 = vmatpush.bf16.msra.mxu0 %v1922
      %2569 = vmatpush.bf16.msra.mxu0 %v1918
      %2570 = vmatpush.bf16.msra.mxu0 %v1914
      %2571 = vmatpush.bf16.msra.mxu0 %v1910
      %2572 = vmatpush.bf16.msra.mxu0 %v1906
      %2573 = vmatpush.bf16.msra.mxu0 %v1902
      %2574 = vmatpush.bf16.msra.mxu0 %v1898
      %2575 = vmatmul.bf16.gmra.mxu0 %v978
      %v2576 = vpop.f32.mrf.mxu0
      %v2577 = vadd.f32 %v2488, %v2576
      %v2578 = vpop.f32.mrf.mxu0
      %v2579 = vadd.f32 %v2490, %v2578
      %2580 = vmatmul.bf16.gmra.mxu0 %v985
      %v2581 = vpop.f32.mrf.mxu0
      %v2582 = vadd.f32 %v2493, %v2581
      %v2583 = vpop.f32.mrf.mxu0
      %v2584 = vadd.f32 %v2495, %v2583
      %2585 = vmatmul.bf16.gmra.mxu0 %v992
      %v2586 = vpop.f32.mrf.mxu0
      %v2587 = vadd.f32 %v2498, %v2586
      %v2588 = vpop.f32.mrf.mxu0
      %v2589 = vadd.f32 %v2500, %v2588
      %2590 = vmatmul.bf16.gmra.mxu0 %v999
      %v2591 = vpop.f32.mrf.mxu0
      %v2592 = vadd.f32 %v2503, %v2591
      %v2593 = vpop.f32.mrf.mxu0
      %v2594 = vadd.f32 %v2505, %v2593
      %2595 = vmatmul.bf16.gmra.mxu0 %v1006
      %v2596 = vpop.f32.mrf.mxu0
      %v2597 = vadd.f32 %v2508, %v2596
      %v2598 = vpop.f32.mrf.mxu0
      %v2599 = vadd.f32 %v2510, %v2598
      %2600 = vmatmul.bf16.gmra.mxu0 %v1013
      %v2601 = vpop.f32.mrf.mxu0
      %v2602 = vadd.f32 %v2513, %v2601
      %v2603 = vpop.f32.mrf.mxu0
      %v2604 = vadd.f32 %v2515, %v2603
      %2605 = vmatmul.bf16.gmra.mxu0 %v1020
      %v2606 = vpop.f32.mrf.mxu0
      %v2607 = vadd.f32 %v2518, %v2606
      %v2608 = vpop.f32.mrf.mxu0
      %v2609 = vadd.f32 %v2520, %v2608
      %2610 = vmatmul.bf16.gmra.mxu0 %v1027
      %v2611 = vpop.f32.mrf.mxu0
      %v2612 = vadd.f32 %v2523, %v2611
      %v2613 = vpop.f32.mrf.mxu0
      %v2614 = vadd.f32 %v2525, %v2613
      %2615 = vmatmul.bf16.gmra.mxu0 %v1034
      %v2616 = vpop.f32.mrf.mxu0
      %v2617 = vadd.f32 %v2528, %v2616
      %v2618 = vpop.f32.mrf.mxu0
      %v2619 = vadd.f32 %v2530, %v2618
      %2620 = vmatmul.bf16.gmra.mxu0 %v1041
      %v2621 = vpop.f32.mrf.mxu0
      %v2622 = vadd.f32 %v2533, %v2621
      %v2623 = vpop.f32.mrf.mxu0
      %v2624 = vadd.f32 %v2535, %v2623
      %2625 = vmatmul.bf16.gmra.mxu0 %v1048
      %v2626 = vpop.f32.mrf.mxu0
      %v2627 = vadd.f32 %v2538, %v2626
      %v2628 = vpop.f32.mrf.mxu0
      %v2629 = vadd.f32 %v2540, %v2628
      %2630 = vmatmul.bf16.gmra.mxu0 %v1055
      %v2631 = vpop.f32.mrf.mxu0
      %v2632 = vadd.f32 %v2543, %v2631
      %v2633 = vpop.f32.mrf.mxu0
      %v2634 = vadd.f32 %v2545, %v2633
      %2635 = vmatmul.bf16.gmra.mxu0 %v1062
      %v2636 = vpop.f32.mrf.mxu0
      %v2637 = vadd.f32 %v2548, %v2636
      %v2638 = vpop.f32.mrf.mxu0
      %v2639 = vadd.f32 %v2550, %v2638
      %2640 = vmatmul.bf16.gmra.mxu0 %v1069
      %v2641 = vpop.f32.mrf.mxu0
      %v2642 = vadd.f32 %v2553, %v2641
      %v2643 = vpop.f32.mrf.mxu0
      %v2644 = vadd.f32 %v2555, %v2643
      %2645 = vmatmul.bf16.gmra.mxu0 %v1076
      %v2646 = vpop.f32.mrf.mxu0
      %v2647 = vadd.f32 %v2558, %v2646
      %v2648 = vpop.f32.mrf.mxu0
      %v2649 = vadd.f32 %v2560, %v2648
      %2650 = vmatmul.bf16.gmra.mxu0 %v1083
      %v2651 = vpop.f32.mrf.mxu0
      %v2652 = vadd.f32 %v2563, %v2651
      %v2653 = vpop.f32.mrf.mxu0
      %v2654 = vadd.f32 %v2565, %v2653
      %2655 = vdwg.mxu0
      %2656 = vmatpush.bf16.msra.mxu0 %v1958
      %2657 = vmatpush.bf16.msra.mxu0 %v1954
      %2658 = vmatpush.bf16.msra.mxu0 %v1950
      %2659 = vmatpush.bf16.msra.mxu0 %v1946
      %2660 = vmatpush.bf16.msra.mxu0 %v1942
      %2661 = vmatpush.bf16.msra.mxu0 %v1938
      %2662 = vmatpush.bf16.msra.mxu0 %v1934
      %2663 = vmatpush.bf16.msra.mxu0 %v1930
      %2664 = vmatmul.bf16.gmra.mxu0 %v979
      %v2665 = vpop.f32.mrf.mxu0
      %v2666 = vadd.f32 %v2577, %v2665
      %v2667 = vpop.f32.mrf.mxu0
      %v2668 = vadd.f32 %v2579, %v2667
      %2669 = vmatmul.bf16.gmra.mxu0 %v986
      %v2670 = vpop.f32.mrf.mxu0
      %v2671 = vadd.f32 %v2582, %v2670
      %v2672 = vpop.f32.mrf.mxu0
      %v2673 = vadd.f32 %v2584, %v2672
      %2674 = vmatmul.bf16.gmra.mxu0 %v993
      %v2675 = vpop.f32.mrf.mxu0
      %v2676 = vadd.f32 %v2587, %v2675
      %v2677 = vpop.f32.mrf.mxu0
      %v2678 = vadd.f32 %v2589, %v2677
      %2679 = vmatmul.bf16.gmra.mxu0 %v1000
      %v2680 = vpop.f32.mrf.mxu0
      %v2681 = vadd.f32 %v2592, %v2680
      %v2682 = vpop.f32.mrf.mxu0
      %v2683 = vadd.f32 %v2594, %v2682
      %2684 = vmatmul.bf16.gmra.mxu0 %v1007
      %v2685 = vpop.f32.mrf.mxu0
      %v2686 = vadd.f32 %v2597, %v2685
      %v2687 = vpop.f32.mrf.mxu0
      %v2688 = vadd.f32 %v2599, %v2687
      %2689 = vmatmul.bf16.gmra.mxu0 %v1014
      %v2690 = vpop.f32.mrf.mxu0
      %v2691 = vadd.f32 %v2602, %v2690
      %v2692 = vpop.f32.mrf.mxu0
      %v2693 = vadd.f32 %v2604, %v2692
      %2694 = vmatmul.bf16.gmra.mxu0 %v1021
      %v2695 = vpop.f32.mrf.mxu0
      %v2696 = vadd.f32 %v2607, %v2695
      %v2697 = vpop.f32.mrf.mxu0
      %v2698 = vadd.f32 %v2609, %v2697
      %2699 = vmatmul.bf16.gmra.mxu0 %v1028
      %v2700 = vpop.f32.mrf.mxu0
      %v2701 = vadd.f32 %v2612, %v2700
      %v2702 = vpop.f32.mrf.mxu0
      %v2703 = vadd.f32 %v2614, %v2702
      %2704 = vmatmul.bf16.gmra.mxu0 %v1035
      %v2705 = vpop.f32.mrf.mxu0
      %v2706 = vadd.f32 %v2617, %v2705
      %v2707 = vpop.f32.mrf.mxu0
      %v2708 = vadd.f32 %v2619, %v2707
      %2709 = vmatmul.bf16.gmra.mxu0 %v1042
      %v2710 = vpop.f32.mrf.mxu0
      %v2711 = vadd.f32 %v2622, %v2710
      %v2712 = vpop.f32.mrf.mxu0
      %v2713 = vadd.f32 %v2624, %v2712
      %2714 = vmatmul.bf16.gmra.mxu0 %v1049
      %v2715 = vpop.f32.mrf.mxu0
      %v2716 = vadd.f32 %v2627, %v2715
      %v2717 = vpop.f32.mrf.mxu0
      %v2718 = vadd.f32 %v2629, %v2717
      %2719 = vmatmul.bf16.gmra.mxu0 %v1056
      %v2720 = vpop.f32.mrf.mxu0
      %v2721 = vadd.f32 %v2632, %v2720
      %v2722 = vpop.f32.mrf.mxu0
      %v2723 = vadd.f32 %v2634, %v2722
      %2724 = vmatmul.bf16.gmra.mxu0 %v1063
      %v2725 = vpop.f32.mrf.mxu0
      %v2726 = vadd.f32 %v2637, %v2725
      %v2727 = vpop.f32.mrf.mxu0
      %v2728 = vadd.f32 %v2639, %v2727
      %2729 = vmatmul.bf16.gmra.mxu0 %v1070
      %v2730 = vpop.f32.mrf.mxu0
      %v2731 = vadd.f32 %v2642, %v2730
      %v2732 = vpop.f32.mrf.mxu0
      %v2733 = vadd.f32 %v2644, %v2732
      %2734 = vmatmul.bf16.gmra.mxu0 %v1077
      %v2735 = vpop.f32.mrf.mxu0
      %v2736 = vadd.f32 %v2647, %v2735
      %v2737 = vpop.f32.mrf.mxu0
      %v2738 = vadd.f32 %v2649, %v2737
      %2739 = vmatmul.bf16.gmra.mxu0 %v1084
      %v2740 = vpop.f32.mrf.mxu0
      %v2741 = vadd.f32 %v2652, %v2740
      %v2742 = vpop.f32.mrf.mxu0
      %v2743 = vadd.f32 %v2654, %v2742
      %2744 = vdwg.mxu0
      %2745 = vmatpush.bf16.msra.mxu0 0
      %2746 = vmatpush.bf16.msra.mxu0 0
      %2747 = vmatpush.bf16.msra.mxu0 0
      %2748 = vmatpush.bf16.msra.mxu0 0
      %2749 = vmatpush.bf16.msra.mxu0 0
      %2750 = vmatpush.bf16.msra.mxu0 0
      %2751 = vmatpush.bf16.msra.mxu0 0
      %2752 = vmatpush.bf16.msra.mxu0 %v1962
      %2753 = vmatmul.bf16.gmra.mxu0 %v2164
      %v2754 = vpop.f32.mrf.mxu0
      %v2755 = vadd.f32 %v2666, %v2754
      %v2756 = vpop.f32.mrf.mxu0
      %v2757 = vadd.f32 %v2668, %v2756
      %2758 = vmatmul.bf16.gmra.mxu0 %v2167
      %v2759 = vpop.f32.mrf.mxu0
      %v2760 = vadd.f32 %v2671, %v2759
      %v2761 = vpop.f32.mrf.mxu0
      %v2762 = vadd.f32 %v2673, %v2761
      %2763 = vmatmul.bf16.gmra.mxu0 %v2170
      %v2764 = vpop.f32.mrf.mxu0
      %v2765 = vadd.f32 %v2676, %v2764
      %v2766 = vpop.f32.mrf.mxu0
      %v2767 = vadd.f32 %v2678, %v2766
      %2768 = vmatmul.bf16.gmra.mxu0 %v2173
      %v2769 = vpop.f32.mrf.mxu0
      %v2770 = vadd.f32 %v2681, %v2769
      %v2771 = vpop.f32.mrf.mxu0
      %v2772 = vadd.f32 %v2683, %v2771
      %2773 = vmatmul.bf16.gmra.mxu0 %v2176
      %v2774 = vpop.f32.mrf.mxu0
      %v2775 = vadd.f32 %v2686, %v2774
      %v2776 = vpop.f32.mrf.mxu0
      %v2777 = vadd.f32 %v2688, %v2776
      %2778 = vmatmul.bf16.gmra.mxu0 %v2179
      %v2779 = vpop.f32.mrf.mxu0
      %v2780 = vadd.f32 %v2691, %v2779
      %v2781 = vpop.f32.mrf.mxu0
      %v2782 = vadd.f32 %v2693, %v2781
      %2783 = vmatmul.bf16.gmra.mxu0 %v2182
      %v2784 = vpop.f32.mrf.mxu0
      %v2785 = vadd.f32 %v2696, %v2784
      %v2786 = vpop.f32.mrf.mxu0
      %v2787 = vadd.f32 %v2698, %v2786
      %2788 = vmatmul.bf16.gmra.mxu0 %v2185
      %v2789 = vpop.f32.mrf.mxu0
      %v2790 = vadd.f32 %v2701, %v2789
      %v2791 = vpop.f32.mrf.mxu0
      %v2792 = vadd.f32 %v2703, %v2791
      %2793 = vmatmul.bf16.gmra.mxu0 %v2188
      %v2794 = vpop.f32.mrf.mxu0
      %v2795 = vadd.f32 %v2706, %v2794
      %v2796 = vpop.f32.mrf.mxu0
      %v2797 = vadd.f32 %v2708, %v2796
      %2798 = vmatmul.bf16.gmra.mxu0 %v2191
      %v2799 = vpop.f32.mrf.mxu0
      %v2800 = vadd.f32 %v2711, %v2799
      %v2801 = vpop.f32.mrf.mxu0
      %v2802 = vadd.f32 %v2713, %v2801
      %2803 = vmatmul.bf16.gmra.mxu0 %v2194
      %v2804 = vpop.f32.mrf.mxu0
      %v2805 = vadd.f32 %v2716, %v2804
      %v2806 = vpop.f32.mrf.mxu0
      %v2807 = vadd.f32 %v2718, %v2806
      %2808 = vmatmul.bf16.gmra.mxu0 %v2197
      %v2809 = vpop.f32.mrf.mxu0
      %v2810 = vadd.f32 %v2721, %v2809
      %v2811 = vpop.f32.mrf.mxu0
      %v2812 = vadd.f32 %v2723, %v2811
      %2813 = vmatmul.bf16.gmra.mxu0 %v2200
      %v2814 = vpop.f32.mrf.mxu0
      %v2815 = vadd.f32 %v2726, %v2814
      %v2816 = vpop.f32.mrf.mxu0
      %v2817 = vadd.f32 %v2728, %v2816
      %2818 = vmatmul.bf16.gmra.mxu0 %v2203
      %v2819 = vpop.f32.mrf.mxu0
      %v2820 = vadd.f32 %v2731, %v2819
      %v2821 = vpop.f32.mrf.mxu0
      %v2822 = vadd.f32 %v2733, %v2821
      %2823 = vmatmul.bf16.gmra.mxu0 %v2206
      %v2824 = vpop.f32.mrf.mxu0
      %v2825 = vadd.f32 %v2736, %v2824
      %v2826 = vpop.f32.mrf.mxu0
      %v2827 = vadd.f32 %v2738, %v2826
      %2828 = vmatmul.bf16.gmra.mxu0 %v2209
      %v2829 = vpop.f32.mrf.mxu0
      %v2830 = vadd.f32 %v2741, %v2829
      %v2831 = vpop.f32.mrf.mxu0
      %v2832 = vadd.f32 %v2743, %v2831
      %2833 = vdwg.mxu0
      %2834 = vmatpush.bf16.msra.mxu0 %v1799
      %2835 = vmatpush.bf16.msra.mxu0 %v1795
      %2836 = vmatpush.bf16.msra.mxu0 %v1791
      %2837 = vmatpush.bf16.msra.mxu0 %v1787
      %2838 = vmatpush.bf16.msra.mxu0 %v1783
      %2839 = vmatpush.bf16.msra.mxu0 %v1779
      %2840 = vmatpush.bf16.msra.mxu0 %v1775
      %2841 = vmatpush.bf16.msra.mxu0 %v1771
      %2842 = vmatmul.bf16.gmra.mxu0 %v974
      %v2843 = vpop.f32.mrf.mxu0
      %v2844 = vadd.f32 %v615, %v2843
      %v2845 = vpop.f32.mrf.mxu0
      %v2846 = vadd.f32 %v615, %v2845
      %2847 = vmatmul.bf16.gmra.mxu0 %v981
      %v2848 = vpop.f32.mrf.mxu0
      %v2849 = vadd.f32 %v615, %v2848
      %v2850 = vpop.f32.mrf.mxu0
      %v2851 = vadd.f32 %v615, %v2850
      %2852 = vmatmul.bf16.gmra.mxu0 %v988
      %v2853 = vpop.f32.mrf.mxu0
      %v2854 = vadd.f32 %v615, %v2853
      %v2855 = vpop.f32.mrf.mxu0
      %v2856 = vadd.f32 %v615, %v2855
      %2857 = vmatmul.bf16.gmra.mxu0 %v995
      %v2858 = vpop.f32.mrf.mxu0
      %v2859 = vadd.f32 %v615, %v2858
      %v2860 = vpop.f32.mrf.mxu0
      %v2861 = vadd.f32 %v615, %v2860
      %2862 = vmatmul.bf16.gmra.mxu0 %v1002
      %v2863 = vpop.f32.mrf.mxu0
      %v2864 = vadd.f32 %v615, %v2863
      %v2865 = vpop.f32.mrf.mxu0
      %v2866 = vadd.f32 %v615, %v2865
      %2867 = vmatmul.bf16.gmra.mxu0 %v1009
      %v2868 = vpop.f32.mrf.mxu0
      %v2869 = vadd.f32 %v615, %v2868
      %v2870 = vpop.f32.mrf.mxu0
      %v2871 = vadd.f32 %v615, %v2870
      %2872 = vmatmul.bf16.gmra.mxu0 %v1016
      %v2873 = vpop.f32.mrf.mxu0
      %v2874 = vadd.f32 %v615, %v2873
      %v2875 = vpop.f32.mrf.mxu0
      %v2876 = vadd.f32 %v615, %v2875
      %2877 = vmatmul.bf16.gmra.mxu0 %v1023
      %v2878 = vpop.f32.mrf.mxu0
      %v2879 = vadd.f32 %v615, %v2878
      %v2880 = vpop.f32.mrf.mxu0
      %v2881 = vadd.f32 %v615, %v2880
      %2882 = vmatmul.bf16.gmra.mxu0 %v1030
      %v2883 = vpop.f32.mrf.mxu0
      %v2884 = vadd.f32 %v615, %v2883
      %v2885 = vpop.f32.mrf.mxu0
      %v2886 = vadd.f32 %v615, %v2885
      %2887 = vmatmul.bf16.gmra.mxu0 %v1037
      %v2888 = vpop.f32.mrf.mxu0
      %v2889 = vadd.f32 %v615, %v2888
      %v2890 = vpop.f32.mrf.mxu0
      %v2891 = vadd.f32 %v615, %v2890
      %2892 = vmatmul.bf16.gmra.mxu0 %v1044
      %v2893 = vpop.f32.mrf.mxu0
      %v2894 = vadd.f32 %v615, %v2893
      %v2895 = vpop.f32.mrf.mxu0
      %v2896 = vadd.f32 %v615, %v2895
      %2897 = vmatmul.bf16.gmra.mxu0 %v1051
      %v2898 = vpop.f32.mrf.mxu0
      %v2899 = vadd.f32 %v615, %v2898
      %v2900 = vpop.f32.mrf.mxu0
      %v2901 = vadd.f32 %v615, %v2900
      %2902 = vmatmul.bf16.gmra.mxu0 %v1058
      %v2903 = vpop.f32.mrf.mxu0
      %v2904 = vadd.f32 %v615, %v2903
      %v2905 = vpop.f32.mrf.mxu0
      %v2906 = vadd.f32 %v615, %v2905
      %2907 = vmatmul.bf16.gmra.mxu0 %v1065
      %v2908 = vpop.f32.mrf.mxu0
      %v2909 = vadd.f32 %v615, %v2908
      %v2910 = vpop.f32.mrf.mxu0
      %v2911 = vadd.f32 %v615, %v2910
      %2912 = vmatmul.bf16.gmra.mxu0 %v1072
      %v2913 = vpop.f32.mrf.mxu0
      %v2914 = vadd.f32 %v615, %v2913
      %v2915 = vpop.f32.mrf.mxu0
      %v2916 = vadd.f32 %v615, %v2915
      %2917 = vmatmul.bf16.gmra.mxu0 %v1079
      %v2918 = vpop.f32.mrf.mxu0
      %v2919 = vadd.f32 %v615, %v2918
      %v2920 = vpop.f32.mrf.mxu0
      %v2921 = vadd.f32 %v615, %v2920
      %2922 = vdwg.mxu0
      %2923 = vmatpush.bf16.msra.mxu0 %v1831
      %2924 = vmatpush.bf16.msra.mxu0 %v1827
      %2925 = vmatpush.bf16.msra.mxu0 %v1823
      %2926 = vmatpush.bf16.msra.mxu0 %v1819
      %2927 = vmatpush.bf16.msra.mxu0 %v1815
      %2928 = vmatpush.bf16.msra.mxu0 %v1811
      %2929 = vmatpush.bf16.msra.mxu0 %v1807
      %2930 = vmatpush.bf16.msra.mxu0 %v1803
      %2931 = vmatmul.bf16.gmra.mxu0 %v975
      %v2932 = vpop.f32.mrf.mxu0
      %v2933 = vadd.f32 %v2844, %v2932
      %v2934 = vpop.f32.mrf.mxu0
      %v2935 = vadd.f32 %v2846, %v2934
      %2936 = vmatmul.bf16.gmra.mxu0 %v982
      %v2937 = vpop.f32.mrf.mxu0
      %v2938 = vadd.f32 %v2849, %v2937
      %v2939 = vpop.f32.mrf.mxu0
      %v2940 = vadd.f32 %v2851, %v2939
      %2941 = vmatmul.bf16.gmra.mxu0 %v989
      %v2942 = vpop.f32.mrf.mxu0
      %v2943 = vadd.f32 %v2854, %v2942
      %v2944 = vpop.f32.mrf.mxu0
      %v2945 = vadd.f32 %v2856, %v2944
      %2946 = vmatmul.bf16.gmra.mxu0 %v996
      %v2947 = vpop.f32.mrf.mxu0
      %v2948 = vadd.f32 %v2859, %v2947
      %v2949 = vpop.f32.mrf.mxu0
      %v2950 = vadd.f32 %v2861, %v2949
      %2951 = vmatmul.bf16.gmra.mxu0 %v1003
      %v2952 = vpop.f32.mrf.mxu0
      %v2953 = vadd.f32 %v2864, %v2952
      %v2954 = vpop.f32.mrf.mxu0
      %v2955 = vadd.f32 %v2866, %v2954
      %2956 = vmatmul.bf16.gmra.mxu0 %v1010
      %v2957 = vpop.f32.mrf.mxu0
      %v2958 = vadd.f32 %v2869, %v2957
      %v2959 = vpop.f32.mrf.mxu0
      %v2960 = vadd.f32 %v2871, %v2959
      %2961 = vmatmul.bf16.gmra.mxu0 %v1017
      %v2962 = vpop.f32.mrf.mxu0
      %v2963 = vadd.f32 %v2874, %v2962
      %v2964 = vpop.f32.mrf.mxu0
      %v2965 = vadd.f32 %v2876, %v2964
      %2966 = vmatmul.bf16.gmra.mxu0 %v1024
      %v2967 = vpop.f32.mrf.mxu0
      %v2968 = vadd.f32 %v2879, %v2967
      %v2969 = vpop.f32.mrf.mxu0
      %v2970 = vadd.f32 %v2881, %v2969
      %2971 = vmatmul.bf16.gmra.mxu0 %v1031
      %v2972 = vpop.f32.mrf.mxu0
      %v2973 = vadd.f32 %v2884, %v2972
      %v2974 = vpop.f32.mrf.mxu0
      %v2975 = vadd.f32 %v2886, %v2974
      %2976 = vmatmul.bf16.gmra.mxu0 %v1038
      %v2977 = vpop.f32.mrf.mxu0
      %v2978 = vadd.f32 %v2889, %v2977
      %v2979 = vpop.f32.mrf.mxu0
      %v2980 = vadd.f32 %v2891, %v2979
      %2981 = vmatmul.bf16.gmra.mxu0 %v1045
      %v2982 = vpop.f32.mrf.mxu0
      %v2983 = vadd.f32 %v2894, %v2982
      %v2984 = vpop.f32.mrf.mxu0
      %v2985 = vadd.f32 %v2896, %v2984
      %2986 = vmatmul.bf16.gmra.mxu0 %v1052
      %v2987 = vpop.f32.mrf.mxu0
      %v2988 = vadd.f32 %v2899, %v2987
      %v2989 = vpop.f32.mrf.mxu0
      %v2990 = vadd.f32 %v2901, %v2989
      %2991 = vmatmul.bf16.gmra.mxu0 %v1059
      %v2992 = vpop.f32.mrf.mxu0
      %v2993 = vadd.f32 %v2904, %v2992
      %v2994 = vpop.f32.mrf.mxu0
      %v2995 = vadd.f32 %v2906, %v2994
      %2996 = vmatmul.bf16.gmra.mxu0 %v1066
      %v2997 = vpop.f32.mrf.mxu0
      %v2998 = vadd.f32 %v2909, %v2997
      %v2999 = vpop.f32.mrf.mxu0
      %v3000 = vadd.f32 %v2911, %v2999
      %3001 = vmatmul.bf16.gmra.mxu0 %v1073
      %v3002 = vpop.f32.mrf.mxu0
      %v3003 = vadd.f32 %v2914, %v3002
      %v3004 = vpop.f32.mrf.mxu0
      %v3005 = vadd.f32 %v2916, %v3004
      %3006 = vmatmul.bf16.gmra.mxu0 %v1080
      %v3007 = vpop.f32.mrf.mxu0
      %v3008 = vadd.f32 %v2919, %v3007
      %v3009 = vpop.f32.mrf.mxu0
      %v3010 = vadd.f32 %v2921, %v3009
      %3011 = vdwg.mxu0
      %3012 = vmatpush.bf16.msra.mxu0 %v1863
      %3013 = vmatpush.bf16.msra.mxu0 %v1859
      %3014 = vmatpush.bf16.msra.mxu0 %v1855
      %3015 = vmatpush.bf16.msra.mxu0 %v1851
      %3016 = vmatpush.bf16.msra.mxu0 %v1847
      %3017 = vmatpush.bf16.msra.mxu0 %v1843
      %3018 = vmatpush.bf16.msra.mxu0 %v1839
      %3019 = vmatpush.bf16.msra.mxu0 %v1835
      %3020 = vmatmul.bf16.gmra.mxu0 %v976
      %v3021 = vpop.f32.mrf.mxu0
      %v3022 = vadd.f32 %v2933, %v3021
      %v3023 = vpop.f32.mrf.mxu0
      %v3024 = vadd.f32 %v2935, %v3023
      %3025 = vmatmul.bf16.gmra.mxu0 %v983
      %v3026 = vpop.f32.mrf.mxu0
      %v3027 = vadd.f32 %v2938, %v3026
      %v3028 = vpop.f32.mrf.mxu0
      %v3029 = vadd.f32 %v2940, %v3028
      %3030 = vmatmul.bf16.gmra.mxu0 %v990
      %v3031 = vpop.f32.mrf.mxu0
      %v3032 = vadd.f32 %v2943, %v3031
      %v3033 = vpop.f32.mrf.mxu0
      %v3034 = vadd.f32 %v2945, %v3033
      %3035 = vmatmul.bf16.gmra.mxu0 %v997
      %v3036 = vpop.f32.mrf.mxu0
      %v3037 = vadd.f32 %v2948, %v3036
      %v3038 = vpop.f32.mrf.mxu0
      %v3039 = vadd.f32 %v2950, %v3038
      %3040 = vmatmul.bf16.gmra.mxu0 %v1004
      %v3041 = vpop.f32.mrf.mxu0
      %v3042 = vadd.f32 %v2953, %v3041
      %v3043 = vpop.f32.mrf.mxu0
      %v3044 = vadd.f32 %v2955, %v3043
      %3045 = vmatmul.bf16.gmra.mxu0 %v1011
      %v3046 = vpop.f32.mrf.mxu0
      %v3047 = vadd.f32 %v2958, %v3046
      %v3048 = vpop.f32.mrf.mxu0
      %v3049 = vadd.f32 %v2960, %v3048
      %3050 = vmatmul.bf16.gmra.mxu0 %v1018
      %v3051 = vpop.f32.mrf.mxu0
      %v3052 = vadd.f32 %v2963, %v3051
      %v3053 = vpop.f32.mrf.mxu0
      %v3054 = vadd.f32 %v2965, %v3053
      %3055 = vmatmul.bf16.gmra.mxu0 %v1025
      %v3056 = vpop.f32.mrf.mxu0
      %v3057 = vadd.f32 %v2968, %v3056
      %v3058 = vpop.f32.mrf.mxu0
      %v3059 = vadd.f32 %v2970, %v3058
      %3060 = vmatmul.bf16.gmra.mxu0 %v1032
      %v3061 = vpop.f32.mrf.mxu0
      %v3062 = vadd.f32 %v2973, %v3061
      %v3063 = vpop.f32.mrf.mxu0
      %v3064 = vadd.f32 %v2975, %v3063
      %3065 = vmatmul.bf16.gmra.mxu0 %v1039
      %v3066 = vpop.f32.mrf.mxu0
      %v3067 = vadd.f32 %v2978, %v3066
      %v3068 = vpop.f32.mrf.mxu0
      %v3069 = vadd.f32 %v2980, %v3068
      %3070 = vmatmul.bf16.gmra.mxu0 %v1046
      %v3071 = vpop.f32.mrf.mxu0
      %v3072 = vadd.f32 %v2983, %v3071
      %v3073 = vpop.f32.mrf.mxu0
      %v3074 = vadd.f32 %v2985, %v3073
      %3075 = vmatmul.bf16.gmra.mxu0 %v1053
      %v3076 = vpop.f32.mrf.mxu0
      %v3077 = vadd.f32 %v2988, %v3076
      %v3078 = vpop.f32.mrf.mxu0
      %v3079 = vadd.f32 %v2990, %v3078
      %3080 = vmatmul.bf16.gmra.mxu0 %v1060
      %v3081 = vpop.f32.mrf.mxu0
      %v3082 = vadd.f32 %v2993, %v3081
      %v3083 = vpop.f32.mrf.mxu0
      %v3084 = vadd.f32 %v2995, %v3083
      %3085 = vmatmul.bf16.gmra.mxu0 %v1067
      %v3086 = vpop.f32.mrf.mxu0
      %v3087 = vadd.f32 %v2998, %v3086
      %v3088 = vpop.f32.mrf.mxu0
      %v3089 = vadd.f32 %v3000, %v3088
      %3090 = vmatmul.bf16.gmra.mxu0 %v1074
      %v3091 = vpop.f32.mrf.mxu0
      %v3092 = vadd.f32 %v3003, %v3091
      %v3093 = vpop.f32.mrf.mxu0
      %v3094 = vadd.f32 %v3005, %v3093
      %3095 = vmatmul.bf16.gmra.mxu0 %v1081
      %v3096 = vpop.f32.mrf.mxu0
      %v3097 = vadd.f32 %v3008, %v3096
      %v3098 = vpop.f32.mrf.mxu0
      %v3099 = vadd.f32 %v3010, %v3098
      %3100 = vdwg.mxu0
      %3101 = vmatpush.bf16.msra.mxu0 %v1895
      %3102 = vmatpush.bf16.msra.mxu0 %v1891
      %3103 = vmatpush.bf16.msra.mxu0 %v1887
      %3104 = vmatpush.bf16.msra.mxu0 %v1883
      %3105 = vmatpush.bf16.msra.mxu0 %v1879
      %3106 = vmatpush.bf16.msra.mxu0 %v1875
      %3107 = vmatpush.bf16.msra.mxu0 %v1871
      %3108 = vmatpush.bf16.msra.mxu0 %v1867
      %3109 = vmatmul.bf16.gmra.mxu0 %v977
      %v3110 = vpop.f32.mrf.mxu0
      %v3111 = vadd.f32 %v3022, %v3110
      %v3112 = vpop.f32.mrf.mxu0
      %v3113 = vadd.f32 %v3024, %v3112
      %3114 = vmatmul.bf16.gmra.mxu0 %v984
      %v3115 = vpop.f32.mrf.mxu0
      %v3116 = vadd.f32 %v3027, %v3115
      %v3117 = vpop.f32.mrf.mxu0
      %v3118 = vadd.f32 %v3029, %v3117
      %3119 = vmatmul.bf16.gmra.mxu0 %v991
      %v3120 = vpop.f32.mrf.mxu0
      %v3121 = vadd.f32 %v3032, %v3120
      %v3122 = vpop.f32.mrf.mxu0
      %v3123 = vadd.f32 %v3034, %v3122
      %3124 = vmatmul.bf16.gmra.mxu0 %v998
      %v3125 = vpop.f32.mrf.mxu0
      %v3126 = vadd.f32 %v3037, %v3125
      %v3127 = vpop.f32.mrf.mxu0
      %v3128 = vadd.f32 %v3039, %v3127
      %3129 = vmatmul.bf16.gmra.mxu0 %v1005
      %v3130 = vpop.f32.mrf.mxu0
      %v3131 = vadd.f32 %v3042, %v3130
      %v3132 = vpop.f32.mrf.mxu0
      %v3133 = vadd.f32 %v3044, %v3132
      %3134 = vmatmul.bf16.gmra.mxu0 %v1012
      %v3135 = vpop.f32.mrf.mxu0
      %v3136 = vadd.f32 %v3047, %v3135
      %v3137 = vpop.f32.mrf.mxu0
      %v3138 = vadd.f32 %v3049, %v3137
      %3139 = vmatmul.bf16.gmra.mxu0 %v1019
      %v3140 = vpop.f32.mrf.mxu0
      %v3141 = vadd.f32 %v3052, %v3140
      %v3142 = vpop.f32.mrf.mxu0
      %v3143 = vadd.f32 %v3054, %v3142
      %3144 = vmatmul.bf16.gmra.mxu0 %v1026
      %v3145 = vpop.f32.mrf.mxu0
      %v3146 = vadd.f32 %v3057, %v3145
      %v3147 = vpop.f32.mrf.mxu0
      %v3148 = vadd.f32 %v3059, %v3147
      %3149 = vmatmul.bf16.gmra.mxu0 %v1033
      %v3150 = vpop.f32.mrf.mxu0
      %v3151 = vadd.f32 %v3062, %v3150
      %v3152 = vpop.f32.mrf.mxu0
      %v3153 = vadd.f32 %v3064, %v3152
      %3154 = vmatmul.bf16.gmra.mxu0 %v1040
      %v3155 = vpop.f32.mrf.mxu0
      %v3156 = vadd.f32 %v3067, %v3155
      %v3157 = vpop.f32.mrf.mxu0
      %v3158 = vadd.f32 %v3069, %v3157
      %3159 = vmatmul.bf16.gmra.mxu0 %v1047
      %v3160 = vpop.f32.mrf.mxu0
      %v3161 = vadd.f32 %v3072, %v3160
      %v3162 = vpop.f32.mrf.mxu0
      %v3163 = vadd.f32 %v3074, %v3162
      %3164 = vmatmul.bf16.gmra.mxu0 %v1054
      %v3165 = vpop.f32.mrf.mxu0
      %v3166 = vadd.f32 %v3077, %v3165
      %v3167 = vpop.f32.mrf.mxu0
      %v3168 = vadd.f32 %v3079, %v3167
      %3169 = vmatmul.bf16.gmra.mxu0 %v1061
      %v3170 = vpop.f32.mrf.mxu0
      %v3171 = vadd.f32 %v3082, %v3170
      %v3172 = vpop.f32.mrf.mxu0
      %v3173 = vadd.f32 %v3084, %v3172
      %3174 = vmatmul.bf16.gmra.mxu0 %v1068
      %v3175 = vpop.f32.mrf.mxu0
      %v3176 = vadd.f32 %v3087, %v3175
      %v3177 = vpop.f32.mrf.mxu0
      %v3178 = vadd.f32 %v3089, %v3177
      %3179 = vmatmul.bf16.gmra.mxu0 %v1075
      %v3180 = vpop.f32.mrf.mxu0
      %v3181 = vadd.f32 %v3092, %v3180
      %v3182 = vpop.f32.mrf.mxu0
      %v3183 = vadd.f32 %v3094, %v3182
      %3184 = vmatmul.bf16.gmra.mxu0 %v1082
      %v3185 = vpop.f32.mrf.mxu0
      %v3186 = vadd.f32 %v3097, %v3185
      %v3187 = vpop.f32.mrf.mxu0
      %v3188 = vadd.f32 %v3099, %v3187
      %3189 = vdwg.mxu0
      %3190 = vmatpush.bf16.msra.mxu0 %v1927
      %3191 = vmatpush.bf16.msra.mxu0 %v1923
      %3192 = vmatpush.bf16.msra.mxu0 %v1919
      %3193 = vmatpush.bf16.msra.mxu0 %v1915
      %3194 = vmatpush.bf16.msra.mxu0 %v1911
      %3195 = vmatpush.bf16.msra.mxu0 %v1907
      %3196 = vmatpush.bf16.msra.mxu0 %v1903
      %3197 = vmatpush.bf16.msra.mxu0 %v1899
      %3198 = vmatmul.bf16.gmra.mxu0 %v978
      %v3199 = vpop.f32.mrf.mxu0
      %v3200 = vadd.f32 %v3111, %v3199
      %v3201 = vpop.f32.mrf.mxu0
      %v3202 = vadd.f32 %v3113, %v3201
      %3203 = vmatmul.bf16.gmra.mxu0 %v985
      %v3204 = vpop.f32.mrf.mxu0
      %v3205 = vadd.f32 %v3116, %v3204
      %v3206 = vpop.f32.mrf.mxu0
      %v3207 = vadd.f32 %v3118, %v3206
      %3208 = vmatmul.bf16.gmra.mxu0 %v992
      %v3209 = vpop.f32.mrf.mxu0
      %v3210 = vadd.f32 %v3121, %v3209
      %v3211 = vpop.f32.mrf.mxu0
      %v3212 = vadd.f32 %v3123, %v3211
      %3213 = vmatmul.bf16.gmra.mxu0 %v999
      %v3214 = vpop.f32.mrf.mxu0
      %v3215 = vadd.f32 %v3126, %v3214
      %v3216 = vpop.f32.mrf.mxu0
      %v3217 = vadd.f32 %v3128, %v3216
      %3218 = vmatmul.bf16.gmra.mxu0 %v1006
      %v3219 = vpop.f32.mrf.mxu0
      %v3220 = vadd.f32 %v3131, %v3219
      %v3221 = vpop.f32.mrf.mxu0
      %v3222 = vadd.f32 %v3133, %v3221
      %3223 = vmatmul.bf16.gmra.mxu0 %v1013
      %v3224 = vpop.f32.mrf.mxu0
      %v3225 = vadd.f32 %v3136, %v3224
      %v3226 = vpop.f32.mrf.mxu0
      %v3227 = vadd.f32 %v3138, %v3226
      %3228 = vmatmul.bf16.gmra.mxu0 %v1020
      %v3229 = vpop.f32.mrf.mxu0
      %v3230 = vadd.f32 %v3141, %v3229
      %v3231 = vpop.f32.mrf.mxu0
      %v3232 = vadd.f32 %v3143, %v3231
      %3233 = vmatmul.bf16.gmra.mxu0 %v1027
      %v3234 = vpop.f32.mrf.mxu0
      %v3235 = vadd.f32 %v3146, %v3234
      %v3236 = vpop.f32.mrf.mxu0
      %v3237 = vadd.f32 %v3148, %v3236
      %3238 = vmatmul.bf16.gmra.mxu0 %v1034
      %v3239 = vpop.f32.mrf.mxu0
      %v3240 = vadd.f32 %v3151, %v3239
      %v3241 = vpop.f32.mrf.mxu0
      %v3242 = vadd.f32 %v3153, %v3241
      %3243 = vmatmul.bf16.gmra.mxu0 %v1041
      %v3244 = vpop.f32.mrf.mxu0
      %v3245 = vadd.f32 %v3156, %v3244
      %v3246 = vpop.f32.mrf.mxu0
      %v3247 = vadd.f32 %v3158, %v3246
      %3248 = vmatmul.bf16.gmra.mxu0 %v1048
      %v3249 = vpop.f32.mrf.mxu0
      %v3250 = vadd.f32 %v3161, %v3249
      %v3251 = vpop.f32.mrf.mxu0
      %v3252 = vadd.f32 %v3163, %v3251
      %3253 = vmatmul.bf16.gmra.mxu0 %v1055
      %v3254 = vpop.f32.mrf.mxu0
      %v3255 = vadd.f32 %v3166, %v3254
      %v3256 = vpop.f32.mrf.mxu0
      %v3257 = vadd.f32 %v3168, %v3256
      %3258 = vmatmul.bf16.gmra.mxu0 %v1062
      %v3259 = vpop.f32.mrf.mxu0
      %v3260 = vadd.f32 %v3171, %v3259
      %v3261 = vpop.f32.mrf.mxu0
      %v3262 = vadd.f32 %v3173, %v3261
      %3263 = vmatmul.bf16.gmra.mxu0 %v1069
      %v3264 = vpop.f32.mrf.mxu0
      %v3265 = vadd.f32 %v3176, %v3264
      %v3266 = vpop.f32.mrf.mxu0
      %v3267 = vadd.f32 %v3178, %v3266
      %3268 = vmatmul.bf16.gmra.mxu0 %v1076
      %v3269 = vpop.f32.mrf.mxu0
      %v3270 = vadd.f32 %v3181, %v3269
      %v3271 = vpop.f32.mrf.mxu0
      %v3272 = vadd.f32 %v3183, %v3271
      %3273 = vmatmul.bf16.gmra.mxu0 %v1083
      %v3274 = vpop.f32.mrf.mxu0
      %v3275 = vadd.f32 %v3186, %v3274
      %v3276 = vpop.f32.mrf.mxu0
      %v3277 = vadd.f32 %v3188, %v3276
      %3278 = vdwg.mxu0
      %3279 = vmatpush.bf16.msra.mxu0 %v1959
      %3280 = vmatpush.bf16.msra.mxu0 %v1955
      %3281 = vmatpush.bf16.msra.mxu0 %v1951
      %3282 = vmatpush.bf16.msra.mxu0 %v1947
      %3283 = vmatpush.bf16.msra.mxu0 %v1943
      %3284 = vmatpush.bf16.msra.mxu0 %v1939
      %3285 = vmatpush.bf16.msra.mxu0 %v1935
      %3286 = vmatpush.bf16.msra.mxu0 %v1931
      %3287 = vmatmul.bf16.gmra.mxu0 %v979
      %v3288 = vpop.f32.mrf.mxu0
      %v3289 = vadd.f32 %v3200, %v3288
      %v3290 = vpop.f32.mrf.mxu0
      %v3291 = vadd.f32 %v3202, %v3290
      %3292 = vmatmul.bf16.gmra.mxu0 %v986
      %v3293 = vpop.f32.mrf.mxu0
      %v3294 = vadd.f32 %v3205, %v3293
      %v3295 = vpop.f32.mrf.mxu0
      %v3296 = vadd.f32 %v3207, %v3295
      %3297 = vmatmul.bf16.gmra.mxu0 %v993
      %v3298 = vpop.f32.mrf.mxu0
      %v3299 = vadd.f32 %v3210, %v3298
      %v3300 = vpop.f32.mrf.mxu0
      %v3301 = vadd.f32 %v3212, %v3300
      %3302 = vmatmul.bf16.gmra.mxu0 %v1000
      %v3303 = vpop.f32.mrf.mxu0
      %v3304 = vadd.f32 %v3215, %v3303
      %v3305 = vpop.f32.mrf.mxu0
      %v3306 = vadd.f32 %v3217, %v3305
      %3307 = vmatmul.bf16.gmra.mxu0 %v1007
      %v3308 = vpop.f32.mrf.mxu0
      %v3309 = vadd.f32 %v3220, %v3308
      %v3310 = vpop.f32.mrf.mxu0
      %v3311 = vadd.f32 %v3222, %v3310
      %3312 = vmatmul.bf16.gmra.mxu0 %v1014
      %v3313 = vpop.f32.mrf.mxu0
      %v3314 = vadd.f32 %v3225, %v3313
      %v3315 = vpop.f32.mrf.mxu0
      %v3316 = vadd.f32 %v3227, %v3315
      %3317 = vmatmul.bf16.gmra.mxu0 %v1021
      %v3318 = vpop.f32.mrf.mxu0
      %v3319 = vadd.f32 %v3230, %v3318
      %v3320 = vpop.f32.mrf.mxu0
      %v3321 = vadd.f32 %v3232, %v3320
      %3322 = vmatmul.bf16.gmra.mxu0 %v1028
      %v3323 = vpop.f32.mrf.mxu0
      %v3324 = vadd.f32 %v3235, %v3323
      %v3325 = vpop.f32.mrf.mxu0
      %v3326 = vadd.f32 %v3237, %v3325
      %3327 = vmatmul.bf16.gmra.mxu0 %v1035
      %v3328 = vpop.f32.mrf.mxu0
      %v3329 = vadd.f32 %v3240, %v3328
      %v3330 = vpop.f32.mrf.mxu0
      %v3331 = vadd.f32 %v3242, %v3330
      %3332 = vmatmul.bf16.gmra.mxu0 %v1042
      %v3333 = vpop.f32.mrf.mxu0
      %v3334 = vadd.f32 %v3245, %v3333
      %v3335 = vpop.f32.mrf.mxu0
      %v3336 = vadd.f32 %v3247, %v3335
      %3337 = vmatmul.bf16.gmra.mxu0 %v1049
      %v3338 = vpop.f32.mrf.mxu0
      %v3339 = vadd.f32 %v3250, %v3338
      %v3340 = vpop.f32.mrf.mxu0
      %v3341 = vadd.f32 %v3252, %v3340
      %3342 = vmatmul.bf16.gmra.mxu0 %v1056
      %v3343 = vpop.f32.mrf.mxu0
      %v3344 = vadd.f32 %v3255, %v3343
      %v3345 = vpop.f32.mrf.mxu0
      %v3346 = vadd.f32 %v3257, %v3345
      %3347 = vmatmul.bf16.gmra.mxu0 %v1063
      %v3348 = vpop.f32.mrf.mxu0
      %v3349 = vadd.f32 %v3260, %v3348
      %v3350 = vpop.f32.mrf.mxu0
      %v3351 = vadd.f32 %v3262, %v3350
      %3352 = vmatmul.bf16.gmra.mxu0 %v1070
      %v3353 = vpop.f32.mrf.mxu0
      %v3354 = vadd.f32 %v3265, %v3353
      %v3355 = vpop.f32.mrf.mxu0
      %v3356 = vadd.f32 %v3267, %v3355
      %3357 = vmatmul.bf16.gmra.mxu0 %v1077
      %v3358 = vpop.f32.mrf.mxu0
      %v3359 = vadd.f32 %v3270, %v3358
      %v3360 = vpop.f32.mrf.mxu0
      %v3361 = vadd.f32 %v3272, %v3360
      %3362 = vmatmul.bf16.gmra.mxu0 %v1084
      %v3363 = vpop.f32.mrf.mxu0
      %v3364 = vadd.f32 %v3275, %v3363
      %v3365 = vpop.f32.mrf.mxu0
      %v3366 = vadd.f32 %v3277, %v3365
      %3367 = vdwg.mxu0
      %3368 = vmatpush.bf16.msra.mxu0 0
      %3369 = vmatpush.bf16.msra.mxu0 0
      %3370 = vmatpush.bf16.msra.mxu0 0
      %3371 = vmatpush.bf16.msra.mxu0 0
      %3372 = vmatpush.bf16.msra.mxu0 0
      %3373 = vmatpush.bf16.msra.mxu0 0
      %3374 = vmatpush.bf16.msra.mxu0 0
      %3375 = vmatpush.bf16.msra.mxu0 %v1963
      %3376 = vmatmul.bf16.gmra.mxu0 %v2164
      %v3377 = vpop.f32.mrf.mxu0
      %v3378 = vadd.f32 %v3289, %v3377
      %v3379 = vpop.f32.mrf.mxu0
      %v3380 = vadd.f32 %v3291, %v3379
      %3381 = vmatmul.bf16.gmra.mxu0 %v2167
      %v3382 = vpop.f32.mrf.mxu0
      %v3383 = vadd.f32 %v3294, %v3382
      %v3384 = vpop.f32.mrf.mxu0
      %v3385 = vadd.f32 %v3296, %v3384
      %3386 = vmatmul.bf16.gmra.mxu0 %v2170
      %v3387 = vpop.f32.mrf.mxu0
      %v3388 = vadd.f32 %v3299, %v3387
      %v3389 = vpop.f32.mrf.mxu0
      %v3390 = vadd.f32 %v3301, %v3389
      %3391 = vmatmul.bf16.gmra.mxu0 %v2173
      %v3392 = vpop.f32.mrf.mxu0
      %v3393 = vadd.f32 %v3304, %v3392
      %v3394 = vpop.f32.mrf.mxu0
      %v3395 = vadd.f32 %v3306, %v3394
      %3396 = vmatmul.bf16.gmra.mxu0 %v2176
      %v3397 = vpop.f32.mrf.mxu0
      %v3398 = vadd.f32 %v3309, %v3397
      %v3399 = vpop.f32.mrf.mxu0
      %v3400 = vadd.f32 %v3311, %v3399
      %3401 = vmatmul.bf16.gmra.mxu0 %v2179
      %v3402 = vpop.f32.mrf.mxu0
      %v3403 = vadd.f32 %v3314, %v3402
      %v3404 = vpop.f32.mrf.mxu0
      %v3405 = vadd.f32 %v3316, %v3404
      %3406 = vmatmul.bf16.gmra.mxu0 %v2182
      %v3407 = vpop.f32.mrf.mxu0
      %v3408 = vadd.f32 %v3319, %v3407
      %v3409 = vpop.f32.mrf.mxu0
      %v3410 = vadd.f32 %v3321, %v3409
      %3411 = vmatmul.bf16.gmra.mxu0 %v2185
      %v3412 = vpop.f32.mrf.mxu0
      %v3413 = vadd.f32 %v3324, %v3412
      %v3414 = vpop.f32.mrf.mxu0
      %v3415 = vadd.f32 %v3326, %v3414
      %3416 = vmatmul.bf16.gmra.mxu0 %v2188
      %v3417 = vpop.f32.mrf.mxu0
      %v3418 = vadd.f32 %v3329, %v3417
      %v3419 = vpop.f32.mrf.mxu0
      %v3420 = vadd.f32 %v3331, %v3419
      %3421 = vmatmul.bf16.gmra.mxu0 %v2191
      %v3422 = vpop.f32.mrf.mxu0
      %v3423 = vadd.f32 %v3334, %v3422
      %v3424 = vpop.f32.mrf.mxu0
      %v3425 = vadd.f32 %v3336, %v3424
      %3426 = vmatmul.bf16.gmra.mxu0 %v2194
      %v3427 = vpop.f32.mrf.mxu0
      %v3428 = vadd.f32 %v3339, %v3427
      %v3429 = vpop.f32.mrf.mxu0
      %v3430 = vadd.f32 %v3341, %v3429
      %3431 = vmatmul.bf16.gmra.mxu0 %v2197
      %v3432 = vpop.f32.mrf.mxu0
      %v3433 = vadd.f32 %v3344, %v3432
      %v3434 = vpop.f32.mrf.mxu0
      %v3435 = vadd.f32 %v3346, %v3434
      %3436 = vmatmul.bf16.gmra.mxu0 %v2200
      %v3437 = vpop.f32.mrf.mxu0
      %v3438 = vadd.f32 %v3349, %v3437
      %v3439 = vpop.f32.mrf.mxu0
      %v3440 = vadd.f32 %v3351, %v3439
      %3441 = vmatmul.bf16.gmra.mxu0 %v2203
      %v3442 = vpop.f32.mrf.mxu0
      %v3443 = vadd.f32 %v3354, %v3442
      %v3444 = vpop.f32.mrf.mxu0
      %v3445 = vadd.f32 %v3356, %v3444
      %3446 = vmatmul.bf16.gmra.mxu0 %v2206
      %v3447 = vpop.f32.mrf.mxu0
      %v3448 = vadd.f32 %v3359, %v3447
      %v3449 = vpop.f32.mrf.mxu0
      %v3450 = vadd.f32 %v3361, %v3449
      %3451 = vmatmul.bf16.gmra.mxu0 %v2209
      %v3452 = vpop.f32.mrf.mxu0
      %v3453 = vadd.f32 %v3364, %v3452
      %v3454 = vpop.f32.mrf.mxu0
      %v3455 = vadd.f32 %v3366, %v3454
      %3456 = vdwg.mxu0
      %3457 = vmatpush.bf16.msra.mxu0 %v1800
      %3458 = vmatpush.bf16.msra.mxu0 %v1796
      %3459 = vmatpush.bf16.msra.mxu0 %v1792
      %3460 = vmatpush.bf16.msra.mxu0 %v1788
      %3461 = vmatpush.bf16.msra.mxu0 %v1784
      %3462 = vmatpush.bf16.msra.mxu0 %v1780
      %3463 = vmatpush.bf16.msra.mxu0 %v1776
      %3464 = vmatpush.bf16.msra.mxu0 %v1772
      %3465 = vmatmul.bf16.gmra.mxu0 %v974
      %v3466 = vpop.f32.mrf.mxu0
      %v3467 = vadd.f32 %v616, %v3466
      %v3468 = vpop.f32.mrf.mxu0
      %v3469 = vadd.f32 %v616, %v3468
      %3470 = vmatmul.bf16.gmra.mxu0 %v981
      %v3471 = vpop.f32.mrf.mxu0
      %v3472 = vadd.f32 %v616, %v3471
      %v3473 = vpop.f32.mrf.mxu0
      %v3474 = vadd.f32 %v616, %v3473
      %3475 = vmatmul.bf16.gmra.mxu0 %v988
      %v3476 = vpop.f32.mrf.mxu0
      %v3477 = vadd.f32 %v616, %v3476
      %v3478 = vpop.f32.mrf.mxu0
      %v3479 = vadd.f32 %v616, %v3478
      %3480 = vmatmul.bf16.gmra.mxu0 %v995
      %v3481 = vpop.f32.mrf.mxu0
      %v3482 = vadd.f32 %v616, %v3481
      %v3483 = vpop.f32.mrf.mxu0
      %v3484 = vadd.f32 %v616, %v3483
      %3485 = vmatmul.bf16.gmra.mxu0 %v1002
      %v3486 = vpop.f32.mrf.mxu0
      %v3487 = vadd.f32 %v616, %v3486
      %v3488 = vpop.f32.mrf.mxu0
      %v3489 = vadd.f32 %v616, %v3488
      %3490 = vmatmul.bf16.gmra.mxu0 %v1009
      %v3491 = vpop.f32.mrf.mxu0
      %v3492 = vadd.f32 %v616, %v3491
      %v3493 = vpop.f32.mrf.mxu0
      %v3494 = vadd.f32 %v616, %v3493
      %3495 = vmatmul.bf16.gmra.mxu0 %v1016
      %v3496 = vpop.f32.mrf.mxu0
      %v3497 = vadd.f32 %v616, %v3496
      %v3498 = vpop.f32.mrf.mxu0
      %v3499 = vadd.f32 %v616, %v3498
      %3500 = vmatmul.bf16.gmra.mxu0 %v1023
      %v3501 = vpop.f32.mrf.mxu0
      %v3502 = vadd.f32 %v616, %v3501
      %v3503 = vpop.f32.mrf.mxu0
      %v3504 = vadd.f32 %v616, %v3503
      %3505 = vmatmul.bf16.gmra.mxu0 %v1030
      %v3506 = vpop.f32.mrf.mxu0
      %v3507 = vadd.f32 %v616, %v3506
      %v3508 = vpop.f32.mrf.mxu0
      %v3509 = vadd.f32 %v616, %v3508
      %3510 = vmatmul.bf16.gmra.mxu0 %v1037
      %v3511 = vpop.f32.mrf.mxu0
      %v3512 = vadd.f32 %v616, %v3511
      %v3513 = vpop.f32.mrf.mxu0
      %v3514 = vadd.f32 %v616, %v3513
      %3515 = vmatmul.bf16.gmra.mxu0 %v1044
      %v3516 = vpop.f32.mrf.mxu0
      %v3517 = vadd.f32 %v616, %v3516
      %v3518 = vpop.f32.mrf.mxu0
      %v3519 = vadd.f32 %v616, %v3518
      %3520 = vmatmul.bf16.gmra.mxu0 %v1051
      %v3521 = vpop.f32.mrf.mxu0
      %v3522 = vadd.f32 %v616, %v3521
      %v3523 = vpop.f32.mrf.mxu0
      %v3524 = vadd.f32 %v616, %v3523
      %3525 = vmatmul.bf16.gmra.mxu0 %v1058
      %v3526 = vpop.f32.mrf.mxu0
      %v3527 = vadd.f32 %v616, %v3526
      %v3528 = vpop.f32.mrf.mxu0
      %v3529 = vadd.f32 %v616, %v3528
      %3530 = vmatmul.bf16.gmra.mxu0 %v1065
      %v3531 = vpop.f32.mrf.mxu0
      %v3532 = vadd.f32 %v616, %v3531
      %v3533 = vpop.f32.mrf.mxu0
      %v3534 = vadd.f32 %v616, %v3533
      %3535 = vmatmul.bf16.gmra.mxu0 %v1072
      %v3536 = vpop.f32.mrf.mxu0
      %v3537 = vadd.f32 %v616, %v3536
      %v3538 = vpop.f32.mrf.mxu0
      %v3539 = vadd.f32 %v616, %v3538
      %3540 = vmatmul.bf16.gmra.mxu0 %v1079
      %v3541 = vpop.f32.mrf.mxu0
      %v3542 = vadd.f32 %v616, %v3541
      %v3543 = vpop.f32.mrf.mxu0
      %v3544 = vadd.f32 %v616, %v3543
      %3545 = vdwg.mxu0
      %3546 = vmatpush.bf16.msra.mxu0 %v1832
      %3547 = vmatpush.bf16.msra.mxu0 %v1828
      %3548 = vmatpush.bf16.msra.mxu0 %v1824
      %3549 = vmatpush.bf16.msra.mxu0 %v1820
      %3550 = vmatpush.bf16.msra.mxu0 %v1816
      %3551 = vmatpush.bf16.msra.mxu0 %v1812
      %3552 = vmatpush.bf16.msra.mxu0 %v1808
      %3553 = vmatpush.bf16.msra.mxu0 %v1804
      %3554 = vmatmul.bf16.gmra.mxu0 %v975
      %v3555 = vpop.f32.mrf.mxu0
      %v3556 = vadd.f32 %v3467, %v3555
      %v3557 = vpop.f32.mrf.mxu0
      %v3558 = vadd.f32 %v3469, %v3557
      %3559 = vmatmul.bf16.gmra.mxu0 %v982
      %v3560 = vpop.f32.mrf.mxu0
      %v3561 = vadd.f32 %v3472, %v3560
      %v3562 = vpop.f32.mrf.mxu0
      %v3563 = vadd.f32 %v3474, %v3562
      %3564 = vmatmul.bf16.gmra.mxu0 %v989
      %v3565 = vpop.f32.mrf.mxu0
      %v3566 = vadd.f32 %v3477, %v3565
      %v3567 = vpop.f32.mrf.mxu0
      %v3568 = vadd.f32 %v3479, %v3567
      %3569 = vmatmul.bf16.gmra.mxu0 %v996
      %v3570 = vpop.f32.mrf.mxu0
      %v3571 = vadd.f32 %v3482, %v3570
      %v3572 = vpop.f32.mrf.mxu0
      %v3573 = vadd.f32 %v3484, %v3572
      %3574 = vmatmul.bf16.gmra.mxu0 %v1003
      %v3575 = vpop.f32.mrf.mxu0
      %v3576 = vadd.f32 %v3487, %v3575
      %v3577 = vpop.f32.mrf.mxu0
      %v3578 = vadd.f32 %v3489, %v3577
      %3579 = vmatmul.bf16.gmra.mxu0 %v1010
      %v3580 = vpop.f32.mrf.mxu0
      %v3581 = vadd.f32 %v3492, %v3580
      %v3582 = vpop.f32.mrf.mxu0
      %v3583 = vadd.f32 %v3494, %v3582
      %3584 = vmatmul.bf16.gmra.mxu0 %v1017
      %v3585 = vpop.f32.mrf.mxu0
      %v3586 = vadd.f32 %v3497, %v3585
      %v3587 = vpop.f32.mrf.mxu0
      %v3588 = vadd.f32 %v3499, %v3587
      %3589 = vmatmul.bf16.gmra.mxu0 %v1024
      %v3590 = vpop.f32.mrf.mxu0
      %v3591 = vadd.f32 %v3502, %v3590
      %v3592 = vpop.f32.mrf.mxu0
      %v3593 = vadd.f32 %v3504, %v3592
      %3594 = vmatmul.bf16.gmra.mxu0 %v1031
      %v3595 = vpop.f32.mrf.mxu0
      %v3596 = vadd.f32 %v3507, %v3595
      %v3597 = vpop.f32.mrf.mxu0
      %v3598 = vadd.f32 %v3509, %v3597
      %3599 = vmatmul.bf16.gmra.mxu0 %v1038
      %v3600 = vpop.f32.mrf.mxu0
      %v3601 = vadd.f32 %v3512, %v3600
      %v3602 = vpop.f32.mrf.mxu0
      %v3603 = vadd.f32 %v3514, %v3602
      %3604 = vmatmul.bf16.gmra.mxu0 %v1045
      %v3605 = vpop.f32.mrf.mxu0
      %v3606 = vadd.f32 %v3517, %v3605
      %v3607 = vpop.f32.mrf.mxu0
      %v3608 = vadd.f32 %v3519, %v3607
      %3609 = vmatmul.bf16.gmra.mxu0 %v1052
      %v3610 = vpop.f32.mrf.mxu0
      %v3611 = vadd.f32 %v3522, %v3610
      %v3612 = vpop.f32.mrf.mxu0
      %v3613 = vadd.f32 %v3524, %v3612
      %3614 = vmatmul.bf16.gmra.mxu0 %v1059
      %v3615 = vpop.f32.mrf.mxu0
      %v3616 = vadd.f32 %v3527, %v3615
      %v3617 = vpop.f32.mrf.mxu0
      %v3618 = vadd.f32 %v3529, %v3617
      %3619 = vmatmul.bf16.gmra.mxu0 %v1066
      %v3620 = vpop.f32.mrf.mxu0
      %v3621 = vadd.f32 %v3532, %v3620
      %v3622 = vpop.f32.mrf.mxu0
      %v3623 = vadd.f32 %v3534, %v3622
      %3624 = vmatmul.bf16.gmra.mxu0 %v1073
      %v3625 = vpop.f32.mrf.mxu0
      %v3626 = vadd.f32 %v3537, %v3625
      %v3627 = vpop.f32.mrf.mxu0
      %v3628 = vadd.f32 %v3539, %v3627
      %3629 = vmatmul.bf16.gmra.mxu0 %v1080
      %v3630 = vpop.f32.mrf.mxu0
      %v3631 = vadd.f32 %v3542, %v3630
      %v3632 = vpop.f32.mrf.mxu0
      %v3633 = vadd.f32 %v3544, %v3632
      %3634 = vdwg.mxu0
      %3635 = vmatpush.bf16.msra.mxu0 %v1864
      %3636 = vmatpush.bf16.msra.mxu0 %v1860
      %3637 = vmatpush.bf16.msra.mxu0 %v1856
      %3638 = vmatpush.bf16.msra.mxu0 %v1852
      %3639 = vmatpush.bf16.msra.mxu0 %v1848
      %3640 = vmatpush.bf16.msra.mxu0 %v1844
      %3641 = vmatpush.bf16.msra.mxu0 %v1840
      %3642 = vmatpush.bf16.msra.mxu0 %v1836
      %3643 = vmatmul.bf16.gmra.mxu0 %v976
      %v3644 = vpop.f32.mrf.mxu0
      %v3645 = vadd.f32 %v3556, %v3644
      %v3646 = vpop.f32.mrf.mxu0
      %v3647 = vadd.f32 %v3558, %v3646
      %3648 = vmatmul.bf16.gmra.mxu0 %v983
      %v3649 = vpop.f32.mrf.mxu0
      %v3650 = vadd.f32 %v3561, %v3649
      %v3651 = vpop.f32.mrf.mxu0
      %v3652 = vadd.f32 %v3563, %v3651
      %3653 = vmatmul.bf16.gmra.mxu0 %v990
      %v3654 = vpop.f32.mrf.mxu0
      %v3655 = vadd.f32 %v3566, %v3654
      %v3656 = vpop.f32.mrf.mxu0
      %v3657 = vadd.f32 %v3568, %v3656
      %3658 = vmatmul.bf16.gmra.mxu0 %v997
      %v3659 = vpop.f32.mrf.mxu0
      %v3660 = vadd.f32 %v3571, %v3659
      %v3661 = vpop.f32.mrf.mxu0
      %v3662 = vadd.f32 %v3573, %v3661
      %3663 = vmatmul.bf16.gmra.mxu0 %v1004
      %v3664 = vpop.f32.mrf.mxu0
      %v3665 = vadd.f32 %v3576, %v3664
      %v3666 = vpop.f32.mrf.mxu0
      %v3667 = vadd.f32 %v3578, %v3666
      %3668 = vmatmul.bf16.gmra.mxu0 %v1011
      %v3669 = vpop.f32.mrf.mxu0
      %v3670 = vadd.f32 %v3581, %v3669
      %v3671 = vpop.f32.mrf.mxu0
      %v3672 = vadd.f32 %v3583, %v3671
      %3673 = vmatmul.bf16.gmra.mxu0 %v1018
      %v3674 = vpop.f32.mrf.mxu0
      %v3675 = vadd.f32 %v3586, %v3674
      %v3676 = vpop.f32.mrf.mxu0
      %v3677 = vadd.f32 %v3588, %v3676
      %3678 = vmatmul.bf16.gmra.mxu0 %v1025
      %v3679 = vpop.f32.mrf.mxu0
      %v3680 = vadd.f32 %v3591, %v3679
      %v3681 = vpop.f32.mrf.mxu0
      %v3682 = vadd.f32 %v3593, %v3681
      %3683 = vmatmul.bf16.gmra.mxu0 %v1032
      %v3684 = vpop.f32.mrf.mxu0
      %v3685 = vadd.f32 %v3596, %v3684
      %v3686 = vpop.f32.mrf.mxu0
      %v3687 = vadd.f32 %v3598, %v3686
      %3688 = vmatmul.bf16.gmra.mxu0 %v1039
      %v3689 = vpop.f32.mrf.mxu0
      %v3690 = vadd.f32 %v3601, %v3689
      %v3691 = vpop.f32.mrf.mxu0
      %v3692 = vadd.f32 %v3603, %v3691
      %3693 = vmatmul.bf16.gmra.mxu0 %v1046
      %v3694 = vpop.f32.mrf.mxu0
      %v3695 = vadd.f32 %v3606, %v3694
      %v3696 = vpop.f32.mrf.mxu0
      %v3697 = vadd.f32 %v3608, %v3696
      %3698 = vmatmul.bf16.gmra.mxu0 %v1053
      %v3699 = vpop.f32.mrf.mxu0
      %v3700 = vadd.f32 %v3611, %v3699
      %v3701 = vpop.f32.mrf.mxu0
      %v3702 = vadd.f32 %v3613, %v3701
      %3703 = vmatmul.bf16.gmra.mxu0 %v1060
      %v3704 = vpop.f32.mrf.mxu0
      %v3705 = vadd.f32 %v3616, %v3704
      %v3706 = vpop.f32.mrf.mxu0
      %v3707 = vadd.f32 %v3618, %v3706
      %3708 = vmatmul.bf16.gmra.mxu0 %v1067
      %v3709 = vpop.f32.mrf.mxu0
      %v3710 = vadd.f32 %v3621, %v3709
      %v3711 = vpop.f32.mrf.mxu0
      %v3712 = vadd.f32 %v3623, %v3711
      %3713 = vmatmul.bf16.gmra.mxu0 %v1074
      %v3714 = vpop.f32.mrf.mxu0
      %v3715 = vadd.f32 %v3626, %v3714
      %v3716 = vpop.f32.mrf.mxu0
      %v3717 = vadd.f32 %v3628, %v3716
      %3718 = vmatmul.bf16.gmra.mxu0 %v1081
      %v3719 = vpop.f32.mrf.mxu0
      %v3720 = vadd.f32 %v3631, %v3719
      %v3721 = vpop.f32.mrf.mxu0
      %v3722 = vadd.f32 %v3633, %v3721
      %3723 = vdwg.mxu0
      %3724 = vmatpush.bf16.msra.mxu0 %v1896
      %3725 = vmatpush.bf16.msra.mxu0 %v1892
      %3726 = vmatpush.bf16.msra.mxu0 %v1888
      %3727 = vmatpush.bf16.msra.mxu0 %v1884
      %3728 = vmatpush.bf16.msra.mxu0 %v1880
      %3729 = vmatpush.bf16.msra.mxu0 %v1876
      %3730 = vmatpush.bf16.msra.mxu0 %v1872
      %3731 = vmatpush.bf16.msra.mxu0 %v1868
      %3732 = vmatmul.bf16.gmra.mxu0 %v977
      %v3733 = vpop.f32.mrf.mxu0
      %v3734 = vadd.f32 %v3645, %v3733
      %v3735 = vpop.f32.mrf.mxu0
      %v3736 = vadd.f32 %v3647, %v3735
      %3737 = vmatmul.bf16.gmra.mxu0 %v984
      %v3738 = vpop.f32.mrf.mxu0
      %v3739 = vadd.f32 %v3650, %v3738
      %v3740 = vpop.f32.mrf.mxu0
      %v3741 = vadd.f32 %v3652, %v3740
      %3742 = vmatmul.bf16.gmra.mxu0 %v991
      %v3743 = vpop.f32.mrf.mxu0
      %v3744 = vadd.f32 %v3655, %v3743
      %v3745 = vpop.f32.mrf.mxu0
      %v3746 = vadd.f32 %v3657, %v3745
      %3747 = vmatmul.bf16.gmra.mxu0 %v998
      %v3748 = vpop.f32.mrf.mxu0
      %v3749 = vadd.f32 %v3660, %v3748
      %v3750 = vpop.f32.mrf.mxu0
      %v3751 = vadd.f32 %v3662, %v3750
      %3752 = vmatmul.bf16.gmra.mxu0 %v1005
      %v3753 = vpop.f32.mrf.mxu0
      %v3754 = vadd.f32 %v3665, %v3753
      %v3755 = vpop.f32.mrf.mxu0
      %v3756 = vadd.f32 %v3667, %v3755
      %3757 = vmatmul.bf16.gmra.mxu0 %v1012
      %v3758 = vpop.f32.mrf.mxu0
      %v3759 = vadd.f32 %v3670, %v3758
      %v3760 = vpop.f32.mrf.mxu0
      %v3761 = vadd.f32 %v3672, %v3760
      %3762 = vmatmul.bf16.gmra.mxu0 %v1019
      %v3763 = vpop.f32.mrf.mxu0
      %v3764 = vadd.f32 %v3675, %v3763
      %v3765 = vpop.f32.mrf.mxu0
      %v3766 = vadd.f32 %v3677, %v3765
      %3767 = vmatmul.bf16.gmra.mxu0 %v1026
      %v3768 = vpop.f32.mrf.mxu0
      %v3769 = vadd.f32 %v3680, %v3768
      %v3770 = vpop.f32.mrf.mxu0
      %v3771 = vadd.f32 %v3682, %v3770
      %3772 = vmatmul.bf16.gmra.mxu0 %v1033
      %v3773 = vpop.f32.mrf.mxu0
      %v3774 = vadd.f32 %v3685, %v3773
      %v3775 = vpop.f32.mrf.mxu0
      %v3776 = vadd.f32 %v3687, %v3775
      %3777 = vmatmul.bf16.gmra.mxu0 %v1040
      %v3778 = vpop.f32.mrf.mxu0
      %v3779 = vadd.f32 %v3690, %v3778
      %v3780 = vpop.f32.mrf.mxu0
      %v3781 = vadd.f32 %v3692, %v3780
      %3782 = vmatmul.bf16.gmra.mxu0 %v1047
      %v3783 = vpop.f32.mrf.mxu0
      %v3784 = vadd.f32 %v3695, %v3783
      %v3785 = vpop.f32.mrf.mxu0
      %v3786 = vadd.f32 %v3697, %v3785
      %3787 = vmatmul.bf16.gmra.mxu0 %v1054
      %v3788 = vpop.f32.mrf.mxu0
      %v3789 = vadd.f32 %v3700, %v3788
      %v3790 = vpop.f32.mrf.mxu0
      %v3791 = vadd.f32 %v3702, %v3790
      %3792 = vmatmul.bf16.gmra.mxu0 %v1061
      %v3793 = vpop.f32.mrf.mxu0
      %v3794 = vadd.f32 %v3705, %v3793
      %v3795 = vpop.f32.mrf.mxu0
      %v3796 = vadd.f32 %v3707, %v3795
      %3797 = vmatmul.bf16.gmra.mxu0 %v1068
      %v3798 = vpop.f32.mrf.mxu0
      %v3799 = vadd.f32 %v3710, %v3798
      %v3800 = vpop.f32.mrf.mxu0
      %v3801 = vadd.f32 %v3712, %v3800
      %3802 = vmatmul.bf16.gmra.mxu0 %v1075
      %v3803 = vpop.f32.mrf.mxu0
      %v3804 = vadd.f32 %v3715, %v3803
      %v3805 = vpop.f32.mrf.mxu0
      %v3806 = vadd.f32 %v3717, %v3805
      %3807 = vmatmul.bf16.gmra.mxu0 %v1082
      %v3808 = vpop.f32.mrf.mxu0
      %v3809 = vadd.f32 %v3720, %v3808
      %v3810 = vpop.f32.mrf.mxu0
      %v3811 = vadd.f32 %v3722, %v3810
      %3812 = vdwg.mxu0
      %3813 = vmatpush.bf16.msra.mxu0 %v1928
      %3814 = vmatpush.bf16.msra.mxu0 %v1924
      %3815 = vmatpush.bf16.msra.mxu0 %v1920
      %3816 = vmatpush.bf16.msra.mxu0 %v1916
      %3817 = vmatpush.bf16.msra.mxu0 %v1912
      %3818 = vmatpush.bf16.msra.mxu0 %v1908
      %3819 = vmatpush.bf16.msra.mxu0 %v1904
      %3820 = vmatpush.bf16.msra.mxu0 %v1900
      %3821 = vmatmul.bf16.gmra.mxu0 %v978
      %v3822 = vpop.f32.mrf.mxu0
      %v3823 = vadd.f32 %v3734, %v3822
      %v3824 = vpop.f32.mrf.mxu0
      %v3825 = vadd.f32 %v3736, %v3824
      %3826 = vmatmul.bf16.gmra.mxu0 %v985
      %v3827 = vpop.f32.mrf.mxu0
      %v3828 = vadd.f32 %v3739, %v3827
      %v3829 = vpop.f32.mrf.mxu0
      %v3830 = vadd.f32 %v3741, %v3829
      %3831 = vmatmul.bf16.gmra.mxu0 %v992
      %v3832 = vpop.f32.mrf.mxu0
      %v3833 = vadd.f32 %v3744, %v3832
      %v3834 = vpop.f32.mrf.mxu0
      %v3835 = vadd.f32 %v3746, %v3834
      %3836 = vmatmul.bf16.gmra.mxu0 %v999
      %v3837 = vpop.f32.mrf.mxu0
      %v3838 = vadd.f32 %v3749, %v3837
      %v3839 = vpop.f32.mrf.mxu0
      %v3840 = vadd.f32 %v3751, %v3839
      %3841 = vmatmul.bf16.gmra.mxu0 %v1006
      %v3842 = vpop.f32.mrf.mxu0
      %v3843 = vadd.f32 %v3754, %v3842
      %v3844 = vpop.f32.mrf.mxu0
      %v3845 = vadd.f32 %v3756, %v3844
      %3846 = vmatmul.bf16.gmra.mxu0 %v1013
      %v3847 = vpop.f32.mrf.mxu0
      %v3848 = vadd.f32 %v3759, %v3847
      %v3849 = vpop.f32.mrf.mxu0
      %v3850 = vadd.f32 %v3761, %v3849
      %3851 = vmatmul.bf16.gmra.mxu0 %v1020
      %v3852 = vpop.f32.mrf.mxu0
      %v3853 = vadd.f32 %v3764, %v3852
      %v3854 = vpop.f32.mrf.mxu0
      %v3855 = vadd.f32 %v3766, %v3854
      %3856 = vmatmul.bf16.gmra.mxu0 %v1027
      %v3857 = vpop.f32.mrf.mxu0
      %v3858 = vadd.f32 %v3769, %v3857
      %v3859 = vpop.f32.mrf.mxu0
      %v3860 = vadd.f32 %v3771, %v3859
      %3861 = vmatmul.bf16.gmra.mxu0 %v1034
      %v3862 = vpop.f32.mrf.mxu0
      %v3863 = vadd.f32 %v3774, %v3862
      %v3864 = vpop.f32.mrf.mxu0
      %v3865 = vadd.f32 %v3776, %v3864
      %3866 = vmatmul.bf16.gmra.mxu0 %v1041
      %v3867 = vpop.f32.mrf.mxu0
      %v3868 = vadd.f32 %v3779, %v3867
      %v3869 = vpop.f32.mrf.mxu0
      %v3870 = vadd.f32 %v3781, %v3869
      %3871 = vmatmul.bf16.gmra.mxu0 %v1048
      %v3872 = vpop.f32.mrf.mxu0
      %v3873 = vadd.f32 %v3784, %v3872
      %v3874 = vpop.f32.mrf.mxu0
      %v3875 = vadd.f32 %v3786, %v3874
      %3876 = vmatmul.bf16.gmra.mxu0 %v1055
      %v3877 = vpop.f32.mrf.mxu0
      %v3878 = vadd.f32 %v3789, %v3877
      %v3879 = vpop.f32.mrf.mxu0
      %v3880 = vadd.f32 %v3791, %v3879
      %3881 = vmatmul.bf16.gmra.mxu0 %v1062
      %v3882 = vpop.f32.mrf.mxu0
      %v3883 = vadd.f32 %v3794, %v3882
      %v3884 = vpop.f32.mrf.mxu0
      %v3885 = vadd.f32 %v3796, %v3884
      %3886 = vmatmul.bf16.gmra.mxu0 %v1069
      %v3887 = vpop.f32.mrf.mxu0
      %v3888 = vadd.f32 %v3799, %v3887
      %v3889 = vpop.f32.mrf.mxu0
      %v3890 = vadd.f32 %v3801, %v3889
      %3891 = vmatmul.bf16.gmra.mxu0 %v1076
      %v3892 = vpop.f32.mrf.mxu0
      %v3893 = vadd.f32 %v3804, %v3892
      %v3894 = vpop.f32.mrf.mxu0
      %v3895 = vadd.f32 %v3806, %v3894
      %3896 = vmatmul.bf16.gmra.mxu0 %v1083
      %v3897 = vpop.f32.mrf.mxu0
      %v3898 = vadd.f32 %v3809, %v3897
      %v3899 = vpop.f32.mrf.mxu0
      %v3900 = vadd.f32 %v3811, %v3899
      %3901 = vdwg.mxu0
      %3902 = vmatpush.bf16.msra.mxu0 %v1960
      %3903 = vmatpush.bf16.msra.mxu0 %v1956
      %3904 = vmatpush.bf16.msra.mxu0 %v1952
      %3905 = vmatpush.bf16.msra.mxu0 %v1948
      %3906 = vmatpush.bf16.msra.mxu0 %v1944
      %3907 = vmatpush.bf16.msra.mxu0 %v1940
      %3908 = vmatpush.bf16.msra.mxu0 %v1936
      %3909 = vmatpush.bf16.msra.mxu0 %v1932
      %3910 = vmatmul.bf16.gmra.mxu0 %v979
      %v3911 = vpop.f32.mrf.mxu0
      %v3912 = vadd.f32 %v3823, %v3911
      %v3913 = vpop.f32.mrf.mxu0
      %v3914 = vadd.f32 %v3825, %v3913
      %3915 = vmatmul.bf16.gmra.mxu0 %v986
      %v3916 = vpop.f32.mrf.mxu0
      %v3917 = vadd.f32 %v3828, %v3916
      %v3918 = vpop.f32.mrf.mxu0
      %v3919 = vadd.f32 %v3830, %v3918
      %3920 = vmatmul.bf16.gmra.mxu0 %v993
      %v3921 = vpop.f32.mrf.mxu0
      %v3922 = vadd.f32 %v3833, %v3921
      %v3923 = vpop.f32.mrf.mxu0
      %v3924 = vadd.f32 %v3835, %v3923
      %3925 = vmatmul.bf16.gmra.mxu0 %v1000
      %v3926 = vpop.f32.mrf.mxu0
      %v3927 = vadd.f32 %v3838, %v3926
      %v3928 = vpop.f32.mrf.mxu0
      %v3929 = vadd.f32 %v3840, %v3928
      %3930 = vmatmul.bf16.gmra.mxu0 %v1007
      %v3931 = vpop.f32.mrf.mxu0
      %v3932 = vadd.f32 %v3843, %v3931
      %v3933 = vpop.f32.mrf.mxu0
      %v3934 = vadd.f32 %v3845, %v3933
      %3935 = vmatmul.bf16.gmra.mxu0 %v1014
      %v3936 = vpop.f32.mrf.mxu0
      %v3937 = vadd.f32 %v3848, %v3936
      %v3938 = vpop.f32.mrf.mxu0
      %v3939 = vadd.f32 %v3850, %v3938
      %3940 = vmatmul.bf16.gmra.mxu0 %v1021
      %v3941 = vpop.f32.mrf.mxu0
      %v3942 = vadd.f32 %v3853, %v3941
      %v3943 = vpop.f32.mrf.mxu0
      %v3944 = vadd.f32 %v3855, %v3943
      %3945 = vmatmul.bf16.gmra.mxu0 %v1028
      %v3946 = vpop.f32.mrf.mxu0
      %v3947 = vadd.f32 %v3858, %v3946
      %v3948 = vpop.f32.mrf.mxu0
      %v3949 = vadd.f32 %v3860, %v3948
      %3950 = vmatmul.bf16.gmra.mxu0 %v1035
      %v3951 = vpop.f32.mrf.mxu0
      %v3952 = vadd.f32 %v3863, %v3951
      %v3953 = vpop.f32.mrf.mxu0
      %v3954 = vadd.f32 %v3865, %v3953
      %3955 = vmatmul.bf16.gmra.mxu0 %v1042
      %v3956 = vpop.f32.mrf.mxu0
      %v3957 = vadd.f32 %v3868, %v3956
      %v3958 = vpop.f32.mrf.mxu0
      %v3959 = vadd.f32 %v3870, %v3958
      %3960 = vmatmul.bf16.gmra.mxu0 %v1049
      %v3961 = vpop.f32.mrf.mxu0
      %v3962 = vadd.f32 %v3873, %v3961
      %v3963 = vpop.f32.mrf.mxu0
      %v3964 = vadd.f32 %v3875, %v3963
      %3965 = vmatmul.bf16.gmra.mxu0 %v1056
      %v3966 = vpop.f32.mrf.mxu0
      %v3967 = vadd.f32 %v3878, %v3966
      %v3968 = vpop.f32.mrf.mxu0
      %v3969 = vadd.f32 %v3880, %v3968
      %3970 = vmatmul.bf16.gmra.mxu0 %v1063
      %v3971 = vpop.f32.mrf.mxu0
      %v3972 = vadd.f32 %v3883, %v3971
      %v3973 = vpop.f32.mrf.mxu0
      %v3974 = vadd.f32 %v3885, %v3973
      %3975 = vmatmul.bf16.gmra.mxu0 %v1070
      %v3976 = vpop.f32.mrf.mxu0
      %v3977 = vadd.f32 %v3888, %v3976
      %v3978 = vpop.f32.mrf.mxu0
      %v3979 = vadd.f32 %v3890, %v3978
      %3980 = vmatmul.bf16.gmra.mxu0 %v1077
      %v3981 = vpop.f32.mrf.mxu0
      %v3982 = vadd.f32 %v3893, %v3981
      %v3983 = vpop.f32.mrf.mxu0
      %v3984 = vadd.f32 %v3895, %v3983
      %3985 = vmatmul.bf16.gmra.mxu0 %v1084
      %v3986 = vpop.f32.mrf.mxu0
      %v3987 = vadd.f32 %v3898, %v3986
      %v3988 = vpop.f32.mrf.mxu0
      %v3989 = vadd.f32 %v3900, %v3988
      %3990 = vdwg.mxu0
      %3991 = vmatpush.bf16.msra.mxu0 0
      %3992 = vmatpush.bf16.msra.mxu0 0
      %3993 = vmatpush.bf16.msra.mxu0 0
      %3994 = vmatpush.bf16.msra.mxu0 0
      %3995 = vmatpush.bf16.msra.mxu0 0
      %3996 = vmatpush.bf16.msra.mxu0 0
      %3997 = vmatpush.bf16.msra.mxu0 0
      %3998 = vmatpush.bf16.msra.mxu0 %v1964
      %3999 = vmatmul.bf16.gmra.mxu0 %v2164
      %v4000 = vpop.f32.mrf.mxu0
      %v4001 = vadd.f32 %v3912, %v4000
      %v4002 = vpop.f32.mrf.mxu0
      %v4003 = vadd.f32 %v3914, %v4002
      %4004 = vmatmul.bf16.gmra.mxu0 %v2167
      %v4005 = vpop.f32.mrf.mxu0
      %v4006 = vadd.f32 %v3917, %v4005
      %v4007 = vpop.f32.mrf.mxu0
      %v4008 = vadd.f32 %v3919, %v4007
      %4009 = vmatmul.bf16.gmra.mxu0 %v2170
      %v4010 = vpop.f32.mrf.mxu0
      %v4011 = vadd.f32 %v3922, %v4010
      %v4012 = vpop.f32.mrf.mxu0
      %v4013 = vadd.f32 %v3924, %v4012
      %4014 = vmatmul.bf16.gmra.mxu0 %v2173
      %v4015 = vpop.f32.mrf.mxu0
      %v4016 = vadd.f32 %v3927, %v4015
      %v4017 = vpop.f32.mrf.mxu0
      %v4018 = vadd.f32 %v3929, %v4017
      %4019 = vmatmul.bf16.gmra.mxu0 %v2176
      %v4020 = vpop.f32.mrf.mxu0
      %v4021 = vadd.f32 %v3932, %v4020
      %v4022 = vpop.f32.mrf.mxu0
      %v4023 = vadd.f32 %v3934, %v4022
      %4024 = vmatmul.bf16.gmra.mxu0 %v2179
      %v4025 = vpop.f32.mrf.mxu0
      %v4026 = vadd.f32 %v3937, %v4025
      %v4027 = vpop.f32.mrf.mxu0
      %v4028 = vadd.f32 %v3939, %v4027
      %4029 = vmatmul.bf16.gmra.mxu0 %v2182
      %v4030 = vpop.f32.mrf.mxu0
      %v4031 = vadd.f32 %v3942, %v4030
      %v4032 = vpop.f32.mrf.mxu0
      %v4033 = vadd.f32 %v3944, %v4032
      %4034 = vmatmul.bf16.gmra.mxu0 %v2185
      %v4035 = vpop.f32.mrf.mxu0
      %v4036 = vadd.f32 %v3947, %v4035
      %v4037 = vpop.f32.mrf.mxu0
      %v4038 = vadd.f32 %v3949, %v4037
      %4039 = vmatmul.bf16.gmra.mxu0 %v2188
      %v4040 = vpop.f32.mrf.mxu0
      %v4041 = vadd.f32 %v3952, %v4040
      %v4042 = vpop.f32.mrf.mxu0
      %v4043 = vadd.f32 %v3954, %v4042
      %4044 = vmatmul.bf16.gmra.mxu0 %v2191
      %v4045 = vpop.f32.mrf.mxu0
      %v4046 = vadd.f32 %v3957, %v4045
      %v4047 = vpop.f32.mrf.mxu0
      %v4048 = vadd.f32 %v3959, %v4047
      %4049 = vmatmul.bf16.gmra.mxu0 %v2194
      %v4050 = vpop.f32.mrf.mxu0
      %v4051 = vadd.f32 %v3962, %v4050
      %v4052 = vpop.f32.mrf.mxu0
      %v4053 = vadd.f32 %v3964, %v4052
      %4054 = vmatmul.bf16.gmra.mxu0 %v2197
      %v4055 = vpop.f32.mrf.mxu0
      %v4056 = vadd.f32 %v3967, %v4055
      %v4057 = vpop.f32.mrf.mxu0
      %v4058 = vadd.f32 %v3969, %v4057
      %4059 = vmatmul.bf16.gmra.mxu0 %v2200
      %v4060 = vpop.f32.mrf.mxu0
      %v4061 = vadd.f32 %v3972, %v4060
      %v4062 = vpop.f32.mrf.mxu0
      %v4063 = vadd.f32 %v3974, %v4062
      %4064 = vmatmul.bf16.gmra.mxu0 %v2203
      %v4065 = vpop.f32.mrf.mxu0
      %v4066 = vadd.f32 %v3977, %v4065
      %v4067 = vpop.f32.mrf.mxu0
      %v4068 = vadd.f32 %v3979, %v4067
      %4069 = vmatmul.bf16.gmra.mxu0 %v2206
      %v4070 = vpop.f32.mrf.mxu0
      %v4071 = vadd.f32 %v3982, %v4070
      %v4072 = vpop.f32.mrf.mxu0
      %v4073 = vadd.f32 %v3984, %v4072
      %4074 = vmatmul.bf16.gmra.mxu0 %v2209
      %v4075 = vpop.f32.mrf.mxu0
      %v4076 = vadd.f32 %v3987, %v4075
      %v4077 = vpop.f32.mrf.mxu0
      %v4078 = vadd.f32 %v3989, %v4077
      %4079 = vdwg.mxu0
      %4080 = vmatpush.bf16.msra.mxu0 %v1801
      %4081 = vmatpush.bf16.msra.mxu0 %v1797
      %4082 = vmatpush.bf16.msra.mxu0 %v1793
      %4083 = vmatpush.bf16.msra.mxu0 %v1789
      %4084 = vmatpush.bf16.msra.mxu0 %v1785
      %4085 = vmatpush.bf16.msra.mxu0 %v1781
      %4086 = vmatpush.bf16.msra.mxu0 %v1777
      %4087 = vmatpush.bf16.msra.mxu0 %v1773
      %4088 = vmatmul.bf16.gmra.mxu0 %v974
      %v4089 = vpop.f32.mrf.mxu0
      %v4090 = vadd.f32 %v617, %v4089
      %v4091 = vpop.f32.mrf.mxu0
      %v4092 = vadd.f32 %v617, %v4091
      %4093 = vmatmul.bf16.gmra.mxu0 %v981
      %v4094 = vpop.f32.mrf.mxu0
      %v4095 = vadd.f32 %v617, %v4094
      %v4096 = vpop.f32.mrf.mxu0
      %v4097 = vadd.f32 %v617, %v4096
      %4098 = vmatmul.bf16.gmra.mxu0 %v988
      %v4099 = vpop.f32.mrf.mxu0
      %v4100 = vadd.f32 %v617, %v4099
      %v4101 = vpop.f32.mrf.mxu0
      %v4102 = vadd.f32 %v617, %v4101
      %4103 = vmatmul.bf16.gmra.mxu0 %v995
      %v4104 = vpop.f32.mrf.mxu0
      %v4105 = vadd.f32 %v617, %v4104
      %v4106 = vpop.f32.mrf.mxu0
      %v4107 = vadd.f32 %v617, %v4106
      %4108 = vmatmul.bf16.gmra.mxu0 %v1002
      %v4109 = vpop.f32.mrf.mxu0
      %v4110 = vadd.f32 %v617, %v4109
      %v4111 = vpop.f32.mrf.mxu0
      %v4112 = vadd.f32 %v617, %v4111
      %4113 = vmatmul.bf16.gmra.mxu0 %v1009
      %v4114 = vpop.f32.mrf.mxu0
      %v4115 = vadd.f32 %v617, %v4114
      %v4116 = vpop.f32.mrf.mxu0
      %v4117 = vadd.f32 %v617, %v4116
      %4118 = vmatmul.bf16.gmra.mxu0 %v1016
      %v4119 = vpop.f32.mrf.mxu0
      %v4120 = vadd.f32 %v617, %v4119
      %v4121 = vpop.f32.mrf.mxu0
      %v4122 = vadd.f32 %v617, %v4121
      %4123 = vmatmul.bf16.gmra.mxu0 %v1023
      %v4124 = vpop.f32.mrf.mxu0
      %v4125 = vadd.f32 %v617, %v4124
      %v4126 = vpop.f32.mrf.mxu0
      %v4127 = vadd.f32 %v617, %v4126
      %4128 = vmatmul.bf16.gmra.mxu0 %v1030
      %v4129 = vpop.f32.mrf.mxu0
      %v4130 = vadd.f32 %v617, %v4129
      %v4131 = vpop.f32.mrf.mxu0
      %v4132 = vadd.f32 %v617, %v4131
      %4133 = vmatmul.bf16.gmra.mxu0 %v1037
      %v4134 = vpop.f32.mrf.mxu0
      %v4135 = vadd.f32 %v617, %v4134
      %v4136 = vpop.f32.mrf.mxu0
      %v4137 = vadd.f32 %v617, %v4136
      %4138 = vmatmul.bf16.gmra.mxu0 %v1044
      %v4139 = vpop.f32.mrf.mxu0
      %v4140 = vadd.f32 %v617, %v4139
      %v4141 = vpop.f32.mrf.mxu0
      %v4142 = vadd.f32 %v617, %v4141
      %4143 = vmatmul.bf16.gmra.mxu0 %v1051
      %v4144 = vpop.f32.mrf.mxu0
      %v4145 = vadd.f32 %v617, %v4144
      %v4146 = vpop.f32.mrf.mxu0
      %v4147 = vadd.f32 %v617, %v4146
      %4148 = vmatmul.bf16.gmra.mxu0 %v1058
      %v4149 = vpop.f32.mrf.mxu0
      %v4150 = vadd.f32 %v617, %v4149
      %v4151 = vpop.f32.mrf.mxu0
      %v4152 = vadd.f32 %v617, %v4151
      %4153 = vmatmul.bf16.gmra.mxu0 %v1065
      %v4154 = vpop.f32.mrf.mxu0
      %v4155 = vadd.f32 %v617, %v4154
      %v4156 = vpop.f32.mrf.mxu0
      %v4157 = vadd.f32 %v617, %v4156
      %4158 = vmatmul.bf16.gmra.mxu0 %v1072
      %v4159 = vpop.f32.mrf.mxu0
      %v4160 = vadd.f32 %v617, %v4159
      %v4161 = vpop.f32.mrf.mxu0
      %v4162 = vadd.f32 %v617, %v4161
      %4163 = vmatmul.bf16.gmra.mxu0 %v1079
      %v4164 = vpop.f32.mrf.mxu0
      %v4165 = vadd.f32 %v617, %v4164
      %v4166 = vpop.f32.mrf.mxu0
      %v4167 = vadd.f32 %v617, %v4166
      %4168 = vdwg.mxu0
      %4169 = vmatpush.bf16.msra.mxu0 %v1833
      %4170 = vmatpush.bf16.msra.mxu0 %v1829
      %4171 = vmatpush.bf16.msra.mxu0 %v1825
      %4172 = vmatpush.bf16.msra.mxu0 %v1821
      %4173 = vmatpush.bf16.msra.mxu0 %v1817
      %4174 = vmatpush.bf16.msra.mxu0 %v1813
      %4175 = vmatpush.bf16.msra.mxu0 %v1809
      %4176 = vmatpush.bf16.msra.mxu0 %v1805
      %4177 = vmatmul.bf16.gmra.mxu0 %v975
      %v4178 = vpop.f32.mrf.mxu0
      %v4179 = vadd.f32 %v4090, %v4178
      %v4180 = vpop.f32.mrf.mxu0
      %v4181 = vadd.f32 %v4092, %v4180
      %4182 = vmatmul.bf16.gmra.mxu0 %v982
      %v4183 = vpop.f32.mrf.mxu0
      %v4184 = vadd.f32 %v4095, %v4183
      %v4185 = vpop.f32.mrf.mxu0
      %v4186 = vadd.f32 %v4097, %v4185
      %4187 = vmatmul.bf16.gmra.mxu0 %v989
      %v4188 = vpop.f32.mrf.mxu0
      %v4189 = vadd.f32 %v4100, %v4188
      %v4190 = vpop.f32.mrf.mxu0
      %v4191 = vadd.f32 %v4102, %v4190
      %4192 = vmatmul.bf16.gmra.mxu0 %v996
      %v4193 = vpop.f32.mrf.mxu0
      %v4194 = vadd.f32 %v4105, %v4193
      %v4195 = vpop.f32.mrf.mxu0
      %v4196 = vadd.f32 %v4107, %v4195
      %4197 = vmatmul.bf16.gmra.mxu0 %v1003
      %v4198 = vpop.f32.mrf.mxu0
      %v4199 = vadd.f32 %v4110, %v4198
      %v4200 = vpop.f32.mrf.mxu0
      %v4201 = vadd.f32 %v4112, %v4200
      %4202 = vmatmul.bf16.gmra.mxu0 %v1010
      %v4203 = vpop.f32.mrf.mxu0
      %v4204 = vadd.f32 %v4115, %v4203
      %v4205 = vpop.f32.mrf.mxu0
      %v4206 = vadd.f32 %v4117, %v4205
      %4207 = vmatmul.bf16.gmra.mxu0 %v1017
      %v4208 = vpop.f32.mrf.mxu0
      %v4209 = vadd.f32 %v4120, %v4208
      %v4210 = vpop.f32.mrf.mxu0
      %v4211 = vadd.f32 %v4122, %v4210
      %4212 = vmatmul.bf16.gmra.mxu0 %v1024
      %v4213 = vpop.f32.mrf.mxu0
      %v4214 = vadd.f32 %v4125, %v4213
      %v4215 = vpop.f32.mrf.mxu0
      %v4216 = vadd.f32 %v4127, %v4215
      %4217 = vmatmul.bf16.gmra.mxu0 %v1031
      %v4218 = vpop.f32.mrf.mxu0
      %v4219 = vadd.f32 %v4130, %v4218
      %v4220 = vpop.f32.mrf.mxu0
      %v4221 = vadd.f32 %v4132, %v4220
      %4222 = vmatmul.bf16.gmra.mxu0 %v1038
      %v4223 = vpop.f32.mrf.mxu0
      %v4224 = vadd.f32 %v4135, %v4223
      %v4225 = vpop.f32.mrf.mxu0
      %v4226 = vadd.f32 %v4137, %v4225
      %4227 = vmatmul.bf16.gmra.mxu0 %v1045
      %v4228 = vpop.f32.mrf.mxu0
      %v4229 = vadd.f32 %v4140, %v4228
      %v4230 = vpop.f32.mrf.mxu0
      %v4231 = vadd.f32 %v4142, %v4230
      %4232 = vmatmul.bf16.gmra.mxu0 %v1052
      %v4233 = vpop.f32.mrf.mxu0
      %v4234 = vadd.f32 %v4145, %v4233
      %v4235 = vpop.f32.mrf.mxu0
      %v4236 = vadd.f32 %v4147, %v4235
      %4237 = vmatmul.bf16.gmra.mxu0 %v1059
      %v4238 = vpop.f32.mrf.mxu0
      %v4239 = vadd.f32 %v4150, %v4238
      %v4240 = vpop.f32.mrf.mxu0
      %v4241 = vadd.f32 %v4152, %v4240
      %4242 = vmatmul.bf16.gmra.mxu0 %v1066
      %v4243 = vpop.f32.mrf.mxu0
      %v4244 = vadd.f32 %v4155, %v4243
      %v4245 = vpop.f32.mrf.mxu0
      %v4246 = vadd.f32 %v4157, %v4245
      %4247 = vmatmul.bf16.gmra.mxu0 %v1073
      %v4248 = vpop.f32.mrf.mxu0
      %v4249 = vadd.f32 %v4160, %v4248
      %v4250 = vpop.f32.mrf.mxu0
      %v4251 = vadd.f32 %v4162, %v4250
      %4252 = vmatmul.bf16.gmra.mxu0 %v1080
      %v4253 = vpop.f32.mrf.mxu0
      %v4254 = vadd.f32 %v4165, %v4253
      %v4255 = vpop.f32.mrf.mxu0
      %v4256 = vadd.f32 %v4167, %v4255
      %4257 = vdwg.mxu0
      %4258 = vmatpush.bf16.msra.mxu0 %v1865
      %4259 = vmatpush.bf16.msra.mxu0 %v1861
      %4260 = vmatpush.bf16.msra.mxu0 %v1857
      %4261 = vmatpush.bf16.msra.mxu0 %v1853
      %4262 = vmatpush.bf16.msra.mxu0 %v1849
      %4263 = vmatpush.bf16.msra.mxu0 %v1845
      %4264 = vmatpush.bf16.msra.mxu0 %v1841
      %4265 = vmatpush.bf16.msra.mxu0 %v1837
      %4266 = vmatmul.bf16.gmra.mxu0 %v976
      %v4267 = vpop.f32.mrf.mxu0
      %v4268 = vadd.f32 %v4179, %v4267
      %v4269 = vpop.f32.mrf.mxu0
      %v4270 = vadd.f32 %v4181, %v4269
      %4271 = vmatmul.bf16.gmra.mxu0 %v983
      %v4272 = vpop.f32.mrf.mxu0
      %v4273 = vadd.f32 %v4184, %v4272
      %v4274 = vpop.f32.mrf.mxu0
      %v4275 = vadd.f32 %v4186, %v4274
      %4276 = vmatmul.bf16.gmra.mxu0 %v990
      %v4277 = vpop.f32.mrf.mxu0
      %v4278 = vadd.f32 %v4189, %v4277
      %v4279 = vpop.f32.mrf.mxu0
      %v4280 = vadd.f32 %v4191, %v4279
      %4281 = vmatmul.bf16.gmra.mxu0 %v997
      %v4282 = vpop.f32.mrf.mxu0
      %v4283 = vadd.f32 %v4194, %v4282
      %v4284 = vpop.f32.mrf.mxu0
      %v4285 = vadd.f32 %v4196, %v4284
      %4286 = vmatmul.bf16.gmra.mxu0 %v1004
      %v4287 = vpop.f32.mrf.mxu0
      %v4288 = vadd.f32 %v4199, %v4287
      %v4289 = vpop.f32.mrf.mxu0
      %v4290 = vadd.f32 %v4201, %v4289
      %4291 = vmatmul.bf16.gmra.mxu0 %v1011
      %v4292 = vpop.f32.mrf.mxu0
      %v4293 = vadd.f32 %v4204, %v4292
      %v4294 = vpop.f32.mrf.mxu0
      %v4295 = vadd.f32 %v4206, %v4294
      %4296 = vmatmul.bf16.gmra.mxu0 %v1018
      %v4297 = vpop.f32.mrf.mxu0
      %v4298 = vadd.f32 %v4209, %v4297
      %v4299 = vpop.f32.mrf.mxu0
      %v4300 = vadd.f32 %v4211, %v4299
      %4301 = vmatmul.bf16.gmra.mxu0 %v1025
      %v4302 = vpop.f32.mrf.mxu0
      %v4303 = vadd.f32 %v4214, %v4302
      %v4304 = vpop.f32.mrf.mxu0
      %v4305 = vadd.f32 %v4216, %v4304
      %4306 = vmatmul.bf16.gmra.mxu0 %v1032
      %v4307 = vpop.f32.mrf.mxu0
      %v4308 = vadd.f32 %v4219, %v4307
      %v4309 = vpop.f32.mrf.mxu0
      %v4310 = vadd.f32 %v4221, %v4309
      %4311 = vmatmul.bf16.gmra.mxu0 %v1039
      %v4312 = vpop.f32.mrf.mxu0
      %v4313 = vadd.f32 %v4224, %v4312
      %v4314 = vpop.f32.mrf.mxu0
      %v4315 = vadd.f32 %v4226, %v4314
      %4316 = vmatmul.bf16.gmra.mxu0 %v1046
      %v4317 = vpop.f32.mrf.mxu0
      %v4318 = vadd.f32 %v4229, %v4317
      %v4319 = vpop.f32.mrf.mxu0
      %v4320 = vadd.f32 %v4231, %v4319
      %4321 = vmatmul.bf16.gmra.mxu0 %v1053
      %v4322 = vpop.f32.mrf.mxu0
      %v4323 = vadd.f32 %v4234, %v4322
      %v4324 = vpop.f32.mrf.mxu0
      %v4325 = vadd.f32 %v4236, %v4324
      %4326 = vmatmul.bf16.gmra.mxu0 %v1060
      %v4327 = vpop.f32.mrf.mxu0
      %v4328 = vadd.f32 %v4239, %v4327
      %v4329 = vpop.f32.mrf.mxu0
      %v4330 = vadd.f32 %v4241, %v4329
      %4331 = vmatmul.bf16.gmra.mxu0 %v1067
      %v4332 = vpop.f32.mrf.mxu0
      %v4333 = vadd.f32 %v4244, %v4332
      %v4334 = vpop.f32.mrf.mxu0
      %v4335 = vadd.f32 %v4246, %v4334
      %4336 = vmatmul.bf16.gmra.mxu0 %v1074
      %v4337 = vpop.f32.mrf.mxu0
      %v4338 = vadd.f32 %v4249, %v4337
      %v4339 = vpop.f32.mrf.mxu0
      %v4340 = vadd.f32 %v4251, %v4339
      %4341 = vmatmul.bf16.gmra.mxu0 %v1081
      %v4342 = vpop.f32.mrf.mxu0
      %v4343 = vadd.f32 %v4254, %v4342
      %v4344 = vpop.f32.mrf.mxu0
      %v4345 = vadd.f32 %v4256, %v4344
      %4346 = vdwg.mxu0
      %4347 = vmatpush.bf16.msra.mxu0 %v1897
      %4348 = vmatpush.bf16.msra.mxu0 %v1893
      %4349 = vmatpush.bf16.msra.mxu0 %v1889
      %4350 = vmatpush.bf16.msra.mxu0 %v1885
      %4351 = vmatpush.bf16.msra.mxu0 %v1881
      %4352 = vmatpush.bf16.msra.mxu0 %v1877
      %4353 = vmatpush.bf16.msra.mxu0 %v1873
      %4354 = vmatpush.bf16.msra.mxu0 %v1869
      %4355 = vmatmul.bf16.gmra.mxu0 %v977
      %v4356 = vpop.f32.mrf.mxu0
      %v4357 = vadd.f32 %v4268, %v4356
      %v4358 = vpop.f32.mrf.mxu0
      %v4359 = vadd.f32 %v4270, %v4358
      %4360 = vmatmul.bf16.gmra.mxu0 %v984
      %v4361 = vpop.f32.mrf.mxu0
      %v4362 = vadd.f32 %v4273, %v4361
      %v4363 = vpop.f32.mrf.mxu0
      %v4364 = vadd.f32 %v4275, %v4363
      %4365 = vmatmul.bf16.gmra.mxu0 %v991
      %v4366 = vpop.f32.mrf.mxu0
      %v4367 = vadd.f32 %v4278, %v4366
      %v4368 = vpop.f32.mrf.mxu0
      %v4369 = vadd.f32 %v4280, %v4368
      %4370 = vmatmul.bf16.gmra.mxu0 %v998
      %v4371 = vpop.f32.mrf.mxu0
      %v4372 = vadd.f32 %v4283, %v4371
      %v4373 = vpop.f32.mrf.mxu0
      %v4374 = vadd.f32 %v4285, %v4373
      %4375 = vmatmul.bf16.gmra.mxu0 %v1005
      %v4376 = vpop.f32.mrf.mxu0
      %v4377 = vadd.f32 %v4288, %v4376
      %v4378 = vpop.f32.mrf.mxu0
      %v4379 = vadd.f32 %v4290, %v4378
      %4380 = vmatmul.bf16.gmra.mxu0 %v1012
      %v4381 = vpop.f32.mrf.mxu0
      %v4382 = vadd.f32 %v4293, %v4381
      %v4383 = vpop.f32.mrf.mxu0
      %v4384 = vadd.f32 %v4295, %v4383
      %4385 = vmatmul.bf16.gmra.mxu0 %v1019
      %v4386 = vpop.f32.mrf.mxu0
      %v4387 = vadd.f32 %v4298, %v4386
      %v4388 = vpop.f32.mrf.mxu0
      %v4389 = vadd.f32 %v4300, %v4388
      %4390 = vmatmul.bf16.gmra.mxu0 %v1026
      %v4391 = vpop.f32.mrf.mxu0
      %v4392 = vadd.f32 %v4303, %v4391
      %v4393 = vpop.f32.mrf.mxu0
      %v4394 = vadd.f32 %v4305, %v4393
      %4395 = vmatmul.bf16.gmra.mxu0 %v1033
      %v4396 = vpop.f32.mrf.mxu0
      %v4397 = vadd.f32 %v4308, %v4396
      %v4398 = vpop.f32.mrf.mxu0
      %v4399 = vadd.f32 %v4310, %v4398
      %4400 = vmatmul.bf16.gmra.mxu0 %v1040
      %v4401 = vpop.f32.mrf.mxu0
      %v4402 = vadd.f32 %v4313, %v4401
      %v4403 = vpop.f32.mrf.mxu0
      %v4404 = vadd.f32 %v4315, %v4403
      %4405 = vmatmul.bf16.gmra.mxu0 %v1047
      %v4406 = vpop.f32.mrf.mxu0
      %v4407 = vadd.f32 %v4318, %v4406
      %v4408 = vpop.f32.mrf.mxu0
      %v4409 = vadd.f32 %v4320, %v4408
      %4410 = vmatmul.bf16.gmra.mxu0 %v1054
      %v4411 = vpop.f32.mrf.mxu0
      %v4412 = vadd.f32 %v4323, %v4411
      %v4413 = vpop.f32.mrf.mxu0
      %v4414 = vadd.f32 %v4325, %v4413
      %4415 = vmatmul.bf16.gmra.mxu0 %v1061
      %v4416 = vpop.f32.mrf.mxu0
      %v4417 = vadd.f32 %v4328, %v4416
      %v4418 = vpop.f32.mrf.mxu0
      %v4419 = vadd.f32 %v4330, %v4418
      %4420 = vmatmul.bf16.gmra.mxu0 %v1068
      %v4421 = vpop.f32.mrf.mxu0
      %v4422 = vadd.f32 %v4333, %v4421
      %v4423 = vpop.f32.mrf.mxu0
      %v4424 = vadd.f32 %v4335, %v4423
      %4425 = vmatmul.bf16.gmra.mxu0 %v1075
      %v4426 = vpop.f32.mrf.mxu0
      %v4427 = vadd.f32 %v4338, %v4426
      %v4428 = vpop.f32.mrf.mxu0
      %v4429 = vadd.f32 %v4340, %v4428
      %4430 = vmatmul.bf16.gmra.mxu0 %v1082
      %v4431 = vpop.f32.mrf.mxu0
      %v4432 = vadd.f32 %v4343, %v4431
      %v4433 = vpop.f32.mrf.mxu0
      %v4434 = vadd.f32 %v4345, %v4433
      %4435 = vdwg.mxu0
      %4436 = vmatpush.bf16.msra.mxu0 %v1929
      %4437 = vmatpush.bf16.msra.mxu0 %v1925
      %4438 = vmatpush.bf16.msra.mxu0 %v1921
      %4439 = vmatpush.bf16.msra.mxu0 %v1917
      %4440 = vmatpush.bf16.msra.mxu0 %v1913
      %4441 = vmatpush.bf16.msra.mxu0 %v1909
      %4442 = vmatpush.bf16.msra.mxu0 %v1905
      %4443 = vmatpush.bf16.msra.mxu0 %v1901
      %4444 = vmatmul.bf16.gmra.mxu0 %v978
      %v4445 = vpop.f32.mrf.mxu0
      %v4446 = vadd.f32 %v4357, %v4445
      %v4447 = vpop.f32.mrf.mxu0
      %v4448 = vadd.f32 %v4359, %v4447
      %4449 = vmatmul.bf16.gmra.mxu0 %v985
      %v4450 = vpop.f32.mrf.mxu0
      %v4451 = vadd.f32 %v4362, %v4450
      %v4452 = vpop.f32.mrf.mxu0
      %v4453 = vadd.f32 %v4364, %v4452
      %4454 = vmatmul.bf16.gmra.mxu0 %v992
      %v4455 = vpop.f32.mrf.mxu0
      %v4456 = vadd.f32 %v4367, %v4455
      %v4457 = vpop.f32.mrf.mxu0
      %v4458 = vadd.f32 %v4369, %v4457
      %4459 = vmatmul.bf16.gmra.mxu0 %v999
      %v4460 = vpop.f32.mrf.mxu0
      %v4461 = vadd.f32 %v4372, %v4460
      %v4462 = vpop.f32.mrf.mxu0
      %v4463 = vadd.f32 %v4374, %v4462
      %4464 = vmatmul.bf16.gmra.mxu0 %v1006
      %v4465 = vpop.f32.mrf.mxu0
      %v4466 = vadd.f32 %v4377, %v4465
      %v4467 = vpop.f32.mrf.mxu0
      %v4468 = vadd.f32 %v4379, %v4467
      %4469 = vmatmul.bf16.gmra.mxu0 %v1013
      %v4470 = vpop.f32.mrf.mxu0
      %v4471 = vadd.f32 %v4382, %v4470
      %v4472 = vpop.f32.mrf.mxu0
      %v4473 = vadd.f32 %v4384, %v4472
      %4474 = vmatmul.bf16.gmra.mxu0 %v1020
      %v4475 = vpop.f32.mrf.mxu0
      %v4476 = vadd.f32 %v4387, %v4475
      %v4477 = vpop.f32.mrf.mxu0
      %v4478 = vadd.f32 %v4389, %v4477
      %4479 = vmatmul.bf16.gmra.mxu0 %v1027
      %v4480 = vpop.f32.mrf.mxu0
      %v4481 = vadd.f32 %v4392, %v4480
      %v4482 = vpop.f32.mrf.mxu0
      %v4483 = vadd.f32 %v4394, %v4482
      %4484 = vmatmul.bf16.gmra.mxu0 %v1034
      %v4485 = vpop.f32.mrf.mxu0
      %v4486 = vadd.f32 %v4397, %v4485
      %v4487 = vpop.f32.mrf.mxu0
      %v4488 = vadd.f32 %v4399, %v4487
      %4489 = vmatmul.bf16.gmra.mxu0 %v1041
      %v4490 = vpop.f32.mrf.mxu0
      %v4491 = vadd.f32 %v4402, %v4490
      %v4492 = vpop.f32.mrf.mxu0
      %v4493 = vadd.f32 %v4404, %v4492
      %4494 = vmatmul.bf16.gmra.mxu0 %v1048
      %v4495 = vpop.f32.mrf.mxu0
      %v4496 = vadd.f32 %v4407, %v4495
      %v4497 = vpop.f32.mrf.mxu0
      %v4498 = vadd.f32 %v4409, %v4497
      %4499 = vmatmul.bf16.gmra.mxu0 %v1055
      %v4500 = vpop.f32.mrf.mxu0
      %v4501 = vadd.f32 %v4412, %v4500
      %v4502 = vpop.f32.mrf.mxu0
      %v4503 = vadd.f32 %v4414, %v4502
      %4504 = vmatmul.bf16.gmra.mxu0 %v1062
      %v4505 = vpop.f32.mrf.mxu0
      %v4506 = vadd.f32 %v4417, %v4505
      %v4507 = vpop.f32.mrf.mxu0
      %v4508 = vadd.f32 %v4419, %v4507
      %4509 = vmatmul.bf16.gmra.mxu0 %v1069
      %v4510 = vpop.f32.mrf.mxu0
      %v4511 = vadd.f32 %v4422, %v4510
      %v4512 = vpop.f32.mrf.mxu0
      %v4513 = vadd.f32 %v4424, %v4512
      %4514 = vmatmul.bf16.gmra.mxu0 %v1076
      %v4515 = vpop.f32.mrf.mxu0
      %v4516 = vadd.f32 %v4427, %v4515
      %v4517 = vpop.f32.mrf.mxu0
      %v4518 = vadd.f32 %v4429, %v4517
      %4519 = vmatmul.bf16.gmra.mxu0 %v1083
      %v4520 = vpop.f32.mrf.mxu0
      %v4521 = vadd.f32 %v4432, %v4520
      %v4522 = vpop.f32.mrf.mxu0
      %v4523 = vadd.f32 %v4434, %v4522
      %4524 = vdwg.mxu0
      %4525 = vmatpush.bf16.msra.mxu0 %v1961
      %4526 = vmatpush.bf16.msra.mxu0 %v1957
      %4527 = vmatpush.bf16.msra.mxu0 %v1953
      %4528 = vmatpush.bf16.msra.mxu0 %v1949
      %4529 = vmatpush.bf16.msra.mxu0 %v1945
      %4530 = vmatpush.bf16.msra.mxu0 %v1941
      %4531 = vmatpush.bf16.msra.mxu0 %v1937
      %4532 = vmatpush.bf16.msra.mxu0 %v1933
      %4533 = vmatmul.bf16.gmra.mxu0 %v979
      %v4534 = vpop.f32.mrf.mxu0
      %v4535 = vadd.f32 %v4446, %v4534
      %v4536 = vpop.f32.mrf.mxu0
      %v4537 = vadd.f32 %v4448, %v4536
      %4538 = vmatmul.bf16.gmra.mxu0 %v986
      %v4539 = vpop.f32.mrf.mxu0
      %v4540 = vadd.f32 %v4451, %v4539
      %v4541 = vpop.f32.mrf.mxu0
      %v4542 = vadd.f32 %v4453, %v4541
      %4543 = vmatmul.bf16.gmra.mxu0 %v993
      %v4544 = vpop.f32.mrf.mxu0
      %v4545 = vadd.f32 %v4456, %v4544
      %v4546 = vpop.f32.mrf.mxu0
      %v4547 = vadd.f32 %v4458, %v4546
      %4548 = vmatmul.bf16.gmra.mxu0 %v1000
      %v4549 = vpop.f32.mrf.mxu0
      %v4550 = vadd.f32 %v4461, %v4549
      %v4551 = vpop.f32.mrf.mxu0
      %v4552 = vadd.f32 %v4463, %v4551
      %4553 = vmatmul.bf16.gmra.mxu0 %v1007
      %v4554 = vpop.f32.mrf.mxu0
      %v4555 = vadd.f32 %v4466, %v4554
      %v4556 = vpop.f32.mrf.mxu0
      %v4557 = vadd.f32 %v4468, %v4556
      %4558 = vmatmul.bf16.gmra.mxu0 %v1014
      %v4559 = vpop.f32.mrf.mxu0
      %v4560 = vadd.f32 %v4471, %v4559
      %v4561 = vpop.f32.mrf.mxu0
      %v4562 = vadd.f32 %v4473, %v4561
      %4563 = vmatmul.bf16.gmra.mxu0 %v1021
      %v4564 = vpop.f32.mrf.mxu0
      %v4565 = vadd.f32 %v4476, %v4564
      %v4566 = vpop.f32.mrf.mxu0
      %v4567 = vadd.f32 %v4478, %v4566
      %4568 = vmatmul.bf16.gmra.mxu0 %v1028
      %v4569 = vpop.f32.mrf.mxu0
      %v4570 = vadd.f32 %v4481, %v4569
      %v4571 = vpop.f32.mrf.mxu0
      %v4572 = vadd.f32 %v4483, %v4571
      %4573 = vmatmul.bf16.gmra.mxu0 %v1035
      %v4574 = vpop.f32.mrf.mxu0
      %v4575 = vadd.f32 %v4486, %v4574
      %v4576 = vpop.f32.mrf.mxu0
      %v4577 = vadd.f32 %v4488, %v4576
      %4578 = vmatmul.bf16.gmra.mxu0 %v1042
      %v4579 = vpop.f32.mrf.mxu0
      %v4580 = vadd.f32 %v4491, %v4579
      %v4581 = vpop.f32.mrf.mxu0
      %v4582 = vadd.f32 %v4493, %v4581
      %4583 = vmatmul.bf16.gmra.mxu0 %v1049
      %v4584 = vpop.f32.mrf.mxu0
      %v4585 = vadd.f32 %v4496, %v4584
      %v4586 = vpop.f32.mrf.mxu0
      %v4587 = vadd.f32 %v4498, %v4586
      %4588 = vmatmul.bf16.gmra.mxu0 %v1056
      %v4589 = vpop.f32.mrf.mxu0
      %v4590 = vadd.f32 %v4501, %v4589
      %v4591 = vpop.f32.mrf.mxu0
      %v4592 = vadd.f32 %v4503, %v4591
      %4593 = vmatmul.bf16.gmra.mxu0 %v1063
      %v4594 = vpop.f32.mrf.mxu0
      %v4595 = vadd.f32 %v4506, %v4594
      %v4596 = vpop.f32.mrf.mxu0
      %v4597 = vadd.f32 %v4508, %v4596
      %4598 = vmatmul.bf16.gmra.mxu0 %v1070
      %v4599 = vpop.f32.mrf.mxu0
      %v4600 = vadd.f32 %v4511, %v4599
      %v4601 = vpop.f32.mrf.mxu0
      %v4602 = vadd.f32 %v4513, %v4601
      %4603 = vmatmul.bf16.gmra.mxu0 %v1077
      %v4604 = vpop.f32.mrf.mxu0
      %v4605 = vadd.f32 %v4516, %v4604
      %v4606 = vpop.f32.mrf.mxu0
      %v4607 = vadd.f32 %v4518, %v4606
      %4608 = vmatmul.bf16.gmra.mxu0 %v1084
      %v4609 = vpop.f32.mrf.mxu0
      %v4610 = vadd.f32 %v4521, %v4609
      %v4611 = vpop.f32.mrf.mxu0
      %v4612 = vadd.f32 %v4523, %v4611
      %4613 = vdwg.mxu0
      %4614 = vmatpush.bf16.msra.mxu0 0
      %4615 = vmatpush.bf16.msra.mxu0 0
      %4616 = vmatpush.bf16.msra.mxu0 0
      %4617 = vmatpush.bf16.msra.mxu0 0
      %4618 = vmatpush.bf16.msra.mxu0 0
      %4619 = vmatpush.bf16.msra.mxu0 0
      %4620 = vmatpush.bf16.msra.mxu0 0
      %4621 = vmatpush.bf16.msra.mxu0 %v1965
      %4622 = vmatmul.bf16.gmra.mxu0 %v2164
      %v4623 = vpop.f32.mrf.mxu0
      %v4624 = vadd.f32 %v4535, %v4623
      %v4625 = vpop.f32.mrf.mxu0
      %v4626 = vadd.f32 %v4537, %v4625
      %4627 = vmatmul.bf16.gmra.mxu0 %v2167
      %v4628 = vpop.f32.mrf.mxu0
      %v4629 = vadd.f32 %v4540, %v4628
      %v4630 = vpop.f32.mrf.mxu0
      %v4631 = vadd.f32 %v4542, %v4630
      %4632 = vmatmul.bf16.gmra.mxu0 %v2170
      %v4633 = vpop.f32.mrf.mxu0
      %v4634 = vadd.f32 %v4545, %v4633
      %v4635 = vpop.f32.mrf.mxu0
      %v4636 = vadd.f32 %v4547, %v4635
      %4637 = vmatmul.bf16.gmra.mxu0 %v2173
      %v4638 = vpop.f32.mrf.mxu0
      %v4639 = vadd.f32 %v4550, %v4638
      %v4640 = vpop.f32.mrf.mxu0
      %v4641 = vadd.f32 %v4552, %v4640
      %4642 = vmatmul.bf16.gmra.mxu0 %v2176
      %v4643 = vpop.f32.mrf.mxu0
      %v4644 = vadd.f32 %v4555, %v4643
      %v4645 = vpop.f32.mrf.mxu0
      %v4646 = vadd.f32 %v4557, %v4645
      %4647 = vmatmul.bf16.gmra.mxu0 %v2179
      %v4648 = vpop.f32.mrf.mxu0
      %v4649 = vadd.f32 %v4560, %v4648
      %v4650 = vpop.f32.mrf.mxu0
      %v4651 = vadd.f32 %v4562, %v4650
      %4652 = vmatmul.bf16.gmra.mxu0 %v2182
      %v4653 = vpop.f32.mrf.mxu0
      %v4654 = vadd.f32 %v4565, %v4653
      %v4655 = vpop.f32.mrf.mxu0
      %v4656 = vadd.f32 %v4567, %v4655
      %4657 = vmatmul.bf16.gmra.mxu0 %v2185
      %v4658 = vpop.f32.mrf.mxu0
      %v4659 = vadd.f32 %v4570, %v4658
      %v4660 = vpop.f32.mrf.mxu0
      %v4661 = vadd.f32 %v4572, %v4660
      %4662 = vmatmul.bf16.gmra.mxu0 %v2188
      %v4663 = vpop.f32.mrf.mxu0
      %v4664 = vadd.f32 %v4575, %v4663
      %v4665 = vpop.f32.mrf.mxu0
      %v4666 = vadd.f32 %v4577, %v4665
      %4667 = vmatmul.bf16.gmra.mxu0 %v2191
      %v4668 = vpop.f32.mrf.mxu0
      %v4669 = vadd.f32 %v4580, %v4668
      %v4670 = vpop.f32.mrf.mxu0
      %v4671 = vadd.f32 %v4582, %v4670
      %4672 = vmatmul.bf16.gmra.mxu0 %v2194
      %v4673 = vpop.f32.mrf.mxu0
      %v4674 = vadd.f32 %v4585, %v4673
      %v4675 = vpop.f32.mrf.mxu0
      %v4676 = vadd.f32 %v4587, %v4675
      %4677 = vmatmul.bf16.gmra.mxu0 %v2197
      %v4678 = vpop.f32.mrf.mxu0
      %v4679 = vadd.f32 %v4590, %v4678
      %v4680 = vpop.f32.mrf.mxu0
      %v4681 = vadd.f32 %v4592, %v4680
      %4682 = vmatmul.bf16.gmra.mxu0 %v2200
      %v4683 = vpop.f32.mrf.mxu0
      %v4684 = vadd.f32 %v4595, %v4683
      %v4685 = vpop.f32.mrf.mxu0
      %v4686 = vadd.f32 %v4597, %v4685
      %4687 = vmatmul.bf16.gmra.mxu0 %v2203
      %v4688 = vpop.f32.mrf.mxu0
      %v4689 = vadd.f32 %v4600, %v4688
      %v4690 = vpop.f32.mrf.mxu0
      %v4691 = vadd.f32 %v4602, %v4690
      %4692 = vmatmul.bf16.gmra.mxu0 %v2206
      %v4693 = vpop.f32.mrf.mxu0
      %v4694 = vadd.f32 %v4605, %v4693
      %v4695 = vpop.f32.mrf.mxu0
      %v4696 = vadd.f32 %v4607, %v4695
      %4697 = vmatmul.bf16.gmra.mxu0 %v2209
      %v4698 = vpop.f32.mrf.mxu0
      %v4699 = vadd.f32 %v4610, %v4698
      %v4700 = vpop.f32.mrf.mxu0
      %v4701 = vadd.f32 %v4612, %v4700
      %4702 = vdwg.mxu0
      %vm4703 = vcmp.gt.f32.partialorder %v2755, 0.0
      %vm4704 = vcmp.gt.f32.partialorder %v3378, 0.0
      %vm4705 = vcmp.gt.f32.partialorder %v4001, 0.0
      %vm4706 = vcmp.gt.f32.partialorder %v4624, 0.0
      %vm4707 = vcmp.gt.f32.partialorder %v2757, 0.0
      %vm4708 = vcmp.gt.f32.partialorder %v3380, 0.0
      %vm4709 = vcmp.gt.f32.partialorder %v4003, 0.0
      %vm4710 = vcmp.gt.f32.partialorder %v4626, 0.0
      %vm4711 = vcmp.gt.f32.partialorder %v2760, 0.0
      %vm4712 = vcmp.gt.f32.partialorder %v3383, 0.0
      %vm4713 = vcmp.gt.f32.partialorder %v4006, 0.0
      %vm4714 = vcmp.gt.f32.partialorder %v4629, 0.0
      %vm4715 = vcmp.gt.f32.partialorder %v2762, 0.0
      %vm4716 = vcmp.gt.f32.partialorder %v3385, 0.0
      %vm4717 = vcmp.gt.f32.partialorder %v4008, 0.0
      %vm4718 = vcmp.gt.f32.partialorder %v4631, 0.0
      %vm4719 = vcmp.gt.f32.partialorder %v2765, 0.0
      %vm4720 = vcmp.gt.f32.partialorder %v3388, 0.0
      %vm4721 = vcmp.gt.f32.partialorder %v4011, 0.0
      %vm4722 = vcmp.gt.f32.partialorder %v4634, 0.0
      %vm4723 = vcmp.gt.f32.partialorder %v2767, 0.0
      %vm4724 = vcmp.gt.f32.partialorder %v3390, 0.0
      %vm4725 = vcmp.gt.f32.partialorder %v4013, 0.0
      %vm4726 = vcmp.gt.f32.partialorder %v4636, 0.0
      %vm4727 = vcmp.gt.f32.partialorder %v2770, 0.0
      %vm4728 = vcmp.gt.f32.partialorder %v3393, 0.0
      %vm4729 = vcmp.gt.f32.partialorder %v4016, 0.0
      %vm4730 = vcmp.gt.f32.partialorder %v4639, 0.0
      %vm4731 = vcmp.gt.f32.partialorder %v2772, 0.0
      %vm4732 = vcmp.gt.f32.partialorder %v3395, 0.0
      %vm4733 = vcmp.gt.f32.partialorder %v4018, 0.0
      %vm4734 = vcmp.gt.f32.partialorder %v4641, 0.0
      %vm4735 = vcmp.gt.f32.partialorder %v2775, 0.0
      %vm4736 = vcmp.gt.f32.partialorder %v3398, 0.0
      %vm4737 = vcmp.gt.f32.partialorder %v4021, 0.0
      %vm4738 = vcmp.gt.f32.partialorder %v4644, 0.0
      %vm4739 = vcmp.gt.f32.partialorder %v2777, 0.0
      %vm4740 = vcmp.gt.f32.partialorder %v3400, 0.0
      %vm4741 = vcmp.gt.f32.partialorder %v4023, 0.0
      %vm4742 = vcmp.gt.f32.partialorder %v4646, 0.0
      %vm4743 = vcmp.gt.f32.partialorder %v2780, 0.0
      %vm4744 = vcmp.gt.f32.partialorder %v3403, 0.0
      %vm4745 = vcmp.gt.f32.partialorder %v4026, 0.0
      %vm4746 = vcmp.gt.f32.partialorder %v4649, 0.0
      %vm4747 = vcmp.gt.f32.partialorder %v2782, 0.0
      %vm4748 = vcmp.gt.f32.partialorder %v3405, 0.0
      %vm4749 = vcmp.gt.f32.partialorder %v4028, 0.0
      %vm4750 = vcmp.gt.f32.partialorder %v4651, 0.0
      %vm4751 = vcmp.gt.f32.partialorder %v2785, 0.0
      %vm4752 = vcmp.gt.f32.partialorder %v3408, 0.0
      %vm4753 = vcmp.gt.f32.partialorder %v4031, 0.0
      %vm4754 = vcmp.gt.f32.partialorder %v4654, 0.0
      %vm4755 = vcmp.gt.f32.partialorder %v2787, 0.0
      %vm4756 = vcmp.gt.f32.partialorder %v3410, 0.0
      %vm4757 = vcmp.gt.f32.partialorder %v4033, 0.0
      %vm4758 = vcmp.gt.f32.partialorder %v4656, 0.0
      %vm4759 = vcmp.gt.f32.partialorder %v2790, 0.0
      %vm4760 = vcmp.gt.f32.partialorder %v3413, 0.0
      %vm4761 = vcmp.gt.f32.partialorder %v4036, 0.0
      %vm4762 = vcmp.gt.f32.partialorder %v4659, 0.0
      %vm4763 = vcmp.gt.f32.partialorder %v2792, 0.0
      %vm4764 = vcmp.gt.f32.partialorder %v3415, 0.0
      %vm4765 = vcmp.gt.f32.partialorder %v4038, 0.0
      %vm4766 = vcmp.gt.f32.partialorder %v4661, 0.0
      %vm4767 = vcmp.gt.f32.partialorder %v2795, 0.0
      %vm4768 = vcmp.gt.f32.partialorder %v3418, 0.0
      %vm4769 = vcmp.gt.f32.partialorder %v4041, 0.0
      %vm4770 = vcmp.gt.f32.partialorder %v4664, 0.0
      %vm4771 = vcmp.gt.f32.partialorder %v2797, 0.0
      %vm4772 = vcmp.gt.f32.partialorder %v3420, 0.0
      %vm4773 = vcmp.gt.f32.partialorder %v4043, 0.0
      %vm4774 = vcmp.gt.f32.partialorder %v4666, 0.0
      %vm4775 = vcmp.gt.f32.partialorder %v2800, 0.0
      %vm4776 = vcmp.gt.f32.partialorder %v3423, 0.0
      %vm4777 = vcmp.gt.f32.partialorder %v4046, 0.0
      %vm4778 = vcmp.gt.f32.partialorder %v4669, 0.0
      %vm4779 = vcmp.gt.f32.partialorder %v2802, 0.0
      %vm4780 = vcmp.gt.f32.partialorder %v3425, 0.0
      %vm4781 = vcmp.gt.f32.partialorder %v4048, 0.0
      %vm4782 = vcmp.gt.f32.partialorder %v4671, 0.0
      %vm4783 = vcmp.gt.f32.partialorder %v2805, 0.0
      %vm4784 = vcmp.gt.f32.partialorder %v3428, 0.0
      %vm4785 = vcmp.gt.f32.partialorder %v4051, 0.0
      %vm4786 = vcmp.gt.f32.partialorder %v4674, 0.0
      %vm4787 = vcmp.gt.f32.partialorder %v2807, 0.0
      %vm4788 = vcmp.gt.f32.partialorder %v3430, 0.0
      %vm4789 = vcmp.gt.f32.partialorder %v4053, 0.0
      %vm4790 = vcmp.gt.f32.partialorder %v4676, 0.0
      %vm4791 = vcmp.gt.f32.partialorder %v2810, 0.0
      %vm4792 = vcmp.gt.f32.partialorder %v3433, 0.0
      %vm4793 = vcmp.gt.f32.partialorder %v4056, 0.0
      %vm4794 = vcmp.gt.f32.partialorder %v4679, 0.0
      %vm4795 = vcmp.gt.f32.partialorder %v2812, 0.0
      %vm4796 = vcmp.gt.f32.partialorder %v3435, 0.0
      %vm4797 = vcmp.gt.f32.partialorder %v4058, 0.0
      %vm4798 = vcmp.gt.f32.partialorder %v4681, 0.0
      %vm4799 = vcmp.gt.f32.partialorder %v2815, 0.0
      %vm4800 = vcmp.gt.f32.partialorder %v3438, 0.0
      %vm4801 = vcmp.gt.f32.partialorder %v4061, 0.0
      %vm4802 = vcmp.gt.f32.partialorder %v4684, 0.0
      %vm4803 = vcmp.gt.f32.partialorder %v2817, 0.0
      %vm4804 = vcmp.gt.f32.partialorder %v3440, 0.0
      %vm4805 = vcmp.gt.f32.partialorder %v4063, 0.0
      %vm4806 = vcmp.gt.f32.partialorder %v4686, 0.0
      %vm4807 = vcmp.gt.f32.partialorder %v2820, 0.0
      %vm4808 = vcmp.gt.f32.partialorder %v3443, 0.0
      %vm4809 = vcmp.gt.f32.partialorder %v4066, 0.0
      %vm4810 = vcmp.gt.f32.partialorder %v4689, 0.0
      %vm4811 = vcmp.gt.f32.partialorder %v2822, 0.0
      %vm4812 = vcmp.gt.f32.partialorder %v3445, 0.0
      %vm4813 = vcmp.gt.f32.partialorder %v4068, 0.0
      %vm4814 = vcmp.gt.f32.partialorder %v4691, 0.0
      %vm4815 = vcmp.gt.f32.partialorder %v2825, 0.0
      %vm4816 = vcmp.gt.f32.partialorder %v3448, 0.0
      %vm4817 = vcmp.gt.f32.partialorder %v4071, 0.0
      %vm4818 = vcmp.gt.f32.partialorder %v4694, 0.0
      %vm4819 = vcmp.gt.f32.partialorder %v2827, 0.0
      %vm4820 = vcmp.gt.f32.partialorder %v3450, 0.0
      %vm4821 = vcmp.gt.f32.partialorder %v4073, 0.0
      %vm4822 = vcmp.gt.f32.partialorder %v4696, 0.0
      %vm4823 = vcmp.gt.f32.partialorder %v2830, 0.0
      %vm4824 = vcmp.gt.f32.partialorder %v3453, 0.0
      %vm4825 = vcmp.gt.f32.partialorder %v4076, 0.0
      %vm4826 = vcmp.gt.f32.partialorder %v4699, 0.0
      %vm4827 = vcmp.gt.f32.partialorder %v2832, 0.0
      %vm4828 = vcmp.gt.f32.partialorder %v3455, 0.0
      %vm4829 = vcmp.gt.f32.partialorder %v4078, 0.0
      %vm4830 = vcmp.gt.f32.partialorder %v4701, 0.0
      %v4831 = vmul.f32 %v2755, 0.2
      %v4832 = vmul.f32 %v3378, 0.2
      %v4833 = vmul.f32 %v4001, 0.2
      %v4834 = vmul.f32 %v4624, 0.2
      %v4835 = vmul.f32 %v2757, 0.2
      %v4836 = vmul.f32 %v3380, 0.2
      %v4837 = vmul.f32 %v4003, 0.2
      %v4838 = vmul.f32 %v4626, 0.2
      %v4839 = vmul.f32 %v2760, 0.2
      %v4840 = vmul.f32 %v3383, 0.2
      %v4841 = vmul.f32 %v4006, 0.2
      %v4842 = vmul.f32 %v4629, 0.2
      %v4843 = vmul.f32 %v2762, 0.2
      %v4844 = vmul.f32 %v3385, 0.2
      %v4845 = vmul.f32 %v4008, 0.2
      %v4846 = vmul.f32 %v4631, 0.2
      %v4847 = vmul.f32 %v2765, 0.2
      %v4848 = vmul.f32 %v3388, 0.2
      %v4849 = vmul.f32 %v4011, 0.2
      %v4850 = vmul.f32 %v4634, 0.2
      %v4851 = vmul.f32 %v2767, 0.2
      %v4852 = vmul.f32 %v3390, 0.2
      %v4853 = vmul.f32 %v4013, 0.2
      %v4854 = vmul.f32 %v4636, 0.2
      %v4855 = vmul.f32 %v2770, 0.2
      %v4856 = vmul.f32 %v3393, 0.2
      %v4857 = vmul.f32 %v4016, 0.2
      %v4858 = vmul.f32 %v4639, 0.2
      %v4859 = vmul.f32 %v2772, 0.2
      %v4860 = vmul.f32 %v3395, 0.2
      %v4861 = vmul.f32 %v4018, 0.2
      %v4862 = vmul.f32 %v4641, 0.2
      %v4863 = vmul.f32 %v2775, 0.2
      %v4864 = vmul.f32 %v3398, 0.2
      %v4865 = vmul.f32 %v4021, 0.2
      %v4866 = vmul.f32 %v4644, 0.2
      %v4867 = vmul.f32 %v2777, 0.2
      %v4868 = vmul.f32 %v3400, 0.2
      %v4869 = vmul.f32 %v4023, 0.2
      %v4870 = vmul.f32 %v4646, 0.2
      %v4871 = vmul.f32 %v2780, 0.2
      %v4872 = vmul.f32 %v3403, 0.2
      %v4873 = vmul.f32 %v4026, 0.2
      %v4874 = vmul.f32 %v4649, 0.2
      %v4875 = vmul.f32 %v2782, 0.2
      %v4876 = vmul.f32 %v3405, 0.2
      %v4877 = vmul.f32 %v4028, 0.2
      %v4878 = vmul.f32 %v4651, 0.2
      %v4879 = vmul.f32 %v2785, 0.2
      %v4880 = vmul.f32 %v3408, 0.2
      %v4881 = vmul.f32 %v4031, 0.2
      %v4882 = vmul.f32 %v4654, 0.2
      %v4883 = vmul.f32 %v2787, 0.2
      %v4884 = vmul.f32 %v3410, 0.2
      %v4885 = vmul.f32 %v4033, 0.2
      %v4886 = vmul.f32 %v4656, 0.2
      %v4887 = vmul.f32 %v2790, 0.2
      %v4888 = vmul.f32 %v3413, 0.2
      %v4889 = vmul.f32 %v4036, 0.2
      %v4890 = vmul.f32 %v4659, 0.2
      %v4891 = vmul.f32 %v2792, 0.2
      %v4892 = vmul.f32 %v3415, 0.2
      %v4893 = vmul.f32 %v4038, 0.2
      %v4894 = vmul.f32 %v4661, 0.2
      %v4895 = vmul.f32 %v2795, 0.2
      %v4896 = vmul.f32 %v3418, 0.2
      %v4897 = vmul.f32 %v4041, 0.2
      %v4898 = vmul.f32 %v4664, 0.2
      %v4899 = vmul.f32 %v2797, 0.2
      %v4900 = vmul.f32 %v3420, 0.2
      %v4901 = vmul.f32 %v4043, 0.2
      %v4902 = vmul.f32 %v4666, 0.2
      %v4903 = vmul.f32 %v2800, 0.2
      %v4904 = vmul.f32 %v3423, 0.2
      %v4905 = vmul.f32 %v4046, 0.2
      %v4906 = vmul.f32 %v4669, 0.2
      %v4907 = vmul.f32 %v2802, 0.2
      %v4908 = vmul.f32 %v3425, 0.2
      %v4909 = vmul.f32 %v4048, 0.2
      %v4910 = vmul.f32 %v4671, 0.2
      %v4911 = vmul.f32 %v2805, 0.2
      %v4912 = vmul.f32 %v3428, 0.2
      %v4913 = vmul.f32 %v4051, 0.2
      %v4914 = vmul.f32 %v4674, 0.2
      %v4915 = vmul.f32 %v2807, 0.2
      %v4916 = vmul.f32 %v3430, 0.2
      %v4917 = vmul.f32 %v4053, 0.2
      %v4918 = vmul.f32 %v4676, 0.2
      %v4919 = vmul.f32 %v2810, 0.2
      %v4920 = vmul.f32 %v3433, 0.2
      %v4921 = vmul.f32 %v4056, 0.2
      %v4922 = vmul.f32 %v4679, 0.2
      %v4923 = vmul.f32 %v2812, 0.2
      %v4924 = vmul.f32 %v3435, 0.2
      %v4925 = vmul.f32 %v4058, 0.2
      %v4926 = vmul.f32 %v4681, 0.2
      %v4927 = vmul.f32 %v2815, 0.2
      %v4928 = vmul.f32 %v3438, 0.2
      %v4929 = vmul.f32 %v4061, 0.2
      %v4930 = vmul.f32 %v4684, 0.2
      %v4931 = vmul.f32 %v2817, 0.2
      %v4932 = vmul.f32 %v3440, 0.2
      %v4933 = vmul.f32 %v4063, 0.2
      %v4934 = vmul.f32 %v4686, 0.2
      %v4935 = vmul.f32 %v2820, 0.2
      %v4936 = vmul.f32 %v3443, 0.2
      %v4937 = vmul.f32 %v4066, 0.2
      %v4938 = vmul.f32 %v4689, 0.2
      %v4939 = vmul.f32 %v2822, 0.2
      %v4940 = vmul.f32 %v3445, 0.2
      %v4941 = vmul.f32 %v4068, 0.2
      %v4942 = vmul.f32 %v4691, 0.2
      %v4943 = vmul.f32 %v2825, 0.2
      %v4944 = vmul.f32 %v3448, 0.2
      %v4945 = vmul.f32 %v4071, 0.2
      %v4946 = vmul.f32 %v4694, 0.2
      %v4947 = vmul.f32 %v2827, 0.2
      %v4948 = vmul.f32 %v3450, 0.2
      %v4949 = vmul.f32 %v4073, 0.2
      %v4950 = vmul.f32 %v4696, 0.2
      %v4951 = vmul.f32 %v2830, 0.2
      %v4952 = vmul.f32 %v3453, 0.2
      %v4953 = vmul.f32 %v4076, 0.2
      %v4954 = vmul.f32 %v4699, 0.2
      %v4955 = vmul.f32 %v2832, 0.2
      %v4956 = vmul.f32 %v3455, 0.2
      %v4957 = vmul.f32 %v4078, 0.2
      %v4958 = vmul.f32 %v4701, 0.2
      %v4959 = vsel %vm4703, %v2755, %v4831
      %v4960 = vsel %vm4704, %v3378, %v4832
      %v4961 = vsel %vm4705, %v4001, %v4833
      %v4962 = vsel %vm4706, %v4624, %v4834
      %v4963 = vsel %vm4707, %v2757, %v4835
      %v4964 = vsel %vm4708, %v3380, %v4836
      %v4965 = vsel %vm4709, %v4003, %v4837
      %v4966 = vsel %vm4710, %v4626, %v4838
      %v4967 = vsel %vm4711, %v2760, %v4839
      %v4968 = vsel %vm4712, %v3383, %v4840
      %v4969 = vsel %vm4713, %v4006, %v4841
      %v4970 = vsel %vm4714, %v4629, %v4842
      %v4971 = vsel %vm4715, %v2762, %v4843
      %v4972 = vsel %vm4716, %v3385, %v4844
      %v4973 = vsel %vm4717, %v4008, %v4845
      %v4974 = vsel %vm4718, %v4631, %v4846
      %v4975 = vsel %vm4719, %v2765, %v4847
      %v4976 = vsel %vm4720, %v3388, %v4848
      %v4977 = vsel %vm4721, %v4011, %v4849
      %v4978 = vsel %vm4722, %v4634, %v4850
      %v4979 = vsel %vm4723, %v2767, %v4851
      %v4980 = vsel %vm4724, %v3390, %v4852
      %v4981 = vsel %vm4725, %v4013, %v4853
      %v4982 = vsel %vm4726, %v4636, %v4854
      %v4983 = vsel %vm4727, %v2770, %v4855
      %v4984 = vsel %vm4728, %v3393, %v4856
      %v4985 = vsel %vm4729, %v4016, %v4857
      %v4986 = vsel %vm4730, %v4639, %v4858
      %v4987 = vsel %vm4731, %v2772, %v4859
      %v4988 = vsel %vm4732, %v3395, %v4860
      %v4989 = vsel %vm4733, %v4018, %v4861
      %v4990 = vsel %vm4734, %v4641, %v4862
      %v4991 = vsel %vm4735, %v2775, %v4863
      %v4992 = vsel %vm4736, %v3398, %v4864
      %v4993 = vsel %vm4737, %v4021, %v4865
      %v4994 = vsel %vm4738, %v4644, %v4866
      %v4995 = vsel %vm4739, %v2777, %v4867
      %v4996 = vsel %vm4740, %v3400, %v4868
      %v4997 = vsel %vm4741, %v4023, %v4869
      %v4998 = vsel %vm4742, %v4646, %v4870
      %v4999 = vsel %vm4743, %v2780, %v4871
      %v5000 = vsel %vm4744, %v3403, %v4872
      %v5001 = vsel %vm4745, %v4026, %v4873
      %v5002 = vsel %vm4746, %v4649, %v4874
      %v5003 = vsel %vm4747, %v2782, %v4875
      %v5004 = vsel %vm4748, %v3405, %v4876
      %v5005 = vsel %vm4749, %v4028, %v4877
      %v5006 = vsel %vm4750, %v4651, %v4878
      %v5007 = vsel %vm4751, %v2785, %v4879
      %v5008 = vsel %vm4752, %v3408, %v4880
      %v5009 = vsel %vm4753, %v4031, %v4881
      %v5010 = vsel %vm4754, %v4654, %v4882
      %v5011 = vsel %vm4755, %v2787, %v4883
      %v5012 = vsel %vm4756, %v3410, %v4884
      %v5013 = vsel %vm4757, %v4033, %v4885
      %v5014 = vsel %vm4758, %v4656, %v4886
      %v5015 = vsel %vm4759, %v2790, %v4887
      %v5016 = vsel %vm4760, %v3413, %v4888
      %v5017 = vsel %vm4761, %v4036, %v4889
      %v5018 = vsel %vm4762, %v4659, %v4890
      %v5019 = vsel %vm4763, %v2792, %v4891
      %v5020 = vsel %vm4764, %v3415, %v4892
      %v5021 = vsel %vm4765, %v4038, %v4893
      %v5022 = vsel %vm4766, %v4661, %v4894
      %v5023 = vsel %vm4767, %v2795, %v4895
      %v5024 = vsel %vm4768, %v3418, %v4896
      %v5025 = vsel %vm4769, %v4041, %v4897
      %v5026 = vsel %vm4770, %v4664, %v4898
      %v5027 = vsel %vm4771, %v2797, %v4899
      %v5028 = vsel %vm4772, %v3420, %v4900
      %v5029 = vsel %vm4773, %v4043, %v4901
      %v5030 = vsel %vm4774, %v4666, %v4902
      %v5031 = vsel %vm4775, %v2800, %v4903
      %v5032 = vsel %vm4776, %v3423, %v4904
      %v5033 = vsel %vm4777, %v4046, %v4905
      %v5034 = vsel %vm4778, %v4669, %v4906
      %v5035 = vsel %vm4779, %v2802, %v4907
      %v5036 = vsel %vm4780, %v3425, %v4908
      %v5037 = vsel %vm4781, %v4048, %v4909
      %v5038 = vsel %vm4782, %v4671, %v4910
      %v5039 = vsel %vm4783, %v2805, %v4911
      %v5040 = vsel %vm4784, %v3428, %v4912
      %v5041 = vsel %vm4785, %v4051, %v4913
      %v5042 = vsel %vm4786, %v4674, %v4914
      %v5043 = vsel %vm4787, %v2807, %v4915
      %v5044 = vsel %vm4788, %v3430, %v4916
      %v5045 = vsel %vm4789, %v4053, %v4917
      %v5046 = vsel %vm4790, %v4676, %v4918
      %v5047 = vsel %vm4791, %v2810, %v4919
      %v5048 = vsel %vm4792, %v3433, %v4920
      %v5049 = vsel %vm4793, %v4056, %v4921
      %v5050 = vsel %vm4794, %v4679, %v4922
      %v5051 = vsel %vm4795, %v2812, %v4923
      %v5052 = vsel %vm4796, %v3435, %v4924
      %v5053 = vsel %vm4797, %v4058, %v4925
      %v5054 = vsel %vm4798, %v4681, %v4926
      %v5055 = vsel %vm4799, %v2815, %v4927
      %v5056 = vsel %vm4800, %v3438, %v4928
      %v5057 = vsel %vm4801, %v4061, %v4929
      %v5058 = vsel %vm4802, %v4684, %v4930
      %v5059 = vsel %vm4803, %v2817, %v4931
      %v5060 = vsel %vm4804, %v3440, %v4932
      %v5061 = vsel %vm4805, %v4063, %v4933
      %v5062 = vsel %vm4806, %v4686, %v4934
      %v5063 = vsel %vm4807, %v2820, %v4935
      %v5064 = vsel %vm4808, %v3443, %v4936
      %v5065 = vsel %vm4809, %v4066, %v4937
      %v5066 = vsel %vm4810, %v4689, %v4938
      %v5067 = vsel %vm4811, %v2822, %v4939
      %v5068 = vsel %vm4812, %v3445, %v4940
      %v5069 = vsel %vm4813, %v4068, %v4941
      %v5070 = vsel %vm4814, %v4691, %v4942
      %v5071 = vsel %vm4815, %v2825, %v4943
      %v5072 = vsel %vm4816, %v3448, %v4944
      %v5073 = vsel %vm4817, %v4071, %v4945
      %v5074 = vsel %vm4818, %v4694, %v4946
      %v5075 = vsel %vm4819, %v2827, %v4947
      %v5076 = vsel %vm4820, %v3450, %v4948
      %v5077 = vsel %vm4821, %v4073, %v4949
      %v5078 = vsel %vm4822, %v4696, %v4950
      %v5079 = vsel %vm4823, %v2830, %v4951
      %v5080 = vsel %vm4824, %v3453, %v4952
      %v5081 = vsel %vm4825, %v4076, %v4953
      %v5082 = vsel %vm4826, %v4699, %v4954
      %v5083 = vsel %vm4827, %v2832, %v4955
      %v5084 = vsel %vm4828, %v3455, %v4956
      %v5085 = vsel %vm4829, %v4078, %v4957
      %v5086 = vsel %vm4830, %v4701, %v4958
      %v5087 = vpack.c.bf16 %v4963, %v4959
      %v5088 = vpack.c.bf16 %v4964, %v4960
      %v5089 = vpack.c.bf16 %v4965, %v4961
      %v5090 = vpack.c.bf16 %v4966, %v4962
      %v5091 = vpack.c.bf16 %v4971, %v4967
      %v5092 = vpack.c.bf16 %v4972, %v4968
      %v5093 = vpack.c.bf16 %v4973, %v4969
      %v5094 = vpack.c.bf16 %v4974, %v4970
      %v5095 = vpack.c.bf16 %v4979, %v4975
      %v5096 = vpack.c.bf16 %v4980, %v4976
      %v5097 = vpack.c.bf16 %v4981, %v4977
      %v5098 = vpack.c.bf16 %v4982, %v4978
      %v5099 = vpack.c.bf16 %v4987, %v4983
      %v5100 = vpack.c.bf16 %v4988, %v4984
      %v5101 = vpack.c.bf16 %v4989, %v4985
      %v5102 = vpack.c.bf16 %v4990, %v4986
      %v5103 = vpack.c.bf16 %v4995, %v4991
      %v5104 = vpack.c.bf16 %v4996, %v4992
      %v5105 = vpack.c.bf16 %v4997, %v4993
      %v5106 = vpack.c.bf16 %v4998, %v4994
      %v5107 = vpack.c.bf16 %v5003, %v4999
      %v5108 = vpack.c.bf16 %v5004, %v5000
      %v5109 = vpack.c.bf16 %v5005, %v5001
      %v5110 = vpack.c.bf16 %v5006, %v5002
      %v5111 = vpack.c.bf16 %v5011, %v5007
      %v5112 = vpack.c.bf16 %v5012, %v5008
      %v5113 = vpack.c.bf16 %v5013, %v5009
      %v5114 = vpack.c.bf16 %v5014, %v5010
      %v5115 = vpack.c.bf16 %v5019, %v5015
      %v5116 = vpack.c.bf16 %v5020, %v5016
      %v5117 = vpack.c.bf16 %v5021, %v5017
      %v5118 = vpack.c.bf16 %v5022, %v5018
      %v5119 = vpack.c.bf16 %v5027, %v5023
      %v5120 = vpack.c.bf16 %v5028, %v5024
      %v5121 = vpack.c.bf16 %v5029, %v5025
      %v5122 = vpack.c.bf16 %v5030, %v5026
      %v5123 = vpack.c.bf16 %v5035, %v5031
      %v5124 = vpack.c.bf16 %v5036, %v5032
      %v5125 = vpack.c.bf16 %v5037, %v5033
      %v5126 = vpack.c.bf16 %v5038, %v5034
      %v5127 = vpack.c.bf16 %v5043, %v5039
      %v5128 = vpack.c.bf16 %v5044, %v5040
      %v5129 = vpack.c.bf16 %v5045, %v5041
      %v5130 = vpack.c.bf16 %v5046, %v5042
      %v5131 = vpack.c.bf16 %v5051, %v5047
      %v5132 = vpack.c.bf16 %v5052, %v5048
      %v5133 = vpack.c.bf16 %v5053, %v5049
      %v5134 = vpack.c.bf16 %v5054, %v5050
      %v5135 = vpack.c.bf16 %v5059, %v5055
      %v5136 = vpack.c.bf16 %v5060, %v5056
      %v5137 = vpack.c.bf16 %v5061, %v5057
      %v5138 = vpack.c.bf16 %v5062, %v5058
      %v5139 = vpack.c.bf16 %v5067, %v5063
      %v5140 = vpack.c.bf16 %v5068, %v5064
      %v5141 = vpack.c.bf16 %v5069, %v5065
      %v5142 = vpack.c.bf16 %v5070, %v5066
      %v5143 = vpack.c.bf16 %v5075, %v5071
      %v5144 = vpack.c.bf16 %v5076, %v5072
      %v5145 = vpack.c.bf16 %v5077, %v5073
      %v5146 = vpack.c.bf16 %v5078, %v5074
      %v5147 = vpack.c.bf16 %v5083, %v5079
      %v5148 = vpack.c.bf16 %v5084, %v5080
      %v5149 = vpack.c.bf16 %v5085, %v5081
      %v5150 = vpack.c.bf16 %v5086, %v5082
      %v5151 = vld [vmem:[%s3] sm:$0xff]
      %v5152 = vld [vmem:[%s3 + $0x8] sm:$0xff]
      %v5153 = vld [vmem:[%s3 + $0x10] sm:$0xff]
      %v5154 = vld [vmem:[%s3 + $0x18] sm:$0xff]
      %v5155 = vld [vmem:[%s3 + $0x20] sm:$0xff]
      %v5156 = vld [vmem:[%s3 + $0x28] sm:$0xff]
      %v5157 = vld [vmem:[%s3 + $0x30] sm:$0xff]
      %v5158 = vld [vmem:[%s3 + $0x38] sm:$0xff]
      %v5159 = vld [vmem:[%s3 + $0x40] sm:$0xff]
      %v5160 = vld [vmem:[%s3 + $0x48] sm:$0xff]
      %v5161 = vld [vmem:[%s3 + $0x50] sm:$0xff]
      %v5162 = vld [vmem:[%s3 + $0x58] sm:$0xff]
      %v5163 = vld [vmem:[%s3 + $0x60] sm:$0xff]
      %v5164 = vld [vmem:[%s3 + $0x68] sm:$0xff]
      %v5165 = vld [vmem:[%s3 + $0x70] sm:$0xff]
      %v5166 = vld [vmem:[%s3 + $0x78] sm:$0xff]
      %v5167 = vld [vmem:[%s3 + $0x80] sm:$0xff]
      %v5168 = vld [vmem:[%s3 + $0x88] sm:$0xff]
      %v5169 = vld [vmem:[%s3 + $0x90] sm:$0xff]
      %v5170 = vld [vmem:[%s3 + $0x98] sm:$0xff]
      %v5171 = vld [vmem:[%s3 + $0xa0] sm:$0xff]
      %v5172 = vld [vmem:[%s3 + $0xa8] sm:$0xff]
      %v5173 = vld [vmem:[%s3 + $0xb0] sm:$0xff]
      %v5174 = vld [vmem:[%s3 + $0xb8] sm:$0xff]
      %v5175 = vld [vmem:[%s3 + $0xc0] sm:$0xff]
      %v5176 = vld [vmem:[%s3 + $0xc8] sm:$0xff]
      %v5177 = vld [vmem:[%s3 + $0xd0] sm:$0xff]
      %v5178 = vld [vmem:[%s3 + $0xd8] sm:$0xff]
      %v5179 = vld [vmem:[%s3 + $0xe0] sm:$0xff]
      %v5180 = vld [vmem:[%s3 + $0xe8] sm:$0xff]
      %v5181 = vld [vmem:[%s3 + $0xf0] sm:$0xff]
      %v5182 = vld [vmem:[%s3 + $0xf8] sm:$0xff]
      %v5183 = vld [vmem:[%s3 + $0x100] sm:$0xff]
      %v5184 = vld [vmem:[%s3 + $0x108] sm:$0xff]
      %v5185 = vld [vmem:[%s3 + $0x110] sm:$0xff]
      %v5186 = vld [vmem:[%s3 + $0x118] sm:$0xff]
      %v5187 = vld [vmem:[%s3 + $0x120] sm:$0xff]
      %v5188 = vld [vmem:[%s3 + $0x128] sm:$0xff]
      %v5189 = vld [vmem:[%s3 + $0x130] sm:$0xff]
      %v5190 = vld [vmem:[%s3 + $0x138] sm:$0xff]
      %v5191 = vld [vmem:[%s3 + $0x140] sm:$0xff]
      %v5192 = vld [vmem:[%s3 + $0x148] sm:$0xff]
      %v5193 = vld [vmem:[%s3 + $0x150] sm:$0xff]
      %v5194 = vld [vmem:[%s3 + $0x158] sm:$0xff]
      %v5195 = vld [vmem:[%s3 + $0x160] sm:$0xff]
      %v5196 = vld [vmem:[%s3 + $0x168] sm:$0xff]
      %v5197 = vld [vmem:[%s3 + $0x170] sm:$0xff]
      %v5198 = vld [vmem:[%s3 + $0x178] sm:$0xff]
      %v5199 = vld [vmem:[%s3 + $0x180] sm:$0xff]
      %v5200 = vld [vmem:[%s3 + $0x188] sm:$0xff]
      %v5201 = vld [vmem:[%s3 + $0x190] sm:$0xff]
      %v5202 = vld [vmem:[%s3 + $0x198] sm:$0xff]
      %v5203 = vld [vmem:[%s3 + $0x1a0] sm:$0xff]
      %v5204 = vld [vmem:[%s3 + $0x1a8] sm:$0xff]
      %v5205 = vld [vmem:[%s3 + $0x1b0] sm:$0xff]
      %v5206 = vld [vmem:[%s3 + $0x1b8] sm:$0xff]
      %v5207 = vld [vmem:[%s3 + $0x1c0] sm:$0xff]
      %v5208 = vld [vmem:[%s3 + $0x1c8] sm:$0xff]
      %v5209 = vld [vmem:[%s3 + $0x1d0] sm:$0xff]
      %v5210 = vld [vmem:[%s3 + $0x1d8] sm:$0xff]
      %v5211 = vld [vmem:[%s3 + $0x1e0] sm:$0xff]
      %v5212 = vld [vmem:[%s3 + $0x1e8] sm:$0xff]
      %v5213 = vld [vmem:[%s3 + $0x1f0] sm:$0xff]
      %v5214 = vld [vmem:[%s3 + $0x1f8] sm:$0xff]
      %v5215 = vld [vmem:[%s4] sm:$0x3]
      %v5217 = vperm.slane %v5215, 0
      %v5218 = vperm.slane %v5215, 1
      %v5285 = vunpack.c.l.b16 %v5151
      %v5286 = vunpack.c.h.b16 %v5151
      %v5287 = vunpack.c.l.b16 %v5152
      %v5288 = vunpack.c.h.b16 %v5152
      %v5289 = vunpack.c.l.b16 %v5153
      %v5290 = vunpack.c.h.b16 %v5153
      %v5291 = vunpack.c.l.b16 %v5154
      %v5292 = vunpack.c.h.b16 %v5154
      %v5293 = vunpack.c.l.b16 %v5155
      %v5294 = vunpack.c.h.b16 %v5155
      %v5295 = vunpack.c.l.b16 %v5156
      %v5296 = vunpack.c.h.b16 %v5156
      %v5297 = vunpack.c.l.b16 %v5157
      %v5298 = vunpack.c.h.b16 %v5157
      %v5299 = vunpack.c.l.b16 %v5158
      %v5300 = vunpack.c.h.b16 %v5158
      %v5301 = vunpack.c.l.b16 %v5159
      %v5302 = vunpack.c.h.b16 %v5159
      %v5303 = vunpack.c.l.b16 %v5160
      %v5304 = vunpack.c.h.b16 %v5160
      %v5305 = vunpack.c.l.b16 %v5161
      %v5306 = vunpack.c.h.b16 %v5161
      %v5307 = vunpack.c.l.b16 %v5162
      %v5308 = vunpack.c.h.b16 %v5162
      %v5309 = vunpack.c.l.b16 %v5163
      %v5310 = vunpack.c.h.b16 %v5163
      %v5311 = vunpack.c.l.b16 %v5164
      %v5312 = vunpack.c.h.b16 %v5164
      %v5313 = vunpack.c.l.b16 %v5165
      %v5314 = vunpack.c.h.b16 %v5165
      %v5315 = vunpack.c.l.b16 %v5166
      %v5316 = vunpack.c.h.b16 %v5166
      %v5317 = vunpack.c.l.b16 %v5167
      %v5318 = vunpack.c.h.b16 %v5167
      %v5319 = vunpack.c.l.b16 %v5168
      %v5320 = vunpack.c.h.b16 %v5168
      %v5321 = vunpack.c.l.b16 %v5169
      %v5322 = vunpack.c.h.b16 %v5169
      %v5323 = vunpack.c.l.b16 %v5170
      %v5324 = vunpack.c.h.b16 %v5170
      %v5325 = vunpack.c.l.b16 %v5171
      %v5326 = vunpack.c.h.b16 %v5171
      %v5327 = vunpack.c.l.b16 %v5172
      %v5328 = vunpack.c.h.b16 %v5172
      %v5329 = vunpack.c.l.b16 %v5173
      %v5330 = vunpack.c.h.b16 %v5173
      %v5331 = vunpack.c.l.b16 %v5174
      %v5332 = vunpack.c.h.b16 %v5174
      %v5333 = vunpack.c.l.b16 %v5175
      %v5334 = vunpack.c.h.b16 %v5175
      %v5335 = vunpack.c.l.b16 %v5176
      %v5336 = vunpack.c.h.b16 %v5176
      %v5337 = vunpack.c.l.b16 %v5177
      %v5338 = vunpack.c.h.b16 %v5177
      %v5339 = vunpack.c.l.b16 %v5178
      %v5340 = vunpack.c.h.b16 %v5178
      %v5341 = vunpack.c.l.b16 %v5179
      %v5342 = vunpack.c.h.b16 %v5179
      %v5343 = vunpack.c.l.b16 %v5180
      %v5344 = vunpack.c.h.b16 %v5180
      %v5345 = vunpack.c.l.b16 %v5181
      %v5346 = vunpack.c.h.b16 %v5181
      %v5347 = vunpack.c.l.b16 %v5182
      %v5348 = vunpack.c.h.b16 %v5182
      %v5349 = vunpack.c.l.b16 %v5183
      %v5350 = vunpack.c.h.b16 %v5183
      %v5351 = vunpack.c.l.b16 %v5184
      %v5352 = vunpack.c.h.b16 %v5184
      %v5353 = vunpack.c.l.b16 %v5185
      %v5354 = vunpack.c.h.b16 %v5185
      %v5355 = vunpack.c.l.b16 %v5186
      %v5356 = vunpack.c.h.b16 %v5186
      %v5357 = vunpack.c.l.b16 %v5187
      %v5358 = vunpack.c.h.b16 %v5187
      %v5359 = vunpack.c.l.b16 %v5188
      %v5360 = vunpack.c.h.b16 %v5188
      %v5361 = vunpack.c.l.b16 %v5189
      %v5362 = vunpack.c.h.b16 %v5189
      %v5363 = vunpack.c.l.b16 %v5190
      %v5364 = vunpack.c.h.b16 %v5190
      %v5365 = vunpack.c.l.b16 %v5191
      %v5366 = vunpack.c.h.b16 %v5191
      %v5367 = vunpack.c.l.b16 %v5192
      %v5368 = vunpack.c.h.b16 %v5192
      %v5369 = vunpack.c.l.b16 %v5193
      %v5370 = vunpack.c.h.b16 %v5193
      %v5371 = vunpack.c.l.b16 %v5194
      %v5372 = vunpack.c.h.b16 %v5194
      %v5373 = vunpack.c.l.b16 %v5195
      %v5374 = vunpack.c.h.b16 %v5195
      %v5375 = vunpack.c.l.b16 %v5196
      %v5376 = vunpack.c.h.b16 %v5196
      %v5377 = vunpack.c.l.b16 %v5197
      %v5378 = vunpack.c.h.b16 %v5197
      %v5379 = vunpack.c.l.b16 %v5198
      %v5380 = vunpack.c.h.b16 %v5198
      %v5381 = vunpack.c.l.b16 %v5199
      %v5382 = vunpack.c.h.b16 %v5199
      %v5383 = vunpack.c.l.b16 %v5200
      %v5384 = vunpack.c.h.b16 %v5200
      %v5385 = vunpack.c.l.b16 %v5201
      %v5386 = vunpack.c.h.b16 %v5201
      %v5387 = vunpack.c.l.b16 %v5202
      %v5388 = vunpack.c.h.b16 %v5202
      %v5389 = vunpack.c.l.b16 %v5203
      %v5390 = vunpack.c.h.b16 %v5203
      %v5391 = vunpack.c.l.b16 %v5204
      %v5392 = vunpack.c.h.b16 %v5204
      %v5393 = vunpack.c.l.b16 %v5205
      %v5394 = vunpack.c.h.b16 %v5205
      %v5395 = vunpack.c.l.b16 %v5206
      %v5396 = vunpack.c.h.b16 %v5206
      %v5397 = vunpack.c.l.b16 %v5207
      %v5398 = vunpack.c.h.b16 %v5207
      %v5399 = vunpack.c.l.b16 %v5208
      %v5400 = vunpack.c.h.b16 %v5208
      %v5401 = vunpack.c.l.b16 %v5209
      %v5402 = vunpack.c.h.b16 %v5209
      %v5403 = vunpack.c.l.b16 %v5210
      %v5404 = vunpack.c.h.b16 %v5210
      %v5405 = vunpack.c.l.b16 %v5211
      %v5406 = vunpack.c.h.b16 %v5211
      %v5407 = vunpack.c.l.b16 %v5212
      %v5408 = vunpack.c.h.b16 %v5212
      %v5409 = vunpack.c.l.b16 %v5213
      %v5410 = vunpack.c.h.b16 %v5213
      %v5411 = vunpack.c.l.b16 %v5214
      %v5412 = vunpack.c.h.b16 %v5214
      %v5413 = vpack.c.b16 %v5287, %v5285
      %v5414 = vpack.c.b16 %v5288, %v5286
      %v5415 = vpack.c.b16 %v5291, %v5289
      %v5416 = vpack.c.b16 %v5292, %v5290
      %v5417 = vpack.c.b16 %v5295, %v5293
      %v5418 = vpack.c.b16 %v5296, %v5294
      %v5419 = vpack.c.b16 %v5299, %v5297
      %v5420 = vpack.c.b16 %v5300, %v5298
      %v5421 = vpack.c.b16 %v5303, %v5301
      %v5422 = vpack.c.b16 %v5304, %v5302
      %v5423 = vpack.c.b16 %v5307, %v5305
      %v5424 = vpack.c.b16 %v5308, %v5306
      %v5425 = vpack.c.b16 %v5311, %v5309
      %v5426 = vpack.c.b16 %v5312, %v5310
      %v5427 = vpack.c.b16 %v5315, %v5313
      %v5428 = vpack.c.b16 %v5316, %v5314
      %v5429 = vpack.c.b16 %v5319, %v5317
      %v5430 = vpack.c.b16 %v5320, %v5318
      %v5431 = vpack.c.b16 %v5323, %v5321
      %v5432 = vpack.c.b16 %v5324, %v5322
      %v5433 = vpack.c.b16 %v5327, %v5325
      %v5434 = vpack.c.b16 %v5328, %v5326
      %v5435 = vpack.c.b16 %v5331, %v5329
      %v5436 = vpack.c.b16 %v5332, %v5330
      %v5437 = vpack.c.b16 %v5335, %v5333
      %v5438 = vpack.c.b16 %v5336, %v5334
      %v5439 = vpack.c.b16 %v5339, %v5337
      %v5440 = vpack.c.b16 %v5340, %v5338
      %v5441 = vpack.c.b16 %v5343, %v5341
      %v5442 = vpack.c.b16 %v5344, %v5342
      %v5443 = vpack.c.b16 %v5347, %v5345
      %v5444 = vpack.c.b16 %v5348, %v5346
      %v5445 = vpack.c.b16 %v5351, %v5349
      %v5446 = vpack.c.b16 %v5352, %v5350
      %v5447 = vpack.c.b16 %v5355, %v5353
      %v5448 = vpack.c.b16 %v5356, %v5354
      %v5449 = vpack.c.b16 %v5359, %v5357
      %v5450 = vpack.c.b16 %v5360, %v5358
      %v5451 = vpack.c.b16 %v5363, %v5361
      %v5452 = vpack.c.b16 %v5364, %v5362
      %v5453 = vpack.c.b16 %v5367, %v5365
      %v5454 = vpack.c.b16 %v5368, %v5366
      %v5455 = vpack.c.b16 %v5371, %v5369
      %v5456 = vpack.c.b16 %v5372, %v5370
      %v5457 = vpack.c.b16 %v5375, %v5373
      %v5458 = vpack.c.b16 %v5376, %v5374
      %v5459 = vpack.c.b16 %v5379, %v5377
      %v5460 = vpack.c.b16 %v5380, %v5378
      %v5461 = vpack.c.b16 %v5383, %v5381
      %v5462 = vpack.c.b16 %v5384, %v5382
      %v5463 = vpack.c.b16 %v5387, %v5385
      %v5464 = vpack.c.b16 %v5388, %v5386
      %v5465 = vpack.c.b16 %v5391, %v5389
      %v5466 = vpack.c.b16 %v5392, %v5390
      %v5467 = vpack.c.b16 %v5395, %v5393
      %v5468 = vpack.c.b16 %v5396, %v5394
      %v5469 = vpack.c.b16 %v5399, %v5397
      %v5470 = vpack.c.b16 %v5400, %v5398
      %v5471 = vpack.c.b16 %v5403, %v5401
      %v5472 = vpack.c.b16 %v5404, %v5402
      %v5473 = vpack.c.b16 %v5407, %v5405
      %v5474 = vpack.c.b16 %v5408, %v5406
      %v5475 = vpack.c.b16 %v5411, %v5409
      %v5476 = vpack.c.b16 %v5412, %v5410
      %5541 = vmatpush.bf16.msra.mxu0 %v5427
      %5542 = vmatpush.bf16.msra.mxu0 %v5425
      %5543 = vmatpush.bf16.msra.mxu0 %v5423
      %5544 = vmatpush.bf16.msra.mxu0 %v5421
      %5545 = vmatpush.bf16.msra.mxu0 %v5419
      %5546 = vmatpush.bf16.msra.mxu0 %v5417
      %5547 = vmatpush.bf16.msra.mxu0 %v5415
      %5548 = vmatpush.bf16.msra.mxu0 %v5413
      %5549 = vmatmul.bf16.gmra.mxu0 %v5087
      %v5550 = vpop.f32.mrf.mxu0
      %v5551 = vadd.f32 %v5217, %v5550
      %v5552 = vpop.f32.mrf.mxu0
      %v5553 = vadd.f32 %v5217, %v5552
      %5554 = vmatmul.bf16.gmra.mxu0 %v5091
      %v5555 = vpop.f32.mrf.mxu0
      %v5556 = vadd.f32 %v5217, %v5555
      %v5557 = vpop.f32.mrf.mxu0
      %v5558 = vadd.f32 %v5217, %v5557
      %5559 = vmatmul.bf16.gmra.mxu0 %v5095
      %v5560 = vpop.f32.mrf.mxu0
      %v5561 = vadd.f32 %v5217, %v5560
      %v5562 = vpop.f32.mrf.mxu0
      %v5563 = vadd.f32 %v5217, %v5562
      %5564 = vmatmul.bf16.gmra.mxu0 %v5099
      %v5565 = vpop.f32.mrf.mxu0
      %v5566 = vadd.f32 %v5217, %v5565
      %v5567 = vpop.f32.mrf.mxu0
      %v5568 = vadd.f32 %v5217, %v5567
      %5569 = vmatmul.bf16.gmra.mxu0 %v5103
      %v5570 = vpop.f32.mrf.mxu0
      %v5571 = vadd.f32 %v5217, %v5570
      %v5572 = vpop.f32.mrf.mxu0
      %v5573 = vadd.f32 %v5217, %v5572
      %5574 = vmatmul.bf16.gmra.mxu0 %v5107
      %v5575 = vpop.f32.mrf.mxu0
      %v5576 = vadd.f32 %v5217, %v5575
      %v5577 = vpop.f32.mrf.mxu0
      %v5578 = vadd.f32 %v5217, %v5577
      %5579 = vmatmul.bf16.gmra.mxu0 %v5111
      %v5580 = vpop.f32.mrf.mxu0
      %v5581 = vadd.f32 %v5217, %v5580
      %v5582 = vpop.f32.mrf.mxu0
      %v5583 = vadd.f32 %v5217, %v5582
      %5584 = vmatmul.bf16.gmra.mxu0 %v5115
      %v5585 = vpop.f32.mrf.mxu0
      %v5586 = vadd.f32 %v5217, %v5585
      %v5587 = vpop.f32.mrf.mxu0
      %v5588 = vadd.f32 %v5217, %v5587
      %5589 = vmatmul.bf16.gmra.mxu0 %v5119
      %v5590 = vpop.f32.mrf.mxu0
      %v5591 = vadd.f32 %v5217, %v5590
      %v5592 = vpop.f32.mrf.mxu0
      %v5593 = vadd.f32 %v5217, %v5592
      %5594 = vmatmul.bf16.gmra.mxu0 %v5123
      %v5595 = vpop.f32.mrf.mxu0
      %v5596 = vadd.f32 %v5217, %v5595
      %v5597 = vpop.f32.mrf.mxu0
      %v5598 = vadd.f32 %v5217, %v5597
      %5599 = vmatmul.bf16.gmra.mxu0 %v5127
      %v5600 = vpop.f32.mrf.mxu0
      %v5601 = vadd.f32 %v5217, %v5600
      %v5602 = vpop.f32.mrf.mxu0
      %v5603 = vadd.f32 %v5217, %v5602
      %5604 = vmatmul.bf16.gmra.mxu0 %v5131
      %v5605 = vpop.f32.mrf.mxu0
      %v5606 = vadd.f32 %v5217, %v5605
      %v5607 = vpop.f32.mrf.mxu0
      %v5608 = vadd.f32 %v5217, %v5607
      %5609 = vmatmul.bf16.gmra.mxu0 %v5135
      %v5610 = vpop.f32.mrf.mxu0
      %v5611 = vadd.f32 %v5217, %v5610
      %v5612 = vpop.f32.mrf.mxu0
      %v5613 = vadd.f32 %v5217, %v5612
      %5614 = vmatmul.bf16.gmra.mxu0 %v5139
      %v5615 = vpop.f32.mrf.mxu0
      %v5616 = vadd.f32 %v5217, %v5615
      %v5617 = vpop.f32.mrf.mxu0
      %v5618 = vadd.f32 %v5217, %v5617
      %5619 = vmatmul.bf16.gmra.mxu0 %v5143
      %v5620 = vpop.f32.mrf.mxu0
      %v5621 = vadd.f32 %v5217, %v5620
      %v5622 = vpop.f32.mrf.mxu0
      %v5623 = vadd.f32 %v5217, %v5622
      %5624 = vmatmul.bf16.gmra.mxu0 %v5147
      %v5625 = vpop.f32.mrf.mxu0
      %v5626 = vadd.f32 %v5217, %v5625
      %v5627 = vpop.f32.mrf.mxu0
      %v5628 = vadd.f32 %v5217, %v5627
      %5629 = vdwg.mxu0
      %5630 = vmatpush.bf16.msra.mxu0 %v5443
      %5631 = vmatpush.bf16.msra.mxu0 %v5441
      %5632 = vmatpush.bf16.msra.mxu0 %v5439
      %5633 = vmatpush.bf16.msra.mxu0 %v5437
      %5634 = vmatpush.bf16.msra.mxu0 %v5435
      %5635 = vmatpush.bf16.msra.mxu0 %v5433
      %5636 = vmatpush.bf16.msra.mxu0 %v5431
      %5637 = vmatpush.bf16.msra.mxu0 %v5429
      %5638 = vmatmul.bf16.gmra.mxu0 %v5088
      %v5639 = vpop.f32.mrf.mxu0
      %v5640 = vadd.f32 %v5551, %v5639
      %v5641 = vpop.f32.mrf.mxu0
      %v5642 = vadd.f32 %v5553, %v5641
      %5643 = vmatmul.bf16.gmra.mxu0 %v5092
      %v5644 = vpop.f32.mrf.mxu0
      %v5645 = vadd.f32 %v5556, %v5644
      %v5646 = vpop.f32.mrf.mxu0
      %v5647 = vadd.f32 %v5558, %v5646
      %5648 = vmatmul.bf16.gmra.mxu0 %v5096
      %v5649 = vpop.f32.mrf.mxu0
      %v5650 = vadd.f32 %v5561, %v5649
      %v5651 = vpop.f32.mrf.mxu0
      %v5652 = vadd.f32 %v5563, %v5651
      %5653 = vmatmul.bf16.gmra.mxu0 %v5100
      %v5654 = vpop.f32.mrf.mxu0
      %v5655 = vadd.f32 %v5566, %v5654
      %v5656 = vpop.f32.mrf.mxu0
      %v5657 = vadd.f32 %v5568, %v5656
      %5658 = vmatmul.bf16.gmra.mxu0 %v5104
      %v5659 = vpop.f32.mrf.mxu0
      %v5660 = vadd.f32 %v5571, %v5659
      %v5661 = vpop.f32.mrf.mxu0
      %v5662 = vadd.f32 %v5573, %v5661
      %5663 = vmatmul.bf16.gmra.mxu0 %v5108
      %v5664 = vpop.f32.mrf.mxu0
      %v5665 = vadd.f32 %v5576, %v5664
      %v5666 = vpop.f32.mrf.mxu0
      %v5667 = vadd.f32 %v5578, %v5666
      %5668 = vmatmul.bf16.gmra.mxu0 %v5112
      %v5669 = vpop.f32.mrf.mxu0
      %v5670 = vadd.f32 %v5581, %v5669
      %v5671 = vpop.f32.mrf.mxu0
      %v5672 = vadd.f32 %v5583, %v5671
      %5673 = vmatmul.bf16.gmra.mxu0 %v5116
      %v5674 = vpop.f32.mrf.mxu0
      %v5675 = vadd.f32 %v5586, %v5674
      %v5676 = vpop.f32.mrf.mxu0
      %v5677 = vadd.f32 %v5588, %v5676
      %5678 = vmatmul.bf16.gmra.mxu0 %v5120
      %v5679 = vpop.f32.mrf.mxu0
      %v5680 = vadd.f32 %v5591, %v5679
      %v5681 = vpop.f32.mrf.mxu0
      %v5682 = vadd.f32 %v5593, %v5681
      %5683 = vmatmul.bf16.gmra.mxu0 %v5124
      %v5684 = vpop.f32.mrf.mxu0
      %v5685 = vadd.f32 %v5596, %v5684
      %v5686 = vpop.f32.mrf.mxu0
      %v5687 = vadd.f32 %v5598, %v5686
      %5688 = vmatmul.bf16.gmra.mxu0 %v5128
      %v5689 = vpop.f32.mrf.mxu0
      %v5690 = vadd.f32 %v5601, %v5689
      %v5691 = vpop.f32.mrf.mxu0
      %v5692 = vadd.f32 %v5603, %v5691
      %5693 = vmatmul.bf16.gmra.mxu0 %v5132
      %v5694 = vpop.f32.mrf.mxu0
      %v5695 = vadd.f32 %v5606, %v5694
      %v5696 = vpop.f32.mrf.mxu0
      %v5697 = vadd.f32 %v5608, %v5696
      %5698 = vmatmul.bf16.gmra.mxu0 %v5136
      %v5699 = vpop.f32.mrf.mxu0
      %v5700 = vadd.f32 %v5611, %v5699
      %v5701 = vpop.f32.mrf.mxu0
      %v5702 = vadd.f32 %v5613, %v5701
      %5703 = vmatmul.bf16.gmra.mxu0 %v5140
      %v5704 = vpop.f32.mrf.mxu0
      %v5705 = vadd.f32 %v5616, %v5704
      %v5706 = vpop.f32.mrf.mxu0
      %v5707 = vadd.f32 %v5618, %v5706
      %5708 = vmatmul.bf16.gmra.mxu0 %v5144
      %v5709 = vpop.f32.mrf.mxu0
      %v5710 = vadd.f32 %v5621, %v5709
      %v5711 = vpop.f32.mrf.mxu0
      %v5712 = vadd.f32 %v5623, %v5711
      %5713 = vmatmul.bf16.gmra.mxu0 %v5148
      %v5714 = vpop.f32.mrf.mxu0
      %v5715 = vadd.f32 %v5626, %v5714
      %v5716 = vpop.f32.mrf.mxu0
      %v5717 = vadd.f32 %v5628, %v5716
      %5718 = vdwg.mxu0
      %5719 = vmatpush.bf16.msra.mxu0 %v5459
      %5720 = vmatpush.bf16.msra.mxu0 %v5457
      %5721 = vmatpush.bf16.msra.mxu0 %v5455
      %5722 = vmatpush.bf16.msra.mxu0 %v5453
      %5723 = vmatpush.bf16.msra.mxu0 %v5451
      %5724 = vmatpush.bf16.msra.mxu0 %v5449
      %5725 = vmatpush.bf16.msra.mxu0 %v5447
      %5726 = vmatpush.bf16.msra.mxu0 %v5445
      %5727 = vmatmul.bf16.gmra.mxu0 %v5089
      %v5728 = vpop.f32.mrf.mxu0
      %v5729 = vadd.f32 %v5640, %v5728
      %v5730 = vpop.f32.mrf.mxu0
      %v5731 = vadd.f32 %v5642, %v5730
      %5732 = vmatmul.bf16.gmra.mxu0 %v5093
      %v5733 = vpop.f32.mrf.mxu0
      %v5734 = vadd.f32 %v5645, %v5733
      %v5735 = vpop.f32.mrf.mxu0
      %v5736 = vadd.f32 %v5647, %v5735
      %5737 = vmatmul.bf16.gmra.mxu0 %v5097
      %v5738 = vpop.f32.mrf.mxu0
      %v5739 = vadd.f32 %v5650, %v5738
      %v5740 = vpop.f32.mrf.mxu0
      %v5741 = vadd.f32 %v5652, %v5740
      %5742 = vmatmul.bf16.gmra.mxu0 %v5101
      %v5743 = vpop.f32.mrf.mxu0
      %v5744 = vadd.f32 %v5655, %v5743
      %v5745 = vpop.f32.mrf.mxu0
      %v5746 = vadd.f32 %v5657, %v5745
      %5747 = vmatmul.bf16.gmra.mxu0 %v5105
      %v5748 = vpop.f32.mrf.mxu0
      %v5749 = vadd.f32 %v5660, %v5748
      %v5750 = vpop.f32.mrf.mxu0
      %v5751 = vadd.f32 %v5662, %v5750
      %5752 = vmatmul.bf16.gmra.mxu0 %v5109
      %v5753 = vpop.f32.mrf.mxu0
      %v5754 = vadd.f32 %v5665, %v5753
      %v5755 = vpop.f32.mrf.mxu0
      %v5756 = vadd.f32 %v5667, %v5755
      %5757 = vmatmul.bf16.gmra.mxu0 %v5113
      %v5758 = vpop.f32.mrf.mxu0
      %v5759 = vadd.f32 %v5670, %v5758
      %v5760 = vpop.f32.mrf.mxu0
      %v5761 = vadd.f32 %v5672, %v5760
      %5762 = vmatmul.bf16.gmra.mxu0 %v5117
      %v5763 = vpop.f32.mrf.mxu0
      %v5764 = vadd.f32 %v5675, %v5763
      %v5765 = vpop.f32.mrf.mxu0
      %v5766 = vadd.f32 %v5677, %v5765
      %5767 = vmatmul.bf16.gmra.mxu0 %v5121
      %v5768 = vpop.f32.mrf.mxu0
      %v5769 = vadd.f32 %v5680, %v5768
      %v5770 = vpop.f32.mrf.mxu0
      %v5771 = vadd.f32 %v5682, %v5770
      %5772 = vmatmul.bf16.gmra.mxu0 %v5125
      %v5773 = vpop.f32.mrf.mxu0
      %v5774 = vadd.f32 %v5685, %v5773
      %v5775 = vpop.f32.mrf.mxu0
      %v5776 = vadd.f32 %v5687, %v5775
      %5777 = vmatmul.bf16.gmra.mxu0 %v5129
      %v5778 = vpop.f32.mrf.mxu0
      %v5779 = vadd.f32 %v5690, %v5778
      %v5780 = vpop.f32.mrf.mxu0
      %v5781 = vadd.f32 %v5692, %v5780
      %5782 = vmatmul.bf16.gmra.mxu0 %v5133
      %v5783 = vpop.f32.mrf.mxu0
      %v5784 = vadd.f32 %v5695, %v5783
      %v5785 = vpop.f32.mrf.mxu0
      %v5786 = vadd.f32 %v5697, %v5785
      %5787 = vmatmul.bf16.gmra.mxu0 %v5137
      %v5788 = vpop.f32.mrf.mxu0
      %v5789 = vadd.f32 %v5700, %v5788
      %v5790 = vpop.f32.mrf.mxu0
      %v5791 = vadd.f32 %v5702, %v5790
      %5792 = vmatmul.bf16.gmra.mxu0 %v5141
      %v5793 = vpop.f32.mrf.mxu0
      %v5794 = vadd.f32 %v5705, %v5793
      %v5795 = vpop.f32.mrf.mxu0
      %v5796 = vadd.f32 %v5707, %v5795
      %5797 = vmatmul.bf16.gmra.mxu0 %v5145
      %v5798 = vpop.f32.mrf.mxu0
      %v5799 = vadd.f32 %v5710, %v5798
      %v5800 = vpop.f32.mrf.mxu0
      %v5801 = vadd.f32 %v5712, %v5800
      %5802 = vmatmul.bf16.gmra.mxu0 %v5149
      %v5803 = vpop.f32.mrf.mxu0
      %v5804 = vadd.f32 %v5715, %v5803
      %v5805 = vpop.f32.mrf.mxu0
      %v5806 = vadd.f32 %v5717, %v5805
      %5807 = vdwg.mxu0
      %5808 = vmatpush.bf16.msra.mxu0 %v5475
      %5809 = vmatpush.bf16.msra.mxu0 %v5473
      %5810 = vmatpush.bf16.msra.mxu0 %v5471
      %5811 = vmatpush.bf16.msra.mxu0 %v5469
      %5812 = vmatpush.bf16.msra.mxu0 %v5467
      %5813 = vmatpush.bf16.msra.mxu0 %v5465
      %5814 = vmatpush.bf16.msra.mxu0 %v5463
      %5815 = vmatpush.bf16.msra.mxu0 %v5461
      %5816 = vmatmul.bf16.gmra.mxu0 %v5090
      %v5817 = vpop.f32.mrf.mxu0
      %v5818 = vadd.f32 %v5729, %v5817
      %v5819 = vpop.f32.mrf.mxu0
      %v5820 = vadd.f32 %v5731, %v5819
      %5821 = vmatmul.bf16.gmra.mxu0 %v5094
      %v5822 = vpop.f32.mrf.mxu0
      %v5823 = vadd.f32 %v5734, %v5822
      %v5824 = vpop.f32.mrf.mxu0
      %v5825 = vadd.f32 %v5736, %v5824
      %5826 = vmatmul.bf16.gmra.mxu0 %v5098
      %v5827 = vpop.f32.mrf.mxu0
      %v5828 = vadd.f32 %v5739, %v5827
      %v5829 = vpop.f32.mrf.mxu0
      %v5830 = vadd.f32 %v5741, %v5829
      %5831 = vmatmul.bf16.gmra.mxu0 %v5102
      %v5832 = vpop.f32.mrf.mxu0
      %v5833 = vadd.f32 %v5744, %v5832
      %v5834 = vpop.f32.mrf.mxu0
      %v5835 = vadd.f32 %v5746, %v5834
      %5836 = vmatmul.bf16.gmra.mxu0 %v5106
      %v5837 = vpop.f32.mrf.mxu0
      %v5838 = vadd.f32 %v5749, %v5837
      %v5839 = vpop.f32.mrf.mxu0
      %v5840 = vadd.f32 %v5751, %v5839
      %5841 = vmatmul.bf16.gmra.mxu0 %v5110
      %v5842 = vpop.f32.mrf.mxu0
      %v5843 = vadd.f32 %v5754, %v5842
      %v5844 = vpop.f32.mrf.mxu0
      %v5845 = vadd.f32 %v5756, %v5844
      %5846 = vmatmul.bf16.gmra.mxu0 %v5114
      %v5847 = vpop.f32.mrf.mxu0
      %v5848 = vadd.f32 %v5759, %v5847
      %v5849 = vpop.f32.mrf.mxu0
      %v5850 = vadd.f32 %v5761, %v5849
      %5851 = vmatmul.bf16.gmra.mxu0 %v5118
      %v5852 = vpop.f32.mrf.mxu0
      %v5853 = vadd.f32 %v5764, %v5852
      %v5854 = vpop.f32.mrf.mxu0
      %v5855 = vadd.f32 %v5766, %v5854
      %5856 = vmatmul.bf16.gmra.mxu0 %v5122
      %v5857 = vpop.f32.mrf.mxu0
      %v5858 = vadd.f32 %v5769, %v5857
      %v5859 = vpop.f32.mrf.mxu0
      %v5860 = vadd.f32 %v5771, %v5859
      %5861 = vmatmul.bf16.gmra.mxu0 %v5126
      %v5862 = vpop.f32.mrf.mxu0
      %v5863 = vadd.f32 %v5774, %v5862
      %v5864 = vpop.f32.mrf.mxu0
      %v5865 = vadd.f32 %v5776, %v5864
      %5866 = vmatmul.bf16.gmra.mxu0 %v5130
      %v5867 = vpop.f32.mrf.mxu0
      %v5868 = vadd.f32 %v5779, %v5867
      %v5869 = vpop.f32.mrf.mxu0
      %v5870 = vadd.f32 %v5781, %v5869
      %5871 = vmatmul.bf16.gmra.mxu0 %v5134
      %v5872 = vpop.f32.mrf.mxu0
      %v5873 = vadd.f32 %v5784, %v5872
      %v5874 = vpop.f32.mrf.mxu0
      %v5875 = vadd.f32 %v5786, %v5874
      %5876 = vmatmul.bf16.gmra.mxu0 %v5138
      %v5877 = vpop.f32.mrf.mxu0
      %v5878 = vadd.f32 %v5789, %v5877
      %v5879 = vpop.f32.mrf.mxu0
      %v5880 = vadd.f32 %v5791, %v5879
      %5881 = vmatmul.bf16.gmra.mxu0 %v5142
      %v5882 = vpop.f32.mrf.mxu0
      %v5883 = vadd.f32 %v5794, %v5882
      %v5884 = vpop.f32.mrf.mxu0
      %v5885 = vadd.f32 %v5796, %v5884
      %5886 = vmatmul.bf16.gmra.mxu0 %v5146
      %v5887 = vpop.f32.mrf.mxu0
      %v5888 = vadd.f32 %v5799, %v5887
      %v5889 = vpop.f32.mrf.mxu0
      %v5890 = vadd.f32 %v5801, %v5889
      %5891 = vmatmul.bf16.gmra.mxu0 %v5150
      %v5892 = vpop.f32.mrf.mxu0
      %v5893 = vadd.f32 %v5804, %v5892
      %v5894 = vpop.f32.mrf.mxu0
      %v5895 = vadd.f32 %v5806, %v5894
      %5896 = vdwg.mxu0
      %5897 = vmatpush.bf16.msra.mxu0 %v5428
      %5898 = vmatpush.bf16.msra.mxu0 %v5426
      %5899 = vmatpush.bf16.msra.mxu0 %v5424
      %5900 = vmatpush.bf16.msra.mxu0 %v5422
      %5901 = vmatpush.bf16.msra.mxu0 %v5420
      %5902 = vmatpush.bf16.msra.mxu0 %v5418
      %5903 = vmatpush.bf16.msra.mxu0 %v5416
      %5904 = vmatpush.bf16.msra.mxu0 %v5414
      %5905 = vmatmul.bf16.gmra.mxu0 %v5087
      %v5906 = vpop.f32.mrf.mxu0
      %v5907 = vadd.f32 %v5218, %v5906
      %v5908 = vpop.f32.mrf.mxu0
      %v5909 = vadd.f32 %v5218, %v5908
      %5910 = vmatmul.bf16.gmra.mxu0 %v5091
      %v5911 = vpop.f32.mrf.mxu0
      %v5912 = vadd.f32 %v5218, %v5911
      %v5913 = vpop.f32.mrf.mxu0
      %v5914 = vadd.f32 %v5218, %v5913
      %5915 = vmatmul.bf16.gmra.mxu0 %v5095
      %v5916 = vpop.f32.mrf.mxu0
      %v5917 = vadd.f32 %v5218, %v5916
      %v5918 = vpop.f32.mrf.mxu0
      %v5919 = vadd.f32 %v5218, %v5918
      %5920 = vmatmul.bf16.gmra.mxu0 %v5099
      %v5921 = vpop.f32.mrf.mxu0
      %v5922 = vadd.f32 %v5218, %v5921
      %v5923 = vpop.f32.mrf.mxu0
      %v5924 = vadd.f32 %v5218, %v5923
      %5925 = vmatmul.bf16.gmra.mxu0 %v5103
      %v5926 = vpop.f32.mrf.mxu0
      %v5927 = vadd.f32 %v5218, %v5926
      %v5928 = vpop.f32.mrf.mxu0
      %v5929 = vadd.f32 %v5218, %v5928
      %5930 = vmatmul.bf16.gmra.mxu0 %v5107
      %v5931 = vpop.f32.mrf.mxu0
      %v5932 = vadd.f32 %v5218, %v5931
      %v5933 = vpop.f32.mrf.mxu0
      %v5934 = vadd.f32 %v5218, %v5933
      %5935 = vmatmul.bf16.gmra.mxu0 %v5111
      %v5936 = vpop.f32.mrf.mxu0
      %v5937 = vadd.f32 %v5218, %v5936
      %v5938 = vpop.f32.mrf.mxu0
      %v5939 = vadd.f32 %v5218, %v5938
      %5940 = vmatmul.bf16.gmra.mxu0 %v5115
      %v5941 = vpop.f32.mrf.mxu0
      %v5942 = vadd.f32 %v5218, %v5941
      %v5943 = vpop.f32.mrf.mxu0
      %v5944 = vadd.f32 %v5218, %v5943
      %5945 = vmatmul.bf16.gmra.mxu0 %v5119
      %v5946 = vpop.f32.mrf.mxu0
      %v5947 = vadd.f32 %v5218, %v5946
      %v5948 = vpop.f32.mrf.mxu0
      %v5949 = vadd.f32 %v5218, %v5948
      %5950 = vmatmul.bf16.gmra.mxu0 %v5123
      %v5951 = vpop.f32.mrf.mxu0
      %v5952 = vadd.f32 %v5218, %v5951
      %v5953 = vpop.f32.mrf.mxu0
      %v5954 = vadd.f32 %v5218, %v5953
      %5955 = vmatmul.bf16.gmra.mxu0 %v5127
      %v5956 = vpop.f32.mrf.mxu0
      %v5957 = vadd.f32 %v5218, %v5956
      %v5958 = vpop.f32.mrf.mxu0
      %v5959 = vadd.f32 %v5218, %v5958
      %5960 = vmatmul.bf16.gmra.mxu0 %v5131
      %v5961 = vpop.f32.mrf.mxu0
      %v5962 = vadd.f32 %v5218, %v5961
      %v5963 = vpop.f32.mrf.mxu0
      %v5964 = vadd.f32 %v5218, %v5963
      %5965 = vmatmul.bf16.gmra.mxu0 %v5135
      %v5966 = vpop.f32.mrf.mxu0
      %v5967 = vadd.f32 %v5218, %v5966
      %v5968 = vpop.f32.mrf.mxu0
      %v5969 = vadd.f32 %v5218, %v5968
      %5970 = vmatmul.bf16.gmra.mxu0 %v5139
      %v5971 = vpop.f32.mrf.mxu0
      %v5972 = vadd.f32 %v5218, %v5971
      %v5973 = vpop.f32.mrf.mxu0
      %v5974 = vadd.f32 %v5218, %v5973
      %5975 = vmatmul.bf16.gmra.mxu0 %v5143
      %v5976 = vpop.f32.mrf.mxu0
      %v5977 = vadd.f32 %v5218, %v5976
      %v5978 = vpop.f32.mrf.mxu0
      %v5979 = vadd.f32 %v5218, %v5978
      %5980 = vmatmul.bf16.gmra.mxu0 %v5147
      %v5981 = vpop.f32.mrf.mxu0
      %v5982 = vadd.f32 %v5218, %v5981
      %v5983 = vpop.f32.mrf.mxu0
      %v5984 = vadd.f32 %v5218, %v5983
      %5985 = vdwg.mxu0
      %5986 = vmatpush.bf16.msra.mxu0 %v5444
      %5987 = vmatpush.bf16.msra.mxu0 %v5442
      %5988 = vmatpush.bf16.msra.mxu0 %v5440
      %5989 = vmatpush.bf16.msra.mxu0 %v5438
      %5990 = vmatpush.bf16.msra.mxu0 %v5436
      %5991 = vmatpush.bf16.msra.mxu0 %v5434
      %5992 = vmatpush.bf16.msra.mxu0 %v5432
      %5993 = vmatpush.bf16.msra.mxu0 %v5430
      %5994 = vmatmul.bf16.gmra.mxu0 %v5088
      %v5995 = vpop.f32.mrf.mxu0
      %v5996 = vadd.f32 %v5907, %v5995
      %v5997 = vpop.f32.mrf.mxu0
      %v5998 = vadd.f32 %v5909, %v5997
      %5999 = vmatmul.bf16.gmra.mxu0 %v5092
      %v6000 = vpop.f32.mrf.mxu0
      %v6001 = vadd.f32 %v5912, %v6000
      %v6002 = vpop.f32.mrf.mxu0
      %v6003 = vadd.f32 %v5914, %v6002
      %6004 = vmatmul.bf16.gmra.mxu0 %v5096
      %v6005 = vpop.f32.mrf.mxu0
      %v6006 = vadd.f32 %v5917, %v6005
      %v6007 = vpop.f32.mrf.mxu0
      %v6008 = vadd.f32 %v5919, %v6007
      %6009 = vmatmul.bf16.gmra.mxu0 %v5100
      %v6010 = vpop.f32.mrf.mxu0
      %v6011 = vadd.f32 %v5922, %v6010
      %v6012 = vpop.f32.mrf.mxu0
      %v6013 = vadd.f32 %v5924, %v6012
      %6014 = vmatmul.bf16.gmra.mxu0 %v5104
      %v6015 = vpop.f32.mrf.mxu0
      %v6016 = vadd.f32 %v5927, %v6015
      %v6017 = vpop.f32.mrf.mxu0
      %v6018 = vadd.f32 %v5929, %v6017
      %6019 = vmatmul.bf16.gmra.mxu0 %v5108
      %v6020 = vpop.f32.mrf.mxu0
      %v6021 = vadd.f32 %v5932, %v6020
      %v6022 = vpop.f32.mrf.mxu0
      %v6023 = vadd.f32 %v5934, %v6022
      %6024 = vmatmul.bf16.gmra.mxu0 %v5112
      %v6025 = vpop.f32.mrf.mxu0
      %v6026 = vadd.f32 %v5937, %v6025
      %v6027 = vpop.f32.mrf.mxu0
      %v6028 = vadd.f32 %v5939, %v6027
      %6029 = vmatmul.bf16.gmra.mxu0 %v5116
      %v6030 = vpop.f32.mrf.mxu0
      %v6031 = vadd.f32 %v5942, %v6030
      %v6032 = vpop.f32.mrf.mxu0
      %v6033 = vadd.f32 %v5944, %v6032
      %6034 = vmatmul.bf16.gmra.mxu0 %v5120
      %v6035 = vpop.f32.mrf.mxu0
      %v6036 = vadd.f32 %v5947, %v6035
      %v6037 = vpop.f32.mrf.mxu0
      %v6038 = vadd.f32 %v5949, %v6037
      %6039 = vmatmul.bf16.gmra.mxu0 %v5124
      %v6040 = vpop.f32.mrf.mxu0
      %v6041 = vadd.f32 %v5952, %v6040
      %v6042 = vpop.f32.mrf.mxu0
      %v6043 = vadd.f32 %v5954, %v6042
      %6044 = vmatmul.bf16.gmra.mxu0 %v5128
      %v6045 = vpop.f32.mrf.mxu0
      %v6046 = vadd.f32 %v5957, %v6045
      %v6047 = vpop.f32.mrf.mxu0
      %v6048 = vadd.f32 %v5959, %v6047
      %6049 = vmatmul.bf16.gmra.mxu0 %v5132
      %v6050 = vpop.f32.mrf.mxu0
      %v6051 = vadd.f32 %v5962, %v6050
      %v6052 = vpop.f32.mrf.mxu0
      %v6053 = vadd.f32 %v5964, %v6052
      %6054 = vmatmul.bf16.gmra.mxu0 %v5136
      %v6055 = vpop.f32.mrf.mxu0
      %v6056 = vadd.f32 %v5967, %v6055
      %v6057 = vpop.f32.mrf.mxu0
      %v6058 = vadd.f32 %v5969, %v6057
      %6059 = vmatmul.bf16.gmra.mxu0 %v5140
      %v6060 = vpop.f32.mrf.mxu0
      %v6061 = vadd.f32 %v5972, %v6060
      %v6062 = vpop.f32.mrf.mxu0
      %v6063 = vadd.f32 %v5974, %v6062
      %6064 = vmatmul.bf16.gmra.mxu0 %v5144
      %v6065 = vpop.f32.mrf.mxu0
      %v6066 = vadd.f32 %v5977, %v6065
      %v6067 = vpop.f32.mrf.mxu0
      %v6068 = vadd.f32 %v5979, %v6067
      %6069 = vmatmul.bf16.gmra.mxu0 %v5148
      %v6070 = vpop.f32.mrf.mxu0
      %v6071 = vadd.f32 %v5982, %v6070
      %v6072 = vpop.f32.mrf.mxu0
      %v6073 = vadd.f32 %v5984, %v6072
      %6074 = vdwg.mxu0
      %6075 = vmatpush.bf16.msra.mxu0 %v5460
      %6076 = vmatpush.bf16.msra.mxu0 %v5458
      %6077 = vmatpush.bf16.msra.mxu0 %v5456
      %6078 = vmatpush.bf16.msra.mxu0 %v5454
      %6079 = vmatpush.bf16.msra.mxu0 %v5452
      %6080 = vmatpush.bf16.msra.mxu0 %v5450
      %6081 = vmatpush.bf16.msra.mxu0 %v5448
      %6082 = vmatpush.bf16.msra.mxu0 %v5446
      %6083 = vmatmul.bf16.gmra.mxu0 %v5089
      %v6084 = vpop.f32.mrf.mxu0
      %v6085 = vadd.f32 %v5996, %v6084
      %v6086 = vpop.f32.mrf.mxu0
      %v6087 = vadd.f32 %v5998, %v6086
      %6088 = vmatmul.bf16.gmra.mxu0 %v5093
      %v6089 = vpop.f32.mrf.mxu0
      %v6090 = vadd.f32 %v6001, %v6089
      %v6091 = vpop.f32.mrf.mxu0
      %v6092 = vadd.f32 %v6003, %v6091
      %6093 = vmatmul.bf16.gmra.mxu0 %v5097
      %v6094 = vpop.f32.mrf.mxu0
      %v6095 = vadd.f32 %v6006, %v6094
      %v6096 = vpop.f32.mrf.mxu0
      %v6097 = vadd.f32 %v6008, %v6096
      %6098 = vmatmul.bf16.gmra.mxu0 %v5101
      %v6099 = vpop.f32.mrf.mxu0
      %v6100 = vadd.f32 %v6011, %v6099
      %v6101 = vpop.f32.mrf.mxu0
      %v6102 = vadd.f32 %v6013, %v6101
      %6103 = vmatmul.bf16.gmra.mxu0 %v5105
      %v6104 = vpop.f32.mrf.mxu0
      %v6105 = vadd.f32 %v6016, %v6104
      %v6106 = vpop.f32.mrf.mxu0
      %v6107 = vadd.f32 %v6018, %v6106
      %6108 = vmatmul.bf16.gmra.mxu0 %v5109
      %v6109 = vpop.f32.mrf.mxu0
      %v6110 = vadd.f32 %v6021, %v6109
      %v6111 = vpop.f32.mrf.mxu0
      %v6112 = vadd.f32 %v6023, %v6111
      %6113 = vmatmul.bf16.gmra.mxu0 %v5113
      %v6114 = vpop.f32.mrf.mxu0
      %v6115 = vadd.f32 %v6026, %v6114
      %v6116 = vpop.f32.mrf.mxu0
      %v6117 = vadd.f32 %v6028, %v6116
      %6118 = vmatmul.bf16.gmra.mxu0 %v5117
      %v6119 = vpop.f32.mrf.mxu0
      %v6120 = vadd.f32 %v6031, %v6119
      %v6121 = vpop.f32.mrf.mxu0
      %v6122 = vadd.f32 %v6033, %v6121
      %6123 = vmatmul.bf16.gmra.mxu0 %v5121
      %v6124 = vpop.f32.mrf.mxu0
      %v6125 = vadd.f32 %v6036, %v6124
      %v6126 = vpop.f32.mrf.mxu0
      %v6127 = vadd.f32 %v6038, %v6126
      %6128 = vmatmul.bf16.gmra.mxu0 %v5125
      %v6129 = vpop.f32.mrf.mxu0
      %v6130 = vadd.f32 %v6041, %v6129
      %v6131 = vpop.f32.mrf.mxu0
      %v6132 = vadd.f32 %v6043, %v6131
      %6133 = vmatmul.bf16.gmra.mxu0 %v5129
      %v6134 = vpop.f32.mrf.mxu0
      %v6135 = vadd.f32 %v6046, %v6134
      %v6136 = vpop.f32.mrf.mxu0
      %v6137 = vadd.f32 %v6048, %v6136
      %6138 = vmatmul.bf16.gmra.mxu0 %v5133
      %v6139 = vpop.f32.mrf.mxu0
      %v6140 = vadd.f32 %v6051, %v6139
      %v6141 = vpop.f32.mrf.mxu0
      %v6142 = vadd.f32 %v6053, %v6141
      %6143 = vmatmul.bf16.gmra.mxu0 %v5137
      %v6144 = vpop.f32.mrf.mxu0
      %v6145 = vadd.f32 %v6056, %v6144
      %v6146 = vpop.f32.mrf.mxu0
      %v6147 = vadd.f32 %v6058, %v6146
      %6148 = vmatmul.bf16.gmra.mxu0 %v5141
      %v6149 = vpop.f32.mrf.mxu0
      %v6150 = vadd.f32 %v6061, %v6149
      %v6151 = vpop.f32.mrf.mxu0
      %v6152 = vadd.f32 %v6063, %v6151
      %6153 = vmatmul.bf16.gmra.mxu0 %v5145
      %v6154 = vpop.f32.mrf.mxu0
      %v6155 = vadd.f32 %v6066, %v6154
      %v6156 = vpop.f32.mrf.mxu0
      %v6157 = vadd.f32 %v6068, %v6156
      %6158 = vmatmul.bf16.gmra.mxu0 %v5149
      %v6159 = vpop.f32.mrf.mxu0
      %v6160 = vadd.f32 %v6071, %v6159
      %v6161 = vpop.f32.mrf.mxu0
      %v6162 = vadd.f32 %v6073, %v6161
      %6163 = vdwg.mxu0
      %6164 = vmatpush.bf16.msra.mxu0 %v5476
      %6165 = vmatpush.bf16.msra.mxu0 %v5474
      %6166 = vmatpush.bf16.msra.mxu0 %v5472
      %6167 = vmatpush.bf16.msra.mxu0 %v5470
      %6168 = vmatpush.bf16.msra.mxu0 %v5468
      %6169 = vmatpush.bf16.msra.mxu0 %v5466
      %6170 = vmatpush.bf16.msra.mxu0 %v5464
      %6171 = vmatpush.bf16.msra.mxu0 %v5462
      %6172 = vmatmul.bf16.gmra.mxu0 %v5090
      %v6173 = vpop.f32.mrf.mxu0
      %v6174 = vadd.f32 %v6085, %v6173
      %v6175 = vpop.f32.mrf.mxu0
      %v6176 = vadd.f32 %v6087, %v6175
      %6177 = vmatmul.bf16.gmra.mxu0 %v5094
      %v6178 = vpop.f32.mrf.mxu0
      %v6179 = vadd.f32 %v6090, %v6178
      %v6180 = vpop.f32.mrf.mxu0
      %v6181 = vadd.f32 %v6092, %v6180
      %6182 = vmatmul.bf16.gmra.mxu0 %v5098
      %v6183 = vpop.f32.mrf.mxu0
      %v6184 = vadd.f32 %v6095, %v6183
      %v6185 = vpop.f32.mrf.mxu0
      %v6186 = vadd.f32 %v6097, %v6185
      %6187 = vmatmul.bf16.gmra.mxu0 %v5102
      %v6188 = vpop.f32.mrf.mxu0
      %v6189 = vadd.f32 %v6100, %v6188
      %v6190 = vpop.f32.mrf.mxu0
      %v6191 = vadd.f32 %v6102, %v6190
      %6192 = vmatmul.bf16.gmra.mxu0 %v5106
      %v6193 = vpop.f32.mrf.mxu0
      %v6194 = vadd.f32 %v6105, %v6193
      %v6195 = vpop.f32.mrf.mxu0
      %v6196 = vadd.f32 %v6107, %v6195
      %6197 = vmatmul.bf16.gmra.mxu0 %v5110
      %v6198 = vpop.f32.mrf.mxu0
      %v6199 = vadd.f32 %v6110, %v6198
      %v6200 = vpop.f32.mrf.mxu0
      %v6201 = vadd.f32 %v6112, %v6200
      %6202 = vmatmul.bf16.gmra.mxu0 %v5114
      %v6203 = vpop.f32.mrf.mxu0
      %v6204 = vadd.f32 %v6115, %v6203
      %v6205 = vpop.f32.mrf.mxu0
      %v6206 = vadd.f32 %v6117, %v6205
      %6207 = vmatmul.bf16.gmra.mxu0 %v5118
      %v6208 = vpop.f32.mrf.mxu0
      %v6209 = vadd.f32 %v6120, %v6208
      %v6210 = vpop.f32.mrf.mxu0
      %v6211 = vadd.f32 %v6122, %v6210
      %6212 = vmatmul.bf16.gmra.mxu0 %v5122
      %v6213 = vpop.f32.mrf.mxu0
      %v6214 = vadd.f32 %v6125, %v6213
      %v6215 = vpop.f32.mrf.mxu0
      %v6216 = vadd.f32 %v6127, %v6215
      %6217 = vmatmul.bf16.gmra.mxu0 %v5126
      %v6218 = vpop.f32.mrf.mxu0
      %v6219 = vadd.f32 %v6130, %v6218
      %v6220 = vpop.f32.mrf.mxu0
      %v6221 = vadd.f32 %v6132, %v6220
      %6222 = vmatmul.bf16.gmra.mxu0 %v5130
      %v6223 = vpop.f32.mrf.mxu0
      %v6224 = vadd.f32 %v6135, %v6223
      %v6225 = vpop.f32.mrf.mxu0
      %v6226 = vadd.f32 %v6137, %v6225
      %6227 = vmatmul.bf16.gmra.mxu0 %v5134
      %v6228 = vpop.f32.mrf.mxu0
      %v6229 = vadd.f32 %v6140, %v6228
      %v6230 = vpop.f32.mrf.mxu0
      %v6231 = vadd.f32 %v6142, %v6230
      %6232 = vmatmul.bf16.gmra.mxu0 %v5138
      %v6233 = vpop.f32.mrf.mxu0
      %v6234 = vadd.f32 %v6145, %v6233
      %v6235 = vpop.f32.mrf.mxu0
      %v6236 = vadd.f32 %v6147, %v6235
      %6237 = vmatmul.bf16.gmra.mxu0 %v5142
      %v6238 = vpop.f32.mrf.mxu0
      %v6239 = vadd.f32 %v6150, %v6238
      %v6240 = vpop.f32.mrf.mxu0
      %v6241 = vadd.f32 %v6152, %v6240
      %6242 = vmatmul.bf16.gmra.mxu0 %v5146
      %v6243 = vpop.f32.mrf.mxu0
      %v6244 = vadd.f32 %v6155, %v6243
      %v6245 = vpop.f32.mrf.mxu0
      %v6246 = vadd.f32 %v6157, %v6245
      %6247 = vmatmul.bf16.gmra.mxu0 %v5150
      %v6248 = vpop.f32.mrf.mxu0
      %v6249 = vadd.f32 %v6160, %v6248
      %v6250 = vpop.f32.mrf.mxu0
      %v6251 = vadd.f32 %v6162, %v6250
      %6252 = vdwg.mxu0
      %vm6253 = vcmp.gt.f32.partialorder %v5818, 0.0
      %vm6254 = vcmp.gt.f32.partialorder %v6174, 0.0
      %vm6255 = vcmp.gt.f32.partialorder %v5820, 0.0
      %vm6256 = vcmp.gt.f32.partialorder %v6176, 0.0
      %vm6257 = vcmp.gt.f32.partialorder %v5823, 0.0
      %vm6258 = vcmp.gt.f32.partialorder %v6179, 0.0
      %vm6259 = vcmp.gt.f32.partialorder %v5825, 0.0
      %vm6260 = vcmp.gt.f32.partialorder %v6181, 0.0
      %vm6261 = vcmp.gt.f32.partialorder %v5828, 0.0
      %vm6262 = vcmp.gt.f32.partialorder %v6184, 0.0
      %vm6263 = vcmp.gt.f32.partialorder %v5830, 0.0
      %vm6264 = vcmp.gt.f32.partialorder %v6186, 0.0
      %vm6265 = vcmp.gt.f32.partialorder %v5833, 0.0
      %vm6266 = vcmp.gt.f32.partialorder %v6189, 0.0
      %vm6267 = vcmp.gt.f32.partialorder %v5835, 0.0
      %vm6268 = vcmp.gt.f32.partialorder %v6191, 0.0
      %vm6269 = vcmp.gt.f32.partialorder %v5838, 0.0
      %vm6270 = vcmp.gt.f32.partialorder %v6194, 0.0
      %vm6271 = vcmp.gt.f32.partialorder %v5840, 0.0
      %vm6272 = vcmp.gt.f32.partialorder %v6196, 0.0
      %vm6273 = vcmp.gt.f32.partialorder %v5843, 0.0
      %vm6274 = vcmp.gt.f32.partialorder %v6199, 0.0
      %vm6275 = vcmp.gt.f32.partialorder %v5845, 0.0
      %vm6276 = vcmp.gt.f32.partialorder %v6201, 0.0
      %vm6277 = vcmp.gt.f32.partialorder %v5848, 0.0
      %vm6278 = vcmp.gt.f32.partialorder %v6204, 0.0
      %vm6279 = vcmp.gt.f32.partialorder %v5850, 0.0
      %vm6280 = vcmp.gt.f32.partialorder %v6206, 0.0
      %vm6281 = vcmp.gt.f32.partialorder %v5853, 0.0
      %vm6282 = vcmp.gt.f32.partialorder %v6209, 0.0
      %vm6283 = vcmp.gt.f32.partialorder %v5855, 0.0
      %vm6284 = vcmp.gt.f32.partialorder %v6211, 0.0
      %vm6285 = vcmp.gt.f32.partialorder %v5858, 0.0
      %vm6286 = vcmp.gt.f32.partialorder %v6214, 0.0
      %vm6287 = vcmp.gt.f32.partialorder %v5860, 0.0
      %vm6288 = vcmp.gt.f32.partialorder %v6216, 0.0
      %vm6289 = vcmp.gt.f32.partialorder %v5863, 0.0
      %vm6290 = vcmp.gt.f32.partialorder %v6219, 0.0
      %vm6291 = vcmp.gt.f32.partialorder %v5865, 0.0
      %vm6292 = vcmp.gt.f32.partialorder %v6221, 0.0
      %vm6293 = vcmp.gt.f32.partialorder %v5868, 0.0
      %vm6294 = vcmp.gt.f32.partialorder %v6224, 0.0
      %vm6295 = vcmp.gt.f32.partialorder %v5870, 0.0
      %vm6296 = vcmp.gt.f32.partialorder %v6226, 0.0
      %vm6297 = vcmp.gt.f32.partialorder %v5873, 0.0
      %vm6298 = vcmp.gt.f32.partialorder %v6229, 0.0
      %vm6299 = vcmp.gt.f32.partialorder %v5875, 0.0
      %vm6300 = vcmp.gt.f32.partialorder %v6231, 0.0
      %vm6301 = vcmp.gt.f32.partialorder %v5878, 0.0
      %vm6302 = vcmp.gt.f32.partialorder %v6234, 0.0
      %vm6303 = vcmp.gt.f32.partialorder %v5880, 0.0
      %vm6304 = vcmp.gt.f32.partialorder %v6236, 0.0
      %vm6305 = vcmp.gt.f32.partialorder %v5883, 0.0
      %vm6306 = vcmp.gt.f32.partialorder %v6239, 0.0
      %vm6307 = vcmp.gt.f32.partialorder %v5885, 0.0
      %vm6308 = vcmp.gt.f32.partialorder %v6241, 0.0
      %vm6309 = vcmp.gt.f32.partialorder %v5888, 0.0
      %vm6310 = vcmp.gt.f32.partialorder %v6244, 0.0
      %vm6311 = vcmp.gt.f32.partialorder %v5890, 0.0
      %vm6312 = vcmp.gt.f32.partialorder %v6246, 0.0
      %vm6313 = vcmp.gt.f32.partialorder %v5893, 0.0
      %vm6314 = vcmp.gt.f32.partialorder %v6249, 0.0
      %vm6315 = vcmp.gt.f32.partialorder %v5895, 0.0
      %vm6316 = vcmp.gt.f32.partialorder %v6251, 0.0
      %v6317 = vmul.f32 %v5818, 0.2
      %v6318 = vmul.f32 %v6174, 0.2
      %v6319 = vmul.f32 %v5820, 0.2
      %v6320 = vmul.f32 %v6176, 0.2
      %v6321 = vmul.f32 %v5823, 0.2
      %v6322 = vmul.f32 %v6179, 0.2
      %v6323 = vmul.f32 %v5825, 0.2
      %v6324 = vmul.f32 %v6181, 0.2
      %v6325 = vmul.f32 %v5828, 0.2
      %v6326 = vmul.f32 %v6184, 0.2
      %v6327 = vmul.f32 %v5830, 0.2
      %v6328 = vmul.f32 %v6186, 0.2
      %v6329 = vmul.f32 %v5833, 0.2
      %v6330 = vmul.f32 %v6189, 0.2
      %v6331 = vmul.f32 %v5835, 0.2
      %v6332 = vmul.f32 %v6191, 0.2
      %v6333 = vmul.f32 %v5838, 0.2
      %v6334 = vmul.f32 %v6194, 0.2
      %v6335 = vmul.f32 %v5840, 0.2
      %v6336 = vmul.f32 %v6196, 0.2
      %v6337 = vmul.f32 %v5843, 0.2
      %v6338 = vmul.f32 %v6199, 0.2
      %v6339 = vmul.f32 %v5845, 0.2
      %v6340 = vmul.f32 %v6201, 0.2
      %v6341 = vmul.f32 %v5848, 0.2
      %v6342 = vmul.f32 %v6204, 0.2
      %v6343 = vmul.f32 %v5850, 0.2
      %v6344 = vmul.f32 %v6206, 0.2
      %v6345 = vmul.f32 %v5853, 0.2
      %v6346 = vmul.f32 %v6209, 0.2
      %v6347 = vmul.f32 %v5855, 0.2
      %v6348 = vmul.f32 %v6211, 0.2
      %v6349 = vmul.f32 %v5858, 0.2
      %v6350 = vmul.f32 %v6214, 0.2
      %v6351 = vmul.f32 %v5860, 0.2
      %v6352 = vmul.f32 %v6216, 0.2
      %v6353 = vmul.f32 %v5863, 0.2
      %v6354 = vmul.f32 %v6219, 0.2
      %v6355 = vmul.f32 %v5865, 0.2
      %v6356 = vmul.f32 %v6221, 0.2
      %v6357 = vmul.f32 %v5868, 0.2
      %v6358 = vmul.f32 %v6224, 0.2
      %v6359 = vmul.f32 %v5870, 0.2
      %v6360 = vmul.f32 %v6226, 0.2
      %v6361 = vmul.f32 %v5873, 0.2
      %v6362 = vmul.f32 %v6229, 0.2
      %v6363 = vmul.f32 %v5875, 0.2
      %v6364 = vmul.f32 %v6231, 0.2
      %v6365 = vmul.f32 %v5878, 0.2
      %v6366 = vmul.f32 %v6234, 0.2
      %v6367 = vmul.f32 %v5880, 0.2
      %v6368 = vmul.f32 %v6236, 0.2
      %v6369 = vmul.f32 %v5883, 0.2
      %v6370 = vmul.f32 %v6239, 0.2
      %v6371 = vmul.f32 %v5885, 0.2
      %v6372 = vmul.f32 %v6241, 0.2
      %v6373 = vmul.f32 %v5888, 0.2
      %v6374 = vmul.f32 %v6244, 0.2
      %v6375 = vmul.f32 %v5890, 0.2
      %v6376 = vmul.f32 %v6246, 0.2
      %v6377 = vmul.f32 %v5893, 0.2
      %v6378 = vmul.f32 %v6249, 0.2
      %v6379 = vmul.f32 %v5895, 0.2
      %v6380 = vmul.f32 %v6251, 0.2
      %v6381 = vsel %vm6253, %v5818, %v6317
      %v6382 = vsel %vm6254, %v6174, %v6318
      %v6383 = vsel %vm6255, %v5820, %v6319
      %v6384 = vsel %vm6256, %v6176, %v6320
      %v6385 = vsel %vm6257, %v5823, %v6321
      %v6386 = vsel %vm6258, %v6179, %v6322
      %v6387 = vsel %vm6259, %v5825, %v6323
      %v6388 = vsel %vm6260, %v6181, %v6324
      %v6389 = vsel %vm6261, %v5828, %v6325
      %v6390 = vsel %vm6262, %v6184, %v6326
      %v6391 = vsel %vm6263, %v5830, %v6327
      %v6392 = vsel %vm6264, %v6186, %v6328
      %v6393 = vsel %vm6265, %v5833, %v6329
      %v6394 = vsel %vm6266, %v6189, %v6330
      %v6395 = vsel %vm6267, %v5835, %v6331
      %v6396 = vsel %vm6268, %v6191, %v6332
      %v6397 = vsel %vm6269, %v5838, %v6333
      %v6398 = vsel %vm6270, %v6194, %v6334
      %v6399 = vsel %vm6271, %v5840, %v6335
      %v6400 = vsel %vm6272, %v6196, %v6336
      %v6401 = vsel %vm6273, %v5843, %v6337
      %v6402 = vsel %vm6274, %v6199, %v6338
      %v6403 = vsel %vm6275, %v5845, %v6339
      %v6404 = vsel %vm6276, %v6201, %v6340
      %v6405 = vsel %vm6277, %v5848, %v6341
      %v6406 = vsel %vm6278, %v6204, %v6342
      %v6407 = vsel %vm6279, %v5850, %v6343
      %v6408 = vsel %vm6280, %v6206, %v6344
      %v6409 = vsel %vm6281, %v5853, %v6345
      %v6410 = vsel %vm6282, %v6209, %v6346
      %v6411 = vsel %vm6283, %v5855, %v6347
      %v6412 = vsel %vm6284, %v6211, %v6348
      %v6413 = vsel %vm6285, %v5858, %v6349
      %v6414 = vsel %vm6286, %v6214, %v6350
      %v6415 = vsel %vm6287, %v5860, %v6351
      %v6416 = vsel %vm6288, %v6216, %v6352
      %v6417 = vsel %vm6289, %v5863, %v6353
      %v6418 = vsel %vm6290, %v6219, %v6354
      %v6419 = vsel %vm6291, %v5865, %v6355
      %v6420 = vsel %vm6292, %v6221, %v6356
      %v6421 = vsel %vm6293, %v5868, %v6357
      %v6422 = vsel %vm6294, %v6224, %v6358
      %v6423 = vsel %vm6295, %v5870, %v6359
      %v6424 = vsel %vm6296, %v6226, %v6360
      %v6425 = vsel %vm6297, %v5873, %v6361
      %v6426 = vsel %vm6298, %v6229, %v6362
      %v6427 = vsel %vm6299, %v5875, %v6363
      %v6428 = vsel %vm6300, %v6231, %v6364
      %v6429 = vsel %vm6301, %v5878, %v6365
      %v6430 = vsel %vm6302, %v6234, %v6366
      %v6431 = vsel %vm6303, %v5880, %v6367
      %v6432 = vsel %vm6304, %v6236, %v6368
      %v6433 = vsel %vm6305, %v5883, %v6369
      %v6434 = vsel %vm6306, %v6239, %v6370
      %v6435 = vsel %vm6307, %v5885, %v6371
      %v6436 = vsel %vm6308, %v6241, %v6372
      %v6437 = vsel %vm6309, %v5888, %v6373
      %v6438 = vsel %vm6310, %v6244, %v6374
      %v6439 = vsel %vm6311, %v5890, %v6375
      %v6440 = vsel %vm6312, %v6246, %v6376
      %v6441 = vsel %vm6313, %v5893, %v6377
      %v6442 = vsel %vm6314, %v6249, %v6378
      %v6443 = vsel %vm6315, %v5895, %v6379
      %v6444 = vsel %vm6316, %v6251, %v6380
      %v6445 = vld [vmem:[%s5] sm:$0x3]
      %v6447 = vperm.slane %v6445, 0
      %v6448 = vperm.slane %v6445, 1
      %v6451 = vmul.f32 %v6381, %v6447
      %v6452 = vmul.f32 %v6382, %v6448
      %v6453 = vmul.f32 %v6383, %v6447
      %v6454 = vmul.f32 %v6384, %v6448
      %v6455 = vmul.f32 %v6385, %v6447
      %v6456 = vmul.f32 %v6386, %v6448
      %v6457 = vmul.f32 %v6387, %v6447
      %v6458 = vmul.f32 %v6388, %v6448
      %v6459 = vmul.f32 %v6389, %v6447
      %v6460 = vmul.f32 %v6390, %v6448
      %v6461 = vmul.f32 %v6391, %v6447
      %v6462 = vmul.f32 %v6392, %v6448
      %v6463 = vmul.f32 %v6393, %v6447
      %v6464 = vmul.f32 %v6394, %v6448
      %v6465 = vmul.f32 %v6395, %v6447
      %v6466 = vmul.f32 %v6396, %v6448
      %v6467 = vmul.f32 %v6397, %v6447
      %v6468 = vmul.f32 %v6398, %v6448
      %v6469 = vmul.f32 %v6399, %v6447
      %v6470 = vmul.f32 %v6400, %v6448
      %v6471 = vmul.f32 %v6401, %v6447
      %v6472 = vmul.f32 %v6402, %v6448
      %v6473 = vmul.f32 %v6403, %v6447
      %v6474 = vmul.f32 %v6404, %v6448
      %v6475 = vmul.f32 %v6405, %v6447
      %v6476 = vmul.f32 %v6406, %v6448
      %v6477 = vmul.f32 %v6407, %v6447
      %v6478 = vmul.f32 %v6408, %v6448
      %v6479 = vmul.f32 %v6409, %v6447
      %v6480 = vmul.f32 %v6410, %v6448
      %v6481 = vmul.f32 %v6411, %v6447
      %v6482 = vmul.f32 %v6412, %v6448
      %v6483 = vmul.f32 %v6413, %v6447
      %v6484 = vmul.f32 %v6414, %v6448
      %v6485 = vmul.f32 %v6415, %v6447
      %v6486 = vmul.f32 %v6416, %v6448
      %v6487 = vmul.f32 %v6417, %v6447
      %v6488 = vmul.f32 %v6418, %v6448
      %v6489 = vmul.f32 %v6419, %v6447
      %v6490 = vmul.f32 %v6420, %v6448
      %v6491 = vmul.f32 %v6421, %v6447
      %v6492 = vmul.f32 %v6422, %v6448
      %v6493 = vmul.f32 %v6423, %v6447
      %v6494 = vmul.f32 %v6424, %v6448
      %v6495 = vmul.f32 %v6425, %v6447
      %v6496 = vmul.f32 %v6426, %v6448
      %v6497 = vmul.f32 %v6427, %v6447
      %v6498 = vmul.f32 %v6428, %v6448
      %v6499 = vmul.f32 %v6429, %v6447
      %v6500 = vmul.f32 %v6430, %v6448
      %v6501 = vmul.f32 %v6431, %v6447
      %v6502 = vmul.f32 %v6432, %v6448
      %v6503 = vmul.f32 %v6433, %v6447
      %v6504 = vmul.f32 %v6434, %v6448
      %v6505 = vmul.f32 %v6435, %v6447
      %v6506 = vmul.f32 %v6436, %v6448
      %v6507 = vmul.f32 %v6437, %v6447
      %v6508 = vmul.f32 %v6438, %v6448
      %v6509 = vmul.f32 %v6439, %v6447
      %v6510 = vmul.f32 %v6440, %v6448
      %v6511 = vmul.f32 %v6441, %v6447
      %v6512 = vmul.f32 %v6442, %v6448
      %v6513 = vmul.f32 %v6443, %v6447
      %v6514 = vmul.f32 %v6444, %v6448
      %v6515 = vadd.f32 %v6451, %v6452
      %6516 = vadd.xlane.f32.xlu0 %v6515
      %v6517 = vpop.xlane.xlu0 %6516
      %v6518 = vadd.f32 %v6453, %v6454
      %6519 = vadd.xlane.f32.xlu0 %v6518
      %v6520 = vpop.xlane.xlu0 %6519
      %v6521 = vadd.f32 %v6455, %v6456
      %6522 = vadd.xlane.f32.xlu0 %v6521
      %v6523 = vpop.xlane.xlu0 %6522
      %v6524 = vadd.f32 %v6457, %v6458
      %6525 = vadd.xlane.f32.xlu0 %v6524
      %v6526 = vpop.xlane.xlu0 %6525
      %v6527 = vadd.f32 %v6459, %v6460
      %6528 = vadd.xlane.f32.xlu0 %v6527
      %v6529 = vpop.xlane.xlu0 %6528
      %v6530 = vadd.f32 %v6461, %v6462
      %6531 = vadd.xlane.f32.xlu0 %v6530
      %v6532 = vpop.xlane.xlu0 %6531
      %v6533 = vadd.f32 %v6463, %v6464
      %6534 = vadd.xlane.f32.xlu0 %v6533
      %v6535 = vpop.xlane.xlu0 %6534
      %v6536 = vadd.f32 %v6465, %v6466
      %6537 = vadd.xlane.f32.xlu0 %v6536
      %v6538 = vpop.xlane.xlu0 %6537
      %v6539 = vadd.f32 %v6467, %v6468
      %6540 = vadd.xlane.f32.xlu0 %v6539
      %v6541 = vpop.xlane.xlu0 %6540
      %v6542 = vadd.f32 %v6469, %v6470
      %6543 = vadd.xlane.f32.xlu0 %v6542
      %v6544 = vpop.xlane.xlu0 %6543
      %v6545 = vadd.f32 %v6471, %v6472
      %6546 = vadd.xlane.f32.xlu0 %v6545
      %v6547 = vpop.xlane.xlu0 %6546
      %v6548 = vadd.f32 %v6473, %v6474
      %6549 = vadd.xlane.f32.xlu0 %v6548
      %v6550 = vpop.xlane.xlu0 %6549
      %v6551 = vadd.f32 %v6475, %v6476
      %6552 = vadd.xlane.f32.xlu0 %v6551
      %v6553 = vpop.xlane.xlu0 %6552
      %v6554 = vadd.f32 %v6477, %v6478
      %6555 = vadd.xlane.f32.xlu0 %v6554
      %v6556 = vpop.xlane.xlu0 %6555
      %v6557 = vadd.f32 %v6479, %v6480
      %6558 = vadd.xlane.f32.xlu0 %v6557
      %v6559 = vpop.xlane.xlu0 %6558
      %v6560 = vadd.f32 %v6481, %v6482
      %6561 = vadd.xlane.f32.xlu0 %v6560
      %v6562 = vpop.xlane.xlu0 %6561
      %v6563 = vadd.f32 %v6483, %v6484
      %6564 = vadd.xlane.f32.xlu0 %v6563
      %v6565 = vpop.xlane.xlu0 %6564
      %v6566 = vadd.f32 %v6485, %v6486
      %6567 = vadd.xlane.f32.xlu0 %v6566
      %v6568 = vpop.xlane.xlu0 %6567
      %v6569 = vadd.f32 %v6487, %v6488
      %6570 = vadd.xlane.f32.xlu0 %v6569
      %v6571 = vpop.xlane.xlu0 %6570
      %v6572 = vadd.f32 %v6489, %v6490
      %6573 = vadd.xlane.f32.xlu0 %v6572
      %v6574 = vpop.xlane.xlu0 %6573
      %v6575 = vadd.f32 %v6491, %v6492
      %6576 = vadd.xlane.f32.xlu0 %v6575
      %v6577 = vpop.xlane.xlu0 %6576
      %v6578 = vadd.f32 %v6493, %v6494
      %6579 = vadd.xlane.f32.xlu0 %v6578
      %v6580 = vpop.xlane.xlu0 %6579
      %v6581 = vadd.f32 %v6495, %v6496
      %6582 = vadd.xlane.f32.xlu0 %v6581
      %v6583 = vpop.xlane.xlu0 %6582
      %v6584 = vadd.f32 %v6497, %v6498
      %6585 = vadd.xlane.f32.xlu0 %v6584
      %v6586 = vpop.xlane.xlu0 %6585
      %v6587 = vadd.f32 %v6499, %v6500
      %6588 = vadd.xlane.f32.xlu0 %v6587
      %v6589 = vpop.xlane.xlu0 %6588
      %v6590 = vadd.f32 %v6501, %v6502
      %6591 = vadd.xlane.f32.xlu0 %v6590
      %v6592 = vpop.xlane.xlu0 %6591
      %v6593 = vadd.f32 %v6503, %v6504
      %6594 = vadd.xlane.f32.xlu0 %v6593
      %v6595 = vpop.xlane.xlu0 %6594
      %v6596 = vadd.f32 %v6505, %v6506
      %6597 = vadd.xlane.f32.xlu0 %v6596
      %v6598 = vpop.xlane.xlu0 %6597
      %v6599 = vadd.f32 %v6507, %v6508
      %6600 = vadd.xlane.f32.xlu0 %v6599
      %v6601 = vpop.xlane.xlu0 %6600
      %v6602 = vadd.f32 %v6509, %v6510
      %6603 = vadd.xlane.f32.xlu0 %v6602
      %v6604 = vpop.xlane.xlu0 %6603
      %v6605 = vadd.f32 %v6511, %v6512
      %6606 = vadd.xlane.f32.xlu0 %v6605
      %v6607 = vpop.xlane.xlu0 %6606
      %v6608 = vadd.f32 %v6513, %v6514
      %6609 = vadd.xlane.f32.xlu0 %v6608
      %v6610 = vpop.xlane.xlu0 %6609
      %v6611 = vld [vmem:[#allocation2] sm:$0x1]
      %v6613 = vperm.slane %v6611, 0
      %v6615 = vadd.f32 %v6517, %v6613
      %v6616 = vadd.f32 %v6520, %v6613
      %v6617 = vadd.f32 %v6523, %v6613
      %v6618 = vadd.f32 %v6526, %v6613
      %v6619 = vadd.f32 %v6529, %v6613
      %v6620 = vadd.f32 %v6532, %v6613
      %v6621 = vadd.f32 %v6535, %v6613
      %v6622 = vadd.f32 %v6538, %v6613
      %v6623 = vadd.f32 %v6541, %v6613
      %v6624 = vadd.f32 %v6544, %v6613
      %v6625 = vadd.f32 %v6547, %v6613
      %v6626 = vadd.f32 %v6550, %v6613
      %v6627 = vadd.f32 %v6553, %v6613
      %v6628 = vadd.f32 %v6556, %v6613
      %v6629 = vadd.f32 %v6559, %v6613
      %v6630 = vadd.f32 %v6562, %v6613
      %v6631 = vadd.f32 %v6565, %v6613
      %v6632 = vadd.f32 %v6568, %v6613
      %v6633 = vadd.f32 %v6571, %v6613
      %v6634 = vadd.f32 %v6574, %v6613
      %v6635 = vadd.f32 %v6577, %v6613
      %v6636 = vadd.f32 %v6580, %v6613
      %v6637 = vadd.f32 %v6583, %v6613
      %v6638 = vadd.f32 %v6586, %v6613
      %v6639 = vadd.f32 %v6589, %v6613
      %v6640 = vadd.f32 %v6592, %v6613
      %v6641 = vadd.f32 %v6595, %v6613
      %v6642 = vadd.f32 %v6598, %v6613
      %v6643 = vadd.f32 %v6601, %v6613
      %v6644 = vadd.f32 %v6604, %v6613
      %v6645 = vadd.f32 %v6607, %v6613
      %v6646 = vadd.f32 %v6610, %v6613
      %v6647 = vsub.f32 0.0, %v6615
      %v6648 = vsub.f32 0.0, %v6616
      %v6649 = vsub.f32 0.0, %v6617
      %v6650 = vsub.f32 0.0, %v6618
      %v6651 = vsub.f32 0.0, %v6619
      %v6652 = vsub.f32 0.0, %v6620
      %v6653 = vsub.f32 0.0, %v6621
      %v6654 = vsub.f32 0.0, %v6622
      %v6655 = vsub.f32 0.0, %v6623
      %v6656 = vsub.f32 0.0, %v6624
      %v6657 = vsub.f32 0.0, %v6625
      %v6658 = vsub.f32 0.0, %v6626
      %v6659 = vsub.f32 0.0, %v6627
      %v6660 = vsub.f32 0.0, %v6628
      %v6661 = vsub.f32 0.0, %v6629
      %v6662 = vsub.f32 0.0, %v6630
      %v6663 = vsub.f32 0.0, %v6631
      %v6664 = vsub.f32 0.0, %v6632
      %v6665 = vsub.f32 0.0, %v6633
      %v6666 = vsub.f32 0.0, %v6634
      %v6667 = vsub.f32 0.0, %v6635
      %v6668 = vsub.f32 0.0, %v6636
      %v6669 = vsub.f32 0.0, %v6637
      %v6670 = vsub.f32 0.0, %v6638
      %v6671 = vsub.f32 0.0, %v6639
      %v6672 = vsub.f32 0.0, %v6640
      %v6673 = vsub.f32 0.0, %v6641
      %v6674 = vsub.f32 0.0, %v6642
      %v6675 = vsub.f32 0.0, %v6643
      %v6676 = vsub.f32 0.0, %v6644
      %v6677 = vsub.f32 0.0, %v6645
      %v6678 = vsub.f32 0.0, %v6646
      %v6679 = vmul.f32 %v6647, 1.442695
      %v6680 = vpow.pop %v6679
      %v6681 = vmul.f32 %v6648, 1.442695
      %v6682 = vpow.pop %v6681
      %v6683 = vmul.f32 %v6649, 1.442695
      %v6684 = vpow.pop %v6683
      %v6685 = vmul.f32 %v6650, 1.442695
      %v6686 = vpow.pop %v6685
      %v6687 = vmul.f32 %v6651, 1.442695
      %v6688 = vpow.pop %v6687
      %v6689 = vmul.f32 %v6652, 1.442695
      %v6690 = vpow.pop %v6689
      %v6691 = vmul.f32 %v6653, 1.442695
      %v6692 = vpow.pop %v6691
      %v6693 = vmul.f32 %v6654, 1.442695
      %v6694 = vpow.pop %v6693
      %v6695 = vmul.f32 %v6655, 1.442695
      %v6696 = vpow.pop %v6695
      %v6697 = vmul.f32 %v6656, 1.442695
      %v6698 = vpow.pop %v6697
      %v6699 = vmul.f32 %v6657, 1.442695
      %v6700 = vpow.pop %v6699
      %v6701 = vmul.f32 %v6658, 1.442695
      %v6702 = vpow.pop %v6701
      %v6703 = vmul.f32 %v6659, 1.442695
      %v6704 = vpow.pop %v6703
      %v6705 = vmul.f32 %v6660, 1.442695
      %v6706 = vpow.pop %v6705
      %v6707 = vmul.f32 %v6661, 1.442695
      %v6708 = vpow.pop %v6707
      %v6709 = vmul.f32 %v6662, 1.442695
      %v6710 = vpow.pop %v6709
      %v6711 = vmul.f32 %v6663, 1.442695
      %v6712 = vpow.pop %v6711
      %v6713 = vmul.f32 %v6664, 1.442695
      %v6714 = vpow.pop %v6713
      %v6715 = vmul.f32 %v6665, 1.442695
      %v6716 = vpow.pop %v6715
      %v6717 = vmul.f32 %v6666, 1.442695
      %v6718 = vpow.pop %v6717
      %v6719 = vmul.f32 %v6667, 1.442695
      %v6720 = vpow.pop %v6719
      %v6721 = vmul.f32 %v6668, 1.442695
      %v6722 = vpow.pop %v6721
      %v6723 = vmul.f32 %v6669, 1.442695
      %v6724 = vpow.pop %v6723
      %v6725 = vmul.f32 %v6670, 1.442695
      %v6726 = vpow.pop %v6725
      %v6727 = vmul.f32 %v6671, 1.442695
      %v6728 = vpow.pop %v6727
      %v6729 = vmul.f32 %v6672, 1.442695
      %v6730 = vpow.pop %v6729
      %v6731 = vmul.f32 %v6673, 1.442695
      %v6732 = vpow.pop %v6731
      %v6733 = vmul.f32 %v6674, 1.442695
      %v6734 = vpow.pop %v6733
      %v6735 = vmul.f32 %v6675, 1.442695
      %v6736 = vpow.pop %v6735
      %v6737 = vmul.f32 %v6676, 1.442695
      %v6738 = vpow.pop %v6737
      %v6739 = vmul.f32 %v6677, 1.442695
      %v6740 = vpow.pop %v6739
      %v6741 = vmul.f32 %v6678, 1.442695
      %v6742 = vpow.pop %v6741
      %v6743 = vadd.f32 %v6680, 1.0
      %v6744 = vadd.f32 %v6682, 1.0
      %v6745 = vadd.f32 %v6684, 1.0
      %v6746 = vadd.f32 %v6686, 1.0
      %v6747 = vadd.f32 %v6688, 1.0
      %v6748 = vadd.f32 %v6690, 1.0
      %v6749 = vadd.f32 %v6692, 1.0
      %v6750 = vadd.f32 %v6694, 1.0
      %v6751 = vadd.f32 %v6696, 1.0
      %v6752 = vadd.f32 %v6698, 1.0
      %v6753 = vadd.f32 %v6700, 1.0
      %v6754 = vadd.f32 %v6702, 1.0
      %v6755 = vadd.f32 %v6704, 1.0
      %v6756 = vadd.f32 %v6706, 1.0
      %v6757 = vadd.f32 %v6708, 1.0
      %v6758 = vadd.f32 %v6710, 1.0
      %v6759 = vadd.f32 %v6712, 1.0
      %v6760 = vadd.f32 %v6714, 1.0
      %v6761 = vadd.f32 %v6716, 1.0
      %v6762 = vadd.f32 %v6718, 1.0
      %v6763 = vadd.f32 %v6720, 1.0
      %v6764 = vadd.f32 %v6722, 1.0
      %v6765 = vadd.f32 %v6724, 1.0
      %v6766 = vadd.f32 %v6726, 1.0
      %v6767 = vadd.f32 %v6728, 1.0
      %v6768 = vadd.f32 %v6730, 1.0
      %v6769 = vadd.f32 %v6732, 1.0
      %v6770 = vadd.f32 %v6734, 1.0
      %v6771 = vadd.f32 %v6736, 1.0
      %v6772 = vadd.f32 %v6738, 1.0
      %v6773 = vadd.f32 %v6740, 1.0
      %v6774 = vadd.f32 %v6742, 1.0
      %v6775 = vrcp.pop %v6743
      %v6776 = vrcp.pop %v6744
      %v6777 = vrcp.pop %v6745
      %v6778 = vrcp.pop %v6746
      %v6779 = vrcp.pop %v6747
      %v6780 = vrcp.pop %v6748
      %v6781 = vrcp.pop %v6749
      %v6782 = vrcp.pop %v6750
      %v6783 = vrcp.pop %v6751
      %v6784 = vrcp.pop %v6752
      %v6785 = vrcp.pop %v6753
      %v6786 = vrcp.pop %v6754
      %v6787 = vrcp.pop %v6755
      %v6788 = vrcp.pop %v6756
      %v6789 = vrcp.pop %v6757
      %v6790 = vrcp.pop %v6758
      %v6791 = vrcp.pop %v6759
      %v6792 = vrcp.pop %v6760
      %v6793 = vrcp.pop %v6761
      %v6794 = vrcp.pop %v6762
      %v6795 = vrcp.pop %v6763
      %v6796 = vrcp.pop %v6764
      %v6797 = vrcp.pop %v6765
      %v6798 = vrcp.pop %v6766
      %v6799 = vrcp.pop %v6767
      %v6800 = vrcp.pop %v6768
      %v6801 = vrcp.pop %v6769
      %v6802 = vrcp.pop %v6770
      %v6803 = vrcp.pop %v6771
      %v6804 = vrcp.pop %v6772
      %v6805 = vrcp.pop %v6773
      %v6806 = vrcp.pop %v6774
      %vm6807 = vcmask 7168
      %6808 = vst.msk [vmem:[%s285] sm:$0xff] %vm6807, %v6775
      %6809 = vst.msk [vmem:[%s285 + $0x8] sm:$0xff] %vm6807, %v6776
      %6810 = vst.msk [vmem:[%s285 + $0x10] sm:$0xff] %vm6807, %v6777
      %6811 = vst.msk [vmem:[%s285 + $0x18] sm:$0xff] %vm6807, %v6778
      %6812 = vst.msk [vmem:[%s285 + $0x20] sm:$0xff] %vm6807, %v6779
      %6813 = vst.msk [vmem:[%s285 + $0x28] sm:$0xff] %vm6807, %v6780
      %6814 = vst.msk [vmem:[%s285 + $0x30] sm:$0xff] %vm6807, %v6781
      %6815 = vst.msk [vmem:[%s285 + $0x38] sm:$0xff] %vm6807, %v6782
      %6816 = vst.msk [vmem:[%s285 + $0x40] sm:$0xff] %vm6807, %v6783
      %6817 = vst.msk [vmem:[%s285 + $0x48] sm:$0xff] %vm6807, %v6784
      %6818 = vst.msk [vmem:[%s285 + $0x50] sm:$0xff] %vm6807, %v6785
      %6819 = vst.msk [vmem:[%s285 + $0x58] sm:$0xff] %vm6807, %v6786
      %6820 = vst.msk [vmem:[%s285 + $0x60] sm:$0xff] %vm6807, %v6787
      %6821 = vst.msk [vmem:[%s285 + $0x68] sm:$0xff] %vm6807, %v6788
      %6822 = vst.msk [vmem:[%s285 + $0x70] sm:$0xff] %vm6807, %v6789
      %6823 = vst.msk [vmem:[%s285 + $0x78] sm:$0xff] %vm6807, %v6790
      %6824 = vst.msk [vmem:[%s285 + $0x80] sm:$0xff] %vm6807, %v6791
      %6825 = vst.msk [vmem:[%s285 + $0x88] sm:$0xff] %vm6807, %v6792
      %6826 = vst.msk [vmem:[%s285 + $0x90] sm:$0xff] %vm6807, %v6793
      %6827 = vst.msk [vmem:[%s285 + $0x98] sm:$0xff] %vm6807, %v6794
      %6828 = vst.msk [vmem:[%s285 + $0xa0] sm:$0xff] %vm6807, %v6795
      %6829 = vst.msk [vmem:[%s285 + $0xa8] sm:$0xff] %vm6807, %v6796
      %6830 = vst.msk [vmem:[%s285 + $0xb0] sm:$0xff] %vm6807, %v6797
      %6831 = vst.msk [vmem:[%s285 + $0xb8] sm:$0xff] %vm6807, %v6798
      %6832 = vst.msk [vmem:[%s285 + $0xc0] sm:$0xff] %vm6807, %v6799
      %6833 = vst.msk [vmem:[%s285 + $0xc8] sm:$0xff] %vm6807, %v6800
      %6834 = vst.msk [vmem:[%s285 + $0xd0] sm:$0xff] %vm6807, %v6801
      %6835 = vst.msk [vmem:[%s285 + $0xd8] sm:$0xff] %vm6807, %v6802
      %6836 = vst.msk [vmem:[%s285 + $0xe0] sm:$0xff] %vm6807, %v6803
      %6837 = vst.msk [vmem:[%s285 + $0xe8] sm:$0xff] %vm6807, %v6804
      %6838 = vst.msk [vmem:[%s285 + $0xf0] sm:$0xff] %vm6807, %v6805
      %6839 = vst.msk [vmem:[%s285 + $0xf8] sm:$0xff] %vm6807, %v6806
      %s6840 = smul.u32 32, %s20
      %p6841 = scmp.lt.s32.totalorder %s6840, 63
      %s6842 = scalar_select %p6841, %s6840, 63
      %s6843 = smul.addr %s6842, 8
      %s6844 = scalar_lea.vmem %s7, %s6843
      // Predicated region
      $region49: #{tpu_custom_call.1} parent=47 // pred_check
        %p6845 = pneg %p190
      $region50: #{tpu_custom_call.1} parent=47 // pred_check_branch
        %6847 = sbr.rel (%p6845) target = $region52
      $region51: #{tpu_custom_call.1} parent=47 // pred_region
        %s6848 = smul.u32 32, %s20
      $region52: #{tpu_custom_call.1} parent=47 // pred_fallthru
        _
    $region48: #{tpu_custom_call.1} parent=5 // pred_fallthru
      _
    %p6849 = scmp.le.s32.totalorder 2, %s15
    // Predicated region
    $region53: #{tpu_custom_call.1} parent=5 // pred_check
      %p6850 = pneg %p6849
    $region54: #{tpu_custom_call.1} parent=5 // pred_check_branch
      %6852 = sbr.rel (%p6850) target = $region56
    $region55: #{tpu_custom_call.1} parent=5 // pred_region
      %s6853 = ssub.s32 %s15, 2
      // Predicated region
      $region57: #{tpu_custom_call.1} parent=55 // pred_check
        %p6854 = pneg %p196
      $region58: #{tpu_custom_call.1} parent=55 // pred_check_branch
        %6856 = sbr.rel (%p6854) target = $region60
      $region59: #{tpu_custom_call.1} parent=55 // pred_region
        %s6857 = smul.u32 32, %s21
        %p6858 = scmp.lt.s32.totalorder %s6857, 63
        %s6859 = scalar_select %p6858, %s6857, 63
        %s6860 = smul.addr %s6859, 8
        %s6861 = scalar_lea.vmem %s7, %s6860
      $region60: #{tpu_custom_call.1} parent=55 // pred_fallthru
        _
    $region56: #{tpu_custom_call.1} parent=5 // pred_fallthru
      _
  $region6: #{tpu_custom_call.1} parent=0 // loop_footer
    %s19 = sadd.s32 1, %s15
  $region7: #{tpu_custom_call.1} parent=0 // loop_footer_branch
    %14 = sbr.rel target = $region3
  $region8: #{tpu_custom_call.1} parent=0 // loop_exit
    _

</llo_original>
